<compile_context>
chip_gen: v7x
topology: tpu7x:2x2x1
jax: 0.10.0
libtpu: 0.0.40
codegen_flags: <defaults>
</compile_context>

<pallas_src>
import math

import numpy as np
import jax
import jax.numpy as jnp
from jax.experimental import pallas as pl
from jax.experimental.pallas import tpu as pltpu


# ----------------------------------------------------------------------------
# Fused kernel
# ----------------------------------------------------------------------------
def fused_heads_kernel(boards_ref, pw_ref, pb_ref,
                       w0_ref, b0_ref, wr_ref, br_ref,
                       w1_ref, b1_ref, w2_ref, b2_ref,
                       sq_ref, gr_ref, mt_ref, gl_ref):
    """Single-invocation kernel (no grid); every operand lives fully in VMEM.

    boards_ref : (B, S, D)     encoder output
    pw_ref     : (5, D)        rows: game/time/length pooling, from, to (each Linear(D,1))
    pb_ref     : (1, 5, 1)     matching biases
    w0_ref     : (3, D, h)     first Linear of each head        (h = D//2)
    b0_ref     : (3, 1, h)
    wr_ref     : (18, h, h)    6 residual-block Linears per head, heads concatenated
    br_ref     : (18, 1, h)
    w1_ref     : (3, h, e)     Linear(h, e)                      (e = D//8)
    b1_ref     : (3, 1, e)
    w2_ref     : (3, e, 1)     Linear(e, 1)
    b2_ref     : (3, 1, 1)
    sq_ref     : (B, 2, S-16)  from/to square logits, seq on lanes, pre-sliced [16:]
    gr_ref     : (B, 1)        tanh(game_result head)
    mt_ref     : (B, 1)        sigmoid(move_time head)   (x100 applied in wrapper)
    gl_ref     : (B, 1)        game_length head
    """
    B, S, D = boards_ref.shape
    x = boards_ref[...]                                              # (B, S, D)

    # ---- one fused batched matmul: 3 pooling logits + 2 square logits ----
    w_all = jnp.broadcast_to(pw_ref[...][None, :, :], (B, 5, D))     # (B, 5, D)
    logits = jnp.einsum("bfd,bsd->bfs", w_all, x,
                        preferred_element_type=jnp.float32)          # (B, 5, S)
    logits = logits + pb_ref[...]                                    # + (1, 5, 1)

    # from/to square logits: lane-dense (seq on lanes), sliced to tokens 16:
    sq_ref[...] = logits[:, 3:5, 16:]                                # (B, 2, S-16)

    # softmax over the sequence (lane axis) for the three pooling heads
    pool = logits[:, 0:3, :]                                         # (B, 3, S)
    m = jnp.max(pool, axis=-1, keepdims=True)
    e = jnp.exp(pool - m)
    wsm = e / jnp.sum(e, axis=-1, keepdims=True)                     # (B, 3, S)

    # pooled contexts: ctx[b, j, d] = sum_s wsm[b, j, s] * x[b, s, d]
    ctx = jnp.einsum("bjs,bsd->bjd", wsm, x,
                     preferred_element_type=jnp.float32)             # (B, 3, D)

    # ---- three MLP heads (game_result / move_time / game_length) ---------
    outs = []
    for j in range(3):
        c = ctx[:, j, :]                                             # (B, D)
        h = jnp.maximum(
            jnp.dot(c, w0_ref[j], preferred_element_type=jnp.float32)
            + b0_ref[j], 0.0)                                        # (B, h)
        # 3 residual blocks: x + ReLU(Linear(ReLU(Linear(x))))
        for i in range(3):
            li = 6 * j + 2 * i
            y = jnp.maximum(
                jnp.dot(h, wr_ref[li], preferred_element_type=jnp.float32)
                + br_ref[li], 0.0)
            y = jnp.maximum(
                jnp.dot(y, wr_ref[li + 1], preferred_element_type=jnp.float32)
                + br_ref[li + 1], 0.0)
            h = h + y
        z = jnp.maximum(
            jnp.dot(h, w1_ref[j], preferred_element_type=jnp.float32)
            + b1_ref[j], 0.0)                                        # (B, e)
        o = (jnp.dot(z, w2_ref[j], preferred_element_type=jnp.float32)
             + b2_ref[j])                                            # (B, 1)
        outs.append(o)

    gr_ref[...] = jnp.tanh(outs[0])
    mt_ref[...] = jax.nn.sigmoid(outs[1])
    gl_ref[...] = outs[2]


# ----------------------------------------------------------------------------
# Wrapper: one pallas_call, everything in VMEM, no grid.
# ----------------------------------------------------------------------------
def run_fused(boards, pw, pb, w0s, b0s, wrs, brs, w1s, b1s, w2s, b2s):
    B, S, D = boards.shape
    vmem = pltpu.MemorySpace.VMEM
    args = (boards, pw, pb, w0s, b0s, wrs, brs, w1s, b1s, w2s, b2s)
    sq, gr, mt, gl = pl.pallas_call(
        fused_heads_kernel,
        out_shape=(
            jax.ShapeDtypeStruct((B, 2, S - 16), jnp.float32),
            jax.ShapeDtypeStruct((B, 1), jnp.float32),
            jax.ShapeDtypeStruct((B, 1), jnp.float32),
            jax.ShapeDtypeStruct((B, 1), jnp.float32),
        ),
        in_specs=[pl.BlockSpec(memory_space=vmem)] * len(args),
        out_specs=(pl.BlockSpec(memory_space=vmem),) * 4,
    )(*args)
    return sq, gr, mt, gl


def chess_heads_forward(boards, params):
    """Reproduces ChessTemporalTransformerEncoder.forward given encoder output."""
    pw, pb, head_stack = params
    sq, gr, mt, gl = run_fused(boards, pw, pb, *head_stack)
    return {
        "from_squares": sq[:, 0:1, :],      # (B, 1, S-16)
        "to_squares": sq[:, 1:2, :],        # (B, 1, S-16)
        "game_result": gr,                  # (B, 1)
        "move_time": mt * 100.0,            # (B, 1)
        "moves_until_end": gl,              # (B, 1)
    }


# ----------------------------------------------------------------------------
# Deterministic parameter init (xavier-uniform weights, zero biases)
# ----------------------------------------------------------------------------
def xavier(key, fan_in, fan_out):
    bound = math.sqrt(6.0 / (fan_in + fan_out))
    # stored as (in, out) so the kernel computes y = x @ W + b
    return jax.random.uniform(key, (fan_in, fan_out), jnp.float32, -bound, bound)


def make_head_params(key, d_model):
    h = d_model // 2
    e = d_model // 8
    ks = jax.random.split(key, 9)
    return dict(
        w0=xavier(ks[0], d_model, h),
        b0=jnp.zeros((1, h), jnp.float32),
        wr=jnp.stack([xavier(ks[1 + i], h, h) for i in range(6)]),   # (6, h, h)
        br=jnp.zeros((6, 1, h), jnp.float32),
        w1=xavier(ks[7], h, e),
        b1=jnp.zeros((1, e), jnp.float32),
        w2=xavier(ks[8], e, 1),
        b2=jnp.zeros((1, 1), jnp.float32),
    )


def stack_heads(heads):
    """Stack the 3 heads' params into head-indexed arrays for the fused kernel."""
    w0s = jnp.stack([hd["w0"] for hd in heads])                 # (3, D, h)
    b0s = jnp.stack([hd["b0"] for hd in heads])                 # (3, 1, h)
    wrs = jnp.concatenate([hd["wr"] for hd in heads], axis=0)   # (18, h, h)
    brs = jnp.concatenate([hd["br"] for hd in heads], axis=0)   # (18, 1, h)
    w1s = jnp.stack([hd["w1"] for hd in heads])                 # (3, h, e)
    b1s = jnp.stack([hd["b1"] for hd in heads])                 # (3, 1, e)
    w2s = jnp.stack([hd["w2"] for hd in heads])                 # (3, e, 1)
    b2s = jnp.stack([hd["b2"] for hd in heads])                 # (3, 1, 1)
    return (w0s, b0s, wrs, brs, w1s, b1s, w2s, b2s)


# ----------------------------------------------------------------------------
# Pure-JAX reference (same intended semantics) for a numerical sanity check.
# ----------------------------------------------------------------------------
def reference_forward(boards, params):
    pw, pb, (w0s, b0s, wrs, brs, w1s, b1s, w2s, b2s) = params
    logits = jnp.einsum("bsd,fd->bfs", boards, pw) + pb
    sq = logits[:, 3:5, 16:]
    wsm = jax.nn.softmax(logits[:, 0:3, :], axis=-1)
    ctx = jnp.einsum("bjs,bsd->bjd", wsm, boards)
    outs = []
    for j in range(3):
        h = jax.nn.relu(ctx[:, j, :] @ w0s[j] + b0s[j])
        for i in range(3):
            li = 6 * j + 2 * i
            y = jax.nn.relu(h @ wrs[li] + brs[li])
            y = jax.nn.relu(y @ wrs[li + 1] + brs[li + 1])
            h = h + y
        z = jax.nn.relu(h @ w1s[j] + b1s[j])
        outs.append(z @ w2s[j] + b2s[j])
    return {
        "from_squares": sq[:, 0:1, :],
        "to_squares": sq[:, 1:2, :],
        "game_result": jnp.tanh(outs[0]),
        "move_time": jax.nn.sigmoid(outs[1]) * 100.0,
        "moves_until_end": outs[2],
    }


# ----------------------------------------------------------------------------
if __name__ == "__main__":
    B, S, D = 2, 80, 64          # 80 tokens = 16 metadata + 64 board squares

    root = jax.random.PRNGKey(0)
    k_board, k_pool, k_gr, k_mt, k_gl = jax.random.split(root, 5)

    # encoder output stand-in (see TODO at top of file)
    boards = jax.random.normal(k_board, (B, S, D), jnp.float32)

    # pooling heads (game_result / move_time / game_length) + from/to heads,
    # each a Linear(D, 1); stacked as rows of a single (5, D) weight.
    kp = jax.random.split(k_pool, 5)
    pw = jnp.stack([xavier(kp[i], D, 1)[:, 0] for i in range(5)])    # (5, D)
    pb = jnp.zeros((1, 5, 1), jnp.float32)

    heads = [make_head_params(k, D) for k in (k_gr, k_mt, k_gl)]
    head_stack = stack_heads(heads)

    params = (pw, pb, head_stack)

    preds = jax.jit(chess_heads_forward)(boards, params)
    preds = jax.block_until_ready(preds)

    assert preds["from_squares"].shape == (B, 1, S - 16)
    assert preds["to_squares"].shape == (B, 1, S - 16)
    assert preds["game_result"].shape == (B, 1)
    assert preds["move_time"].shape == (B, 1)
    assert preds["moves_until_end"].shape == (B, 1)

    # numerical sanity check against the pure-JAX reference
    ref = reference_forward(boards, params)
    for k in preds:
        a = np.asarray(preds[k], dtype=np.float64)
        b = np.asarray(ref[k], dtype=np.float64)
        if k == "move_time":
            a, b = a / 100.0, b / 100.0
        np.testing.assert_allclose(a, b, rtol=2e-2, atol=2e-2)

    print("KERNEL_OK")
</pallas_src>

<mosaic_0001>
module attributes {stable_mosaic.version = 11 : i64} {
  func.func @fused_heads_kernel(%arg0: memref<2x80x64xf32, #tpu.memory_space<vmem>>, %arg1: memref<5x64xf32, #tpu.memory_space<vmem>>, %arg2: memref<1x5x1xf32, #tpu.memory_space<vmem>>, %arg3: memref<3x64x32xf32, #tpu.memory_space<vmem>>, %arg4: memref<3x1x32xf32, #tpu.memory_space<vmem>>, %arg5: memref<18x32x32xf32, #tpu.memory_space<vmem>>, %arg6: memref<18x1x32xf32, #tpu.memory_space<vmem>>, %arg7: memref<3x32x8xf32, #tpu.memory_space<vmem>>, %arg8: memref<3x1x8xf32, #tpu.memory_space<vmem>>, %arg9: memref<3x8x1xf32, #tpu.memory_space<vmem>>, %arg10: memref<3x1x1xf32, #tpu.memory_space<vmem>>, %arg11: memref<2x2x64xf32, #tpu.memory_space<vmem>>, %arg12: memref<2x1xf32, #tpu.memory_space<vmem>>, %arg13: memref<2x1xf32, #tpu.memory_space<vmem>>, %arg14: memref<2x1xf32, #tpu.memory_space<vmem>>) attributes {dimension_semantics = [], scalar_prefetch = 0 : i64, scratch_operands = 0 : i64, tpu.core_type = #tpu.core_type<tc>} {
    %c0 = arith.constant 0 : index
    %c0_0 = arith.constant 0 : index
    %c0_1 = arith.constant 0 : index
    %0 = vector.load %arg0[%c0, %c0_0, %c0_1] : memref<2x80x64xf32, #tpu.memory_space<vmem>>, vector<2x80x64xf32>
    %c0_2 = arith.constant 0 : index
    %c0_3 = arith.constant 0 : index
    %1 = vector.load %arg1[%c0_2, %c0_3] : memref<5x64xf32, #tpu.memory_space<vmem>>, vector<5x64xf32>
    %2 = vector.shape_cast %1 : vector<5x64xf32> to vector<1x5x64xf32>
    %3 = vector.shape_cast %2 : vector<1x5x64xf32> to vector<1x5x64xf32>
    %4 = vector.broadcast %3 : vector<1x5x64xf32> to vector<2x5x64xf32>
    "tpu.trace_start"() <{level = 10 : i32, message = "bfd,bsd->bfs"}> : () -> ()
    %cst = arith.constant dense<0.000000e+00> : vector<2x5x80xf32>
    %5 = tpu.matmul %4, %0, %cst {dimension_numbers = #tpu.dot_dimension_numbers<[2], [2], [1], [1], [0, 0, 0, 1, 1, 1], [0], [0]>} : vector<2x5x64xf32>, vector<2x80x64xf32>, vector<2x5x80xf32> -> vector<2x5x80xf32>
    "tpu.trace_stop"() : () -> ()
    %c0_4 = arith.constant 0 : index
    %c0_5 = arith.constant 0 : index
    %c0_6 = arith.constant 0 : index
    %6 = vector.load %arg2[%c0_4, %c0_5, %c0_6] : memref<1x5x1xf32, #tpu.memory_space<vmem>>, vector<1x5x1xf32>
    %7 = vector.broadcast %6 : vector<1x5x1xf32> to vector<2x5x80xf32>
    %8 = arith.addf %5, %7 : vector<2x5x80xf32>
    %9 = vector.extract_strided_slice %8 {offsets = [0, 3, 16], sizes = [2, 2, 64], strides = [1, 1, 1]} : vector<2x5x80xf32> to vector<2x2x64xf32>
    %c0_7 = arith.constant 0 : index
    %c0_8 = arith.constant 0 : index
    %c0_9 = arith.constant 0 : index
    %10 = vector.load %arg11[%c0_7, %c0_8, %c0_9] : memref<2x2x64xf32, #tpu.memory_space<vmem>>, vector<2x2x64xf32>
    tpu.vector_store %arg11[%c0_7, %c0_8, %c0_9], %9 {strides = array<i32>} : memref<2x2x64xf32, #tpu.memory_space<vmem>>, vector<2x2x64xf32>,
    %11 = vector.extract_strided_slice %8 {offsets = [0, 0, 0], sizes = [2, 3, 80], strides = [1, 1, 1]} : vector<2x5x80xf32> to vector<2x3x80xf32>
    %cst_10 = arith.constant dense<0xFF800000> : vector<2x3xf32>
    %12 = vector.multi_reduction <maximumf>, %11, %cst_10 [2] : vector<2x3x80xf32> to vector<2x3xf32>
    %13 = vector.shape_cast %12 : vector<2x3xf32> to vector<2x3x1xf32>
    %14 = vector.broadcast %13 : vector<2x3x1xf32> to vector<2x3x80xf32>
    %15 = arith.subf %11, %14 : vector<2x3x80xf32>
    %16 = math.exp %15 : vector<2x3x80xf32>
    %cst_11 = arith.constant dense<0.000000e+00> : vector<2x3xf32>
    %17 = vector.multi_reduction <add>, %16, %cst_11 [2] : vector<2x3x80xf32> to vector<2x3xf32>
    %18 = vector.shape_cast %17 : vector<2x3xf32> to vector<2x3x1xf32>
    %19 = vector.broadcast %18 : vector<2x3x1xf32> to vector<2x3x80xf32>
    %20 = arith.divf %16, %19 : vector<2x3x80xf32>
    "tpu.trace_start"() <{level = 10 : i32, message = "bjs,bsd->bjd"}> : () -> ()
    %cst_12 = arith.constant dense<0.000000e+00> : vector<2x3x64xf32>
    %21 = tpu.matmul %20, %0, %cst_12 {dimension_numbers = #tpu.dot_dimension_numbers<[2], [1], [1], [2], [0, 0, 0, 1, 1, 2], [0], [0]>} : vector<2x3x80xf32>, vector<2x80x64xf32>, vector<2x3x64xf32> -> vector<2x3x64xf32>
    "tpu.trace_stop"() : () -> ()
    %22 = vector.extract_strided_slice %21 {offsets = [0, 0, 0], sizes = [2, 1, 64], strides = [1, 1, 1]} : vector<2x3x64xf32> to vector<2x1x64xf32>
    %23 = vector.shape_cast %22 : vector<2x1x64xf32> to vector<2x64xf32>
    %c0_13 = arith.constant 0 : index
    %c0_14 = arith.constant 0 : index
    %c0_15 = arith.constant 0 : index
    %24 = vector.load %arg3[%c0_13, %c0_14, %c0_15] : memref<3x64x32xf32, #tpu.memory_space<vmem>>, vector<1x64x32xf32>
    %25 = vector.shape_cast %24 : vector<1x64x32xf32> to vector<64x32xf32>
    %cst_16 = arith.constant dense<0.000000e+00> : vector<2x32xf32>
    %26 = tpu.matmul %23, %25, %cst_16 {dimension_numbers = #tpu.dot_dimension_numbers<[1], [0], [0], [1], [0, 0, 1, 1], [], []>} : vector<2x64xf32>, vector<64x32xf32>, vector<2x32xf32> -> vector<2x32xf32>
    %c0_17 = arith.constant 0 : index
    %c0_18 = arith.constant 0 : index
    %c0_19 = arith.constant 0 : index
    %27 = vector.load %arg4[%c0_17, %c0_18, %c0_19] : memref<3x1x32xf32, #tpu.memory_space<vmem>>, vector<1x1x32xf32>
    %28 = vector.shape_cast %27 : vector<1x1x32xf32> to vector<1x32xf32>
    %29 = vector.broadcast %28 : vector<1x32xf32> to vector<2x32xf32>
    %30 = arith.addf %26, %29 : vector<2x32xf32>
    %cst_20 = arith.constant 0.000000e+00 : f32
    %31 = vector.broadcast %cst_20 : f32 to vector<2x32xf32>
    %32 = arith.maximumf %30, %31 : vector<2x32xf32>
    %c0_21 = arith.constant 0 : index
    %c0_22 = arith.constant 0 : index
    %c0_23 = arith.constant 0 : index
    %33 = vector.load %arg5[%c0_21, %c0_22, %c0_23] : memref<18x32x32xf32, #tpu.memory_space<vmem>>, vector<1x32x32xf32>
    %34 = vector.shape_cast %33 : vector<1x32x32xf32> to vector<32x32xf32>
    %cst_24 = arith.constant dense<0.000000e+00> : vector<2x32xf32>
    %35 = tpu.matmul %32, %34, %cst_24 {dimension_numbers = #tpu.dot_dimension_numbers<[1], [0], [0], [1], [0, 0, 1, 1], [], []>} : vector<2x32xf32>, vector<32x32xf32>, vector<2x32xf32> -> vector<2x32xf32>
    %c0_25 = arith.constant 0 : index
    %c0_26 = arith.constant 0 : index
    %c0_27 = arith.constant 0 : index
    %36 = vector.load %arg6[%c0_25, %c0_26, %c0_27] : memref<18x1x32xf32, #tpu.memory_space<vmem>>, vector<1x1x32xf32>
    %37 = vector.shape_cast %36 : vector<1x1x32xf32> to vector<1x32xf32>
    %38 = vector.broadcast %37 : vector<1x32xf32> to vector<2x32xf32>
    %39 = arith.addf %35, %38 : vector<2x32xf32>
    %cst_28 = arith.constant 0.000000e+00 : f32
    %40 = vector.broadcast %cst_28 : f32 to vector<2x32xf32>
    %41 = arith.maximumf %39, %40 : vector<2x32xf32>
    %c1 = arith.constant 1 : index
    %c0_29 = arith.constant 0 : index
    %c0_30 = arith.constant 0 : index
    %42 = vector.load %arg5[%c1, %c0_29, %c0_30] : memref<18x32x32xf32, #tpu.memory_space<vmem>>, vector<1x32x32xf32>
    %43 = vector.shape_cast %42 : vector<1x32x32xf32> to vector<32x32xf32>
    %cst_31 = arith.constant dense<0.000000e+00> : vector<2x32xf32>
    %44 = tpu.matmul %41, %43, %cst_31 {dimension_numbers = #tpu.dot_dimension_numbers<[1], [0], [0], [1], [0, 0, 1, 1], [], []>} : vector<2x32xf32>, vector<32x32xf32>, vector<2x32xf32> -> vector<2x32xf32>
    %c1_32 = arith.constant 1 : index
    %c0_33 = arith.constant 0 : index
    %c0_34 = arith.constant 0 : index
    %45 = vector.load %arg6[%c1_32, %c0_33, %c0_34] : memref<18x1x32xf32, #tpu.memory_space<vmem>>, vector<1x1x32xf32>
    %46 = vector.shape_cast %45 : vector<1x1x32xf32> to vector<1x32xf32>
    %47 = vector.broadcast %46 : vector<1x32xf32> to vector<2x32xf32>
    %48 = arith.addf %44, %47 : vector<2x32xf32>
    %cst_35 = arith.constant 0.000000e+00 : f32
    %49 = vector.broadcast %cst_35 : f32 to vector<2x32xf32>
    %50 = arith.maximumf %48, %49 : vector<2x32xf32>
    %51 = arith.addf %32, %50 : vector<2x32xf32>
    %c2 = arith.constant 2 : index
    %c0_36 = arith.constant 0 : index
    %c0_37 = arith.constant 0 : index
    %52 = vector.load %arg5[%c2, %c0_36, %c0_37] : memref<18x32x32xf32, #tpu.memory_space<vmem>>, vector<1x32x32xf32>
    %53 = vector.shape_cast %52 : vector<1x32x32xf32> to vector<32x32xf32>
    %cst_38 = arith.constant dense<0.000000e+00> : vector<2x32xf32>
    %54 = tpu.matmul %51, %53, %cst_38 {dimension_numbers = #tpu.dot_dimension_numbers<[1], [0], [0], [1], [0, 0, 1, 1], [], []>} : vector<2x32xf32>, vector<32x32xf32>, vector<2x32xf32> -> vector<2x32xf32>
    %c2_39 = arith.constant 2 : index
    %c0_40 = arith.constant 0 : index
    %c0_41 = arith.constant 0 : index
    %55 = vector.load %arg6[%c2_39, %c0_40, %c0_41] : memref<18x1x32xf32, #tpu.memory_space<vmem>>, vector<1x1x32xf32>
    %56 = vector.shape_cast %55 : vector<1x1x32xf32> to vector<1x32xf32>
    %57 = vector.broadcast %56 : vector<1x32xf32> to vector<2x32xf32>
    %58 = arith.addf %54, %57 : vector<2x32xf32>
    %cst_42 = arith.constant 0.000000e+00 : f32
    %59 = vector.broadcast %cst_42 : f32 to vector<2x32xf32>
    %60 = arith.maximumf %58, %59 : vector<2x32xf32>
    %c3 = arith.constant 3 : index
    %c0_43 = arith.constant 0 : index
    %c0_44 = arith.constant 0 : index
    %61 = vector.load %arg5[%c3, %c0_43, %c0_44] : memref<18x32x32xf32, #tpu.memory_space<vmem>>, vector<1x32x32xf32>
    %62 = vector.shape_cast %61 : vector<1x32x32xf32> to vector<32x32xf32>
    %cst_45 = arith.constant dense<0.000000e+00> : vector<2x32xf32>
    %63 = tpu.matmul %60, %62, %cst_45 {dimension_numbers = #tpu.dot_dimension_numbers<[1], [0], [0], [1], [0, 0, 1, 1], [], []>} : vector<2x32xf32>, vector<32x32xf32>, vector<2x32xf32> -> vector<2x32xf32>
    %c3_46 = arith.constant 3 : index
    %c0_47 = arith.constant 0 : index
    %c0_48 = arith.constant 0 : index
    %64 = vector.load %arg6[%c3_46, %c0_47, %c0_48] : memref<18x1x32xf32, #tpu.memory_space<vmem>>, vector<1x1x32xf32>
    %65 = vector.shape_cast %64 : vector<1x1x32xf32> to vector<1x32xf32>
    %66 = vector.broadcast %65 : vector<1x32xf32> to vector<2x32xf32>
    %67 = arith.addf %63, %66 : vector<2x32xf32>
    %cst_49 = arith.constant 0.000000e+00 : f32
    %68 = vector.broadcast %cst_49 : f32 to vector<2x32xf32>
    %69 = arith.maximumf %67, %68 : vector<2x32xf32>
    %70 = arith.addf %51, %69 : vector<2x32xf32>
    %c4 = arith.constant 4 : index
    %c0_50 = arith.constant 0 : index
    %c0_51 = arith.constant 0 : index
    %71 = vector.load %arg5[%c4, %c0_50, %c0_51] : memref<18x32x32xf32, #tpu.memory_space<vmem>>, vector<1x32x32xf32>
    %72 = vector.shape_cast %71 : vector<1x32x32xf32> to vector<32x32xf32>
    %cst_52 = arith.constant dense<0.000000e+00> : vector<2x32xf32>
    %73 = tpu.matmul %70, %72, %cst_52 {dimension_numbers = #tpu.dot_dimension_numbers<[1], [0], [0], [1], [0, 0, 1, 1], [], []>} : vector<2x32xf32>, vector<32x32xf32>, vector<2x32xf32> -> vector<2x32xf32>
    %c4_53 = arith.constant 4 : index
    %c0_54 = arith.constant 0 : index
    %c0_55 = arith.constant 0 : index
    %74 = vector.load %arg6[%c4_53, %c0_54, %c0_55] : memref<18x1x32xf32, #tpu.memory_space<vmem>>, vector<1x1x32xf32>
    %75 = vector.shape_cast %74 : vector<1x1x32xf32> to vector<1x32xf32>
    %76 = vector.broadcast %75 : vector<1x32xf32> to vector<2x32xf32>
    %77 = arith.addf %73, %76 : vector<2x32xf32>
    %cst_56 = arith.constant 0.000000e+00 : f32
    %78 = vector.broadcast %cst_56 : f32 to vector<2x32xf32>
    %79 = arith.maximumf %77, %78 : vector<2x32xf32>
    %c5 = arith.constant 5 : index
    %c0_57 = arith.constant 0 : index
    %c0_58 = arith.constant 0 : index
    %80 = vector.load %arg5[%c5, %c0_57, %c0_58] : memref<18x32x32xf32, #tpu.memory_space<vmem>>, vector<1x32x32xf32>
    %81 = vector.shape_cast %80 : vector<1x32x32xf32> to vector<32x32xf32>
    %cst_59 = arith.constant dense<0.000000e+00> : vector<2x32xf32>
    %82 = tpu.matmul %79, %81, %cst_59 {dimension_numbers = #tpu.dot_dimension_numbers<[1], [0], [0], [1], [0, 0, 1, 1], [], []>} : vector<2x32xf32>, vector<32x32xf32>, vector<2x32xf32> -> vector<2x32xf32>
    %c5_60 = arith.constant 5 : index
    %c0_61 = arith.constant 0 : index
    %c0_62 = arith.constant 0 : index
    %83 = vector.load %arg6[%c5_60, %c0_61, %c0_62] : memref<18x1x32xf32, #tpu.memory_space<vmem>>, vector<1x1x32xf32>
    %84 = vector.shape_cast %83 : vector<1x1x32xf32> to vector<1x32xf32>
    %85 = vector.broadcast %84 : vector<1x32xf32> to vector<2x32xf32>
    %86 = arith.addf %82, %85 : vector<2x32xf32>
    %cst_63 = arith.constant 0.000000e+00 : f32
    %87 = vector.broadcast %cst_63 : f32 to vector<2x32xf32>
    %88 = arith.maximumf %86, %87 : vector<2x32xf32>
    %89 = arith.addf %70, %88 : vector<2x32xf32>
    %c0_64 = arith.constant 0 : index
    %c0_65 = arith.constant 0 : index
    %c0_66 = arith.constant 0 : index
    %90 = vector.load %arg7[%c0_64, %c0_65, %c0_66] : memref<3x32x8xf32, #tpu.memory_space<vmem>>, vector<1x32x8xf32>
    %91 = vector.shape_cast %90 : vector<1x32x8xf32> to vector<32x8xf32>
    %cst_67 = arith.constant dense<0.000000e+00> : vector<2x8xf32>
    %92 = tpu.matmul %89, %91, %cst_67 {dimension_numbers = #tpu.dot_dimension_numbers<[1], [0], [0], [1], [0, 0, 1, 1], [], []>} : vector<2x32xf32>, vector<32x8xf32>, vector<2x8xf32> -> vector<2x8xf32>
    %c0_68 = arith.constant 0 : index
    %c0_69 = arith.constant 0 : index
    %c0_70 = arith.constant 0 : index
    %93 = vector.load %arg8[%c0_68, %c0_69, %c0_70] : memref<3x1x8xf32, #tpu.memory_space<vmem>>, vector<1x1x8xf32>
    %94 = vector.shape_cast %93 : vector<1x1x8xf32> to vector<1x8xf32>
    %95 = vector.broadcast %94 : vector<1x8xf32> to vector<2x8xf32>
    %96 = arith.addf %92, %95 : vector<2x8xf32>
    %cst_71 = arith.constant 0.000000e+00 : f32
    %97 = vector.broadcast %cst_71 : f32 to vector<2x8xf32>
    %98 = arith.maximumf %96, %97 : vector<2x8xf32>
    %c0_72 = arith.constant 0 : index
    %c0_73 = arith.constant 0 : index
    %c0_74 = arith.constant 0 : index
    %99 = vector.load %arg9[%c0_72, %c0_73, %c0_74] : memref<3x8x1xf32, #tpu.memory_space<vmem>>, vector<1x8x1xf32>
    %100 = vector.shape_cast %99 : vector<1x8x1xf32> to vector<8x1xf32>
    %cst_75 = arith.constant dense<0.000000e+00> : vector<2x1xf32>
    %101 = tpu.matmul %98, %100, %cst_75 {dimension_numbers = #tpu.dot_dimension_numbers<[1], [0], [0], [1], [0, 0, 1, 1], [], []>} : vector<2x8xf32>, vector<8x1xf32>, vector<2x1xf32> -> vector<2x1xf32>
    %c0_76 = arith.constant 0 : index
    %c0_77 = arith.constant 0 : index
    %c0_78 = arith.constant 0 : index
    %102 = vector.load %arg10[%c0_76, %c0_77, %c0_78] : memref<3x1x1xf32, #tpu.memory_space<vmem>>, vector<1x1x1xf32>
    %103 = vector.shape_cast %102 : vector<1x1x1xf32> to vector<1x1xf32>
    %104 = vector.broadcast %103 : vector<1x1xf32> to vector<2x1xf32>
    %105 = arith.addf %101, %104 : vector<2x1xf32>
    %106 = vector.extract_strided_slice %21 {offsets = [0, 1, 0], sizes = [2, 1, 64], strides = [1, 1, 1]} : vector<2x3x64xf32> to vector<2x1x64xf32>
    %107 = vector.shape_cast %106 : vector<2x1x64xf32> to vector<2x64xf32>
    %c1_79 = arith.constant 1 : index
    %c0_80 = arith.constant 0 : index
    %c0_81 = arith.constant 0 : index
    %108 = vector.load %arg3[%c1_79, %c0_80, %c0_81] : memref<3x64x32xf32, #tpu.memory_space<vmem>>, vector<1x64x32xf32>
    %109 = vector.shape_cast %108 : vector<1x64x32xf32> to vector<64x32xf32>
    %cst_82 = arith.constant dense<0.000000e+00> : vector<2x32xf32>
    %110 = tpu.matmul %107, %109, %cst_82 {dimension_numbers = #tpu.dot_dimension_numbers<[1], [0], [0], [1], [0, 0, 1, 1], [], []>} : vector<2x64xf32>, vector<64x32xf32>, vector<2x32xf32> -> vector<2x32xf32>
    %c1_83 = arith.constant 1 : index
    %c0_84 = arith.constant 0 : index
    %c0_85 = arith.constant 0 : index
    %111 = vector.load %arg4[%c1_83, %c0_84, %c0_85] : memref<3x1x32xf32, #tpu.memory_space<vmem>>, vector<1x1x32xf32>
    %112 = vector.shape_cast %111 : vector<1x1x32xf32> to vector<1x32xf32>
    %113 = vector.broadcast %112 : vector<1x32xf32> to vector<2x32xf32>
    %114 = arith.addf %110, %113 : vector<2x32xf32>
    %cst_86 = arith.constant 0.000000e+00 : f32
    %115 = vector.broadcast %cst_86 : f32 to vector<2x32xf32>
    %116 = arith.maximumf %114, %115 : vector<2x32xf32>
    %c6 = arith.constant 6 : index
    %c0_87 = arith.constant 0 : index
    %c0_88 = arith.constant 0 : index
    %117 = vector.load %arg5[%c6, %c0_87, %c0_88] : memref<18x32x32xf32, #tpu.memory_space<vmem>>, vector<1x32x32xf32>
    %118 = vector.shape_cast %117 : vector<1x32x32xf32> to vector<32x32xf32>
    %cst_89 = arith.constant dense<0.000000e+00> : vector<2x32xf32>
    %119 = tpu.matmul %116, %118, %cst_89 {dimension_numbers = #tpu.dot_dimension_numbers<[1], [0], [0], [1], [0, 0, 1, 1], [], []>} : vector<2x32xf32>, vector<32x32xf32>, vector<2x32xf32> -> vector<2x32xf32>
    %c6_90 = arith.constant 6 : index
    %c0_91 = arith.constant 0 : index
    %c0_92 = arith.constant 0 : index
    %120 = vector.load %arg6[%c6_90, %c0_91, %c0_92] : memref<18x1x32xf32, #tpu.memory_space<vmem>>, vector<1x1x32xf32>
    %121 = vector.shape_cast %120 : vector<1x1x32xf32> to vector<1x32xf32>
    %122 = vector.broadcast %121 : vector<1x32xf32> to vector<2x32xf32>
    %123 = arith.addf %119, %122 : vector<2x32xf32>
    %cst_93 = arith.constant 0.000000e+00 : f32
    %124 = vector.broadcast %cst_93 : f32 to vector<2x32xf32>
    %125 = arith.maximumf %123, %124 : vector<2x32xf32>
    %c7 = arith.constant 7 : index
    %c0_94 = arith.constant 0 : index
    %c0_95 = arith.constant 0 : index
    %126 = vector.load %arg5[%c7, %c0_94, %c0_95] : memref<18x32x32xf32, #tpu.memory_space<vmem>>, vector<1x32x32xf32>
    %127 = vector.shape_cast %126 : vector<1x32x32xf32> to vector<32x32xf32>
    %cst_96 = arith.constant dense<0.000000e+00> : vector<2x32xf32>
    %128 = tpu.matmul %125, %127, %cst_96 {dimension_numbers = #tpu.dot_dimension_numbers<[1], [0], [0], [1], [0, 0, 1, 1], [], []>} : vector<2x32xf32>, vector<32x32xf32>, vector<2x32xf32> -> vector<2x32xf32>
    %c7_97 = arith.constant 7 : index
    %c0_98 = arith.constant 0 : index
    %c0_99 = arith.constant 0 : index
    %129 = vector.load %arg6[%c7_97, %c0_98, %c0_99] : memref<18x1x32xf32, #tpu.memory_space<vmem>>, vector<1x1x32xf32>
    %130 = vector.shape_cast %129 : vector<1x1x32xf32> to vector<1x32xf32>
    %131 = vector.broadcast %130 : vector<1x32xf32> to vector<2x32xf32>
    %132 = arith.addf %128, %131 : vector<2x32xf32>
    %cst_100 = arith.constant 0.000000e+00 : f32
    %133 = vector.broadcast %cst_100 : f32 to vector<2x32xf32>
    %134 = arith.maximumf %132, %133 : vector<2x32xf32>
    %135 = arith.addf %116, %134 : vector<2x32xf32>
    %c8 = arith.constant 8 : index
    %c0_101 = arith.constant 0 : index
    %c0_102 = arith.constant 0 : index
    %136 = vector.load %arg5[%c8, %c0_101, %c0_102] : memref<18x32x32xf32, #tpu.memory_space<vmem>>, vector<1x32x32xf32>
    %137 = vector.shape_cast %136 : vector<1x32x32xf32> to vector<32x32xf32>
    %cst_103 = arith.constant dense<0.000000e+00> : vector<2x32xf32>
    %138 = tpu.matmul %135, %137, %cst_103 {dimension_numbers = #tpu.dot_dimension_numbers<[1], [0], [0], [1], [0, 0, 1, 1], [], []>} : vector<2x32xf32>, vector<32x32xf32>, vector<2x32xf32> -> vector<2x32xf32>
    %c8_104 = arith.constant 8 : index
    %c0_105 = arith.constant 0 : index
    %c0_106 = arith.constant 0 : index
    %139 = vector.load %arg6[%c8_104, %c0_105, %c0_106] : memref<18x1x32xf32, #tpu.memory_space<vmem>>, vector<1x1x32xf32>
    %140 = vector.shape_cast %139 : vector<1x1x32xf32> to vector<1x32xf32>
    %141 = vector.broadcast %140 : vector<1x32xf32> to vector<2x32xf32>
    %142 = arith.addf %138, %141 : vector<2x32xf32>
    %cst_107 = arith.constant 0.000000e+00 : f32
    %143 = vector.broadcast %cst_107 : f32 to vector<2x32xf32>
    %144 = arith.maximumf %142, %143 : vector<2x32xf32>
    %c9 = arith.constant 9 : index
    %c0_108 = arith.constant 0 : index
    %c0_109 = arith.constant 0 : index
    %145 = vector.load %arg5[%c9, %c0_108, %c0_109] : memref<18x32x32xf32, #tpu.memory_space<vmem>>, vector<1x32x32xf32>
    %146 = vector.shape_cast %145 : vector<1x32x32xf32> to vector<32x32xf32>
    %cst_110 = arith.constant dense<0.000000e+00> : vector<2x32xf32>
    %147 = tpu.matmul %144, %146, %cst_110 {dimension_numbers = #tpu.dot_dimension_numbers<[1], [0], [0], [1], [0, 0, 1, 1], [], []>} : vector<2x32xf32>, vector<32x32xf32>, vector<2x32xf32> -> vector<2x32xf32>
    %c9_111 = arith.constant 9 : index
    %c0_112 = arith.constant 0 : index
    %c0_113 = arith.constant 0 : index
    %148 = vector.load %arg6[%c9_111, %c0_112, %c0_113] : memref<18x1x32xf32, #tpu.memory_space<vmem>>, vector<1x1x32xf32>
    %149 = vector.shape_cast %148 : vector<1x1x32xf32> to vector<1x32xf32>
    %150 = vector.broadcast %149 : vector<1x32xf32> to vector<2x32xf32>
    %151 = arith.addf %147, %150 : vector<2x32xf32>
    %cst_114 = arith.constant 0.000000e+00 : f32
    %152 = vector.broadcast %cst_114 : f32 to vector<2x32xf32>
    %153 = arith.maximumf %151, %152 : vector<2x32xf32>
    %154 = arith.addf %135, %153 : vector<2x32xf32>
    %c10 = arith.constant 10 : index
    %c0_115 = arith.constant 0 : index
    %c0_116 = arith.constant 0 : index
    %155 = vector.load %arg5[%c10, %c0_115, %c0_116] : memref<18x32x32xf32, #tpu.memory_space<vmem>>, vector<1x32x32xf32>
    %156 = vector.shape_cast %155 : vector<1x32x32xf32> to vector<32x32xf32>
    %cst_117 = arith.constant dense<0.000000e+00> : vector<2x32xf32>
    %157 = tpu.matmul %154, %156, %cst_117 {dimension_numbers = #tpu.dot_dimension_numbers<[1], [0], [0], [1], [0, 0, 1, 1], [], []>} : vector<2x32xf32>, vector<32x32xf32>, vector<2x32xf32> -> vector<2x32xf32>
    %c10_118 = arith.constant 10 : index
    %c0_119 = arith.constant 0 : index
    %c0_120 = arith.constant 0 : index
    %158 = vector.load %arg6[%c10_118, %c0_119, %c0_120] : memref<18x1x32xf32, #tpu.memory_space<vmem>>, vector<1x1x32xf32>
    %159 = vector.shape_cast %158 : vector<1x1x32xf32> to vector<1x32xf32>
    %160 = vector.broadcast %159 : vector<1x32xf32> to vector<2x32xf32>
    %161 = arith.addf %157, %160 : vector<2x32xf32>
    %cst_121 = arith.constant 0.000000e+00 : f32
    %162 = vector.broadcast %cst_121 : f32 to vector<2x32xf32>
    %163 = arith.maximumf %161, %162 : vector<2x32xf32>
    %c11 = arith.constant 11 : index
    %c0_122 = arith.constant 0 : index
    %c0_123 = arith.constant 0 : index
    %164 = vector.load %arg5[%c11, %c0_122, %c0_123] : memref<18x32x32xf32, #tpu.memory_space<vmem>>, vector<1x32x32xf32>
    %165 = vector.shape_cast %164 : vector<1x32x32xf32> to vector<32x32xf32>
    %cst_124 = arith.constant dense<0.000000e+00> : vector<2x32xf32>
    %166 = tpu.matmul %163, %165, %cst_124 {dimension_numbers = #tpu.dot_dimension_numbers<[1], [0], [0], [1], [0, 0, 1, 1], [], []>} : vector<2x32xf32>, vector<32x32xf32>, vector<2x32xf32> -> vector<2x32xf32>
    %c11_125 = arith.constant 11 : index
    %c0_126 = arith.constant 0 : index
    %c0_127 = arith.constant 0 : index
    %167 = vector.load %arg6[%c11_125, %c0_126, %c0_127] : memref<18x1x32xf32, #tpu.memory_space<vmem>>, vector<1x1x32xf32>
    %168 = vector.shape_cast %167 : vector<1x1x32xf32> to vector<1x32xf32>
    %169 = vector.broadcast %168 : vector<1x32xf32> to vector<2x32xf32>
    %170 = arith.addf %166, %169 : vector<2x32xf32>
    %cst_128 = arith.constant 0.000000e+00 : f32
    %171 = vector.broadcast %cst_128 : f32 to vector<2x32xf32>
    %172 = arith.maximumf %170, %171 : vector<2x32xf32>
    %173 = arith.addf %154, %172 : vector<2x32xf32>
    %c1_129 = arith.constant 1 : index
    %c0_130 = arith.constant 0 : index
    %c0_131 = arith.constant 0 : index
    %174 = vector.load %arg7[%c1_129, %c0_130, %c0_131] : memref<3x32x8xf32, #tpu.memory_space<vmem>>, vector<1x32x8xf32>
    %175 = vector.shape_cast %174 : vector<1x32x8xf32> to vector<32x8xf32>
    %cst_132 = arith.constant dense<0.000000e+00> : vector<2x8xf32>
    %176 = tpu.matmul %173, %175, %cst_132 {dimension_numbers = #tpu.dot_dimension_numbers<[1], [0], [0], [1], [0, 0, 1, 1], [], []>} : vector<2x32xf32>, vector<32x8xf32>, vector<2x8xf32> -> vector<2x8xf32>
    %c1_133 = arith.constant 1 : index
    %c0_134 = arith.constant 0 : index
    %c0_135 = arith.constant 0 : index
    %177 = vector.load %arg8[%c1_133, %c0_134, %c0_135] : memref<3x1x8xf32, #tpu.memory_space<vmem>>, vector<1x1x8xf32>
    %178 = vector.shape_cast %177 : vector<1x1x8xf32> to vector<1x8xf32>
    %179 = vector.broadcast %178 : vector<1x8xf32> to vector<2x8xf32>
    %180 = arith.addf %176, %179 : vector<2x8xf32>
    %cst_136 = arith.constant 0.000000e+00 : f32
    %181 = vector.broadcast %cst_136 : f32 to vector<2x8xf32>
    %182 = arith.maximumf %180, %181 : vector<2x8xf32>
    %c1_137 = arith.constant 1 : index
    %c0_138 = arith.constant 0 : index
    %c0_139 = arith.constant 0 : index
    %183 = vector.load %arg9[%c1_137, %c0_138, %c0_139] : memref<3x8x1xf32, #tpu.memory_space<vmem>>, vector<1x8x1xf32>
    %184 = vector.shape_cast %183 : vector<1x8x1xf32> to vector<8x1xf32>
    %cst_140 = arith.constant dense<0.000000e+00> : vector<2x1xf32>
    %185 = tpu.matmul %182, %184, %cst_140 {dimension_numbers = #tpu.dot_dimension_numbers<[1], [0], [0], [1], [0, 0, 1, 1], [], []>} : vector<2x8xf32>, vector<8x1xf32>, vector<2x1xf32> -> vector<2x1xf32>
    %c1_141 = arith.constant 1 : index
    %c0_142 = arith.constant 0 : index
    %c0_143 = arith.constant 0 : index
    %186 = vector.load %arg10[%c1_141, %c0_142, %c0_143] : memref<3x1x1xf32, #tpu.memory_space<vmem>>, vector<1x1x1xf32>
    %187 = vector.shape_cast %186 : vector<1x1x1xf32> to vector<1x1xf32>
    %188 = vector.broadcast %187 : vector<1x1xf32> to vector<2x1xf32>
    %189 = arith.addf %185, %188 : vector<2x1xf32>
    %190 = vector.extract_strided_slice %21 {offsets = [0, 2, 0], sizes = [2, 1, 64], strides = [1, 1, 1]} : vector<2x3x64xf32> to vector<2x1x64xf32>
    %191 = vector.shape_cast %190 : vector<2x1x64xf32> to vector<2x64xf32>
    %c2_144 = arith.constant 2 : index
    %c0_145 = arith.constant 0 : index
    %c0_146 = arith.constant 0 : index
    %192 = vector.load %arg3[%c2_144, %c0_145, %c0_146] : memref<3x64x32xf32, #tpu.memory_space<vmem>>, vector<1x64x32xf32>
    %193 = vector.shape_cast %192 : vector<1x64x32xf32> to vector<64x32xf32>
    %cst_147 = arith.constant dense<0.000000e+00> : vector<2x32xf32>
    %194 = tpu.matmul %191, %193, %cst_147 {dimension_numbers = #tpu.dot_dimension_numbers<[1], [0], [0], [1], [0, 0, 1, 1], [], []>} : vector<2x64xf32>, vector<64x32xf32>, vector<2x32xf32> -> vector<2x32xf32>
    %c2_148 = arith.constant 2 : index
    %c0_149 = arith.constant 0 : index
    %c0_150 = arith.constant 0 : index
    %195 = vector.load %arg4[%c2_148, %c0_149, %c0_150] : memref<3x1x32xf32, #tpu.memory_space<vmem>>, vector<1x1x32xf32>
    %196 = vector.shape_cast %195 : vector<1x1x32xf32> to vector<1x32xf32>
    %197 = vector.broadcast %196 : vector<1x32xf32> to vector<2x32xf32>
    %198 = arith.addf %194, %197 : vector<2x32xf32>
    %cst_151 = arith.constant 0.000000e+00 : f32
    %199 = vector.broadcast %cst_151 : f32 to vector<2x32xf32>
    %200 = arith.maximumf %198, %199 : vector<2x32xf32>
    %c12 = arith.constant 12 : index
    %c0_152 = arith.constant 0 : index
    %c0_153 = arith.constant 0 : index
    %201 = vector.load %arg5[%c12, %c0_152, %c0_153] : memref<18x32x32xf32, #tpu.memory_space<vmem>>, vector<1x32x32xf32>
    %202 = vector.shape_cast %201 : vector<1x32x32xf32> to vector<32x32xf32>
    %cst_154 = arith.constant dense<0.000000e+00> : vector<2x32xf32>
    %203 = tpu.matmul %200, %202, %cst_154 {dimension_numbers = #tpu.dot_dimension_numbers<[1], [0], [0], [1], [0, 0, 1, 1], [], []>} : vector<2x32xf32>, vector<32x32xf32>, vector<2x32xf32> -> vector<2x32xf32>
    %c12_155 = arith.constant 12 : index
    %c0_156 = arith.constant 0 : index
    %c0_157 = arith.constant 0 : index
    %204 = vector.load %arg6[%c12_155, %c0_156, %c0_157] : memref<18x1x32xf32, #tpu.memory_space<vmem>>, vector<1x1x32xf32>
    %205 = vector.shape_cast %204 : vector<1x1x32xf32> to vector<1x32xf32>
    %206 = vector.broadcast %205 : vector<1x32xf32> to vector<2x32xf32>
    %207 = arith.addf %203, %206 : vector<2x32xf32>
    %cst_158 = arith.constant 0.000000e+00 : f32
    %208 = vector.broadcast %cst_158 : f32 to vector<2x32xf32>
    %209 = arith.maximumf %207, %208 : vector<2x32xf32>
    %c13 = arith.constant 13 : index
    %c0_159 = arith.constant 0 : index
    %c0_160 = arith.constant 0 : index
    %210 = vector.load %arg5[%c13, %c0_159, %c0_160] : memref<18x32x32xf32, #tpu.memory_space<vmem>>, vector<1x32x32xf32>
    %211 = vector.shape_cast %210 : vector<1x32x32xf32> to vector<32x32xf32>
    %cst_161 = arith.constant dense<0.000000e+00> : vector<2x32xf32>
    %212 = tpu.matmul %209, %211, %cst_161 {dimension_numbers = #tpu.dot_dimension_numbers<[1], [0], [0], [1], [0, 0, 1, 1], [], []>} : vector<2x32xf32>, vector<32x32xf32>, vector<2x32xf32> -> vector<2x32xf32>
    %c13_162 = arith.constant 13 : index
    %c0_163 = arith.constant 0 : index
    %c0_164 = arith.constant 0 : index
    %213 = vector.load %arg6[%c13_162, %c0_163, %c0_164] : memref<18x1x32xf32, #tpu.memory_space<vmem>>, vector<1x1x32xf32>
    %214 = vector.shape_cast %213 : vector<1x1x32xf32> to vector<1x32xf32>
    %215 = vector.broadcast %214 : vector<1x32xf32> to vector<2x32xf32>
    %216 = arith.addf %212, %215 : vector<2x32xf32>
    %cst_165 = arith.constant 0.000000e+00 : f32
    %217 = vector.broadcast %cst_165 : f32 to vector<2x32xf32>
    %218 = arith.maximumf %216, %217 : vector<2x32xf32>
    %219 = arith.addf %200, %218 : vector<2x32xf32>
    %c14 = arith.constant 14 : index
    %c0_166 = arith.constant 0 : index
    %c0_167 = arith.constant 0 : index
    %220 = vector.load %arg5[%c14, %c0_166, %c0_167] : memref<18x32x32xf32, #tpu.memory_space<vmem>>, vector<1x32x32xf32>
    %221 = vector.shape_cast %220 : vector<1x32x32xf32> to vector<32x32xf32>
    %cst_168 = arith.constant dense<0.000000e+00> : vector<2x32xf32>
    %222 = tpu.matmul %219, %221, %cst_168 {dimension_numbers = #tpu.dot_dimension_numbers<[1], [0], [0], [1], [0, 0, 1, 1], [], []>} : vector<2x32xf32>, vector<32x32xf32>, vector<2x32xf32> -> vector<2x32xf32>
    %c14_169 = arith.constant 14 : index
    %c0_170 = arith.constant 0 : index
    %c0_171 = arith.constant 0 : index
    %223 = vector.load %arg6[%c14_169, %c0_170, %c0_171] : memref<18x1x32xf32, #tpu.memory_space<vmem>>, vector<1x1x32xf32>
    %224 = vector.shape_cast %223 : vector<1x1x32xf32> to vector<1x32xf32>
    %225 = vector.broadcast %224 : vector<1x32xf32> to vector<2x32xf32>
    %226 = arith.addf %222, %225 : vector<2x32xf32>
    %cst_172 = arith.constant 0.000000e+00 : f32
    %227 = vector.broadcast %cst_172 : f32 to vector<2x32xf32>
    %228 = arith.maximumf %226, %227 : vector<2x32xf32>
    %c15 = arith.constant 15 : index
    %c0_173 = arith.constant 0 : index
    %c0_174 = arith.constant 0 : index
    %229 = vector.load %arg5[%c15, %c0_173, %c0_174] : memref<18x32x32xf32, #tpu.memory_space<vmem>>, vector<1x32x32xf32>
    %230 = vector.shape_cast %229 : vector<1x32x32xf32> to vector<32x32xf32>
    %cst_175 = arith.constant dense<0.000000e+00> : vector<2x32xf32>
    %231 = tpu.matmul %228, %230, %cst_175 {dimension_numbers = #tpu.dot_dimension_numbers<[1], [0], [0], [1], [0, 0, 1, 1], [], []>} : vector<2x32xf32>, vector<32x32xf32>, vector<2x32xf32> -> vector<2x32xf32>
    %c15_176 = arith.constant 15 : index
    %c0_177 = arith.constant 0 : index
    %c0_178 = arith.constant 0 : index
    %232 = vector.load %arg6[%c15_176, %c0_177, %c0_178] : memref<18x1x32xf32, #tpu.memory_space<vmem>>, vector<1x1x32xf32>
    %233 = vector.shape_cast %232 : vector<1x1x32xf32> to vector<1x32xf32>
    %234 = vector.broadcast %233 : vector<1x32xf32> to vector<2x32xf32>
    %235 = arith.addf %231, %234 : vector<2x32xf32>
    %cst_179 = arith.constant 0.000000e+00 : f32
    %236 = vector.broadcast %cst_179 : f32 to vector<2x32xf32>
    %237 = arith.maximumf %235, %236 : vector<2x32xf32>
    %238 = arith.addf %219, %237 : vector<2x32xf32>
    %c16 = arith.constant 16 : index
    %c0_180 = arith.constant 0 : index
    %c0_181 = arith.constant 0 : index
    %239 = vector.load %arg5[%c16, %c0_180, %c0_181] : memref<18x32x32xf32, #tpu.memory_space<vmem>>, vector<1x32x32xf32>
    %240 = vector.shape_cast %239 : vector<1x32x32xf32> to vector<32x32xf32>
    %cst_182 = arith.constant dense<0.000000e+00> : vector<2x32xf32>
    %241 = tpu.matmul %238, %240, %cst_182 {dimension_numbers = #tpu.dot_dimension_numbers<[1], [0], [0], [1], [0, 0, 1, 1], [], []>} : vector<2x32xf32>, vector<32x32xf32>, vector<2x32xf32> -> vector<2x32xf32>
    %c16_183 = arith.constant 16 : index
    %c0_184 = arith.constant 0 : index
    %c0_185 = arith.constant 0 : index
    %242 = vector.load %arg6[%c16_183, %c0_184, %c0_185] : memref<18x1x32xf32, #tpu.memory_space<vmem>>, vector<1x1x32xf32>
    %243 = vector.shape_cast %242 : vector<1x1x32xf32> to vector<1x32xf32>
    %244 = vector.broadcast %243 : vector<1x32xf32> to vector<2x32xf32>
    %245 = arith.addf %241, %244 : vector<2x32xf32>
    %cst_186 = arith.constant 0.000000e+00 : f32
    %246 = vector.broadcast %cst_186 : f32 to vector<2x32xf32>
    %247 = arith.maximumf %245, %246 : vector<2x32xf32>
    %c17 = arith.constant 17 : index
    %c0_187 = arith.constant 0 : index
    %c0_188 = arith.constant 0 : index
    %248 = vector.load %arg5[%c17, %c0_187, %c0_188] : memref<18x32x32xf32, #tpu.memory_space<vmem>>, vector<1x32x32xf32>
    %249 = vector.shape_cast %248 : vector<1x32x32xf32> to vector<32x32xf32>
    %cst_189 = arith.constant dense<0.000000e+00> : vector<2x32xf32>
    %250 = tpu.matmul %247, %249, %cst_189 {dimension_numbers = #tpu.dot_dimension_numbers<[1], [0], [0], [1], [0, 0, 1, 1], [], []>} : vector<2x32xf32>, vector<32x32xf32>, vector<2x32xf32> -> vector<2x32xf32>
    %c17_190 = arith.constant 17 : index
    %c0_191 = arith.constant 0 : index
    %c0_192 = arith.constant 0 : index
    %251 = vector.load %arg6[%c17_190, %c0_191, %c0_192] : memref<18x1x32xf32, #tpu.memory_space<vmem>>, vector<1x1x32xf32>
    %252 = vector.shape_cast %251 : vector<1x1x32xf32> to vector<1x32xf32>
    %253 = vector.broadcast %252 : vector<1x32xf32> to vector<2x32xf32>
    %254 = arith.addf %250, %253 : vector<2x32xf32>
    %cst_193 = arith.constant 0.000000e+00 : f32
    %255 = vector.broadcast %cst_193 : f32 to vector<2x32xf32>
    %256 = arith.maximumf %254, %255 : vector<2x32xf32>
    %257 = arith.addf %238, %256 : vector<2x32xf32>
    %c2_194 = arith.constant 2 : index
    %c0_195 = arith.constant 0 : index
    %c0_196 = arith.constant 0 : index
    %258 = vector.load %arg7[%c2_194, %c0_195, %c0_196] : memref<3x32x8xf32, #tpu.memory_space<vmem>>, vector<1x32x8xf32>
    %259 = vector.shape_cast %258 : vector<1x32x8xf32> to vector<32x8xf32>
    %cst_197 = arith.constant dense<0.000000e+00> : vector<2x8xf32>
    %260 = tpu.matmul %257, %259, %cst_197 {dimension_numbers = #tpu.dot_dimension_numbers<[1], [0], [0], [1], [0, 0, 1, 1], [], []>} : vector<2x32xf32>, vector<32x8xf32>, vector<2x8xf32> -> vector<2x8xf32>
    %c2_198 = arith.constant 2 : index
    %c0_199 = arith.constant 0 : index
    %c0_200 = arith.constant 0 : index
    %261 = vector.load %arg8[%c2_198, %c0_199, %c0_200] : memref<3x1x8xf32, #tpu.memory_space<vmem>>, vector<1x1x8xf32>
    %262 = vector.shape_cast %261 : vector<1x1x8xf32> to vector<1x8xf32>
    %263 = vector.broadcast %262 : vector<1x8xf32> to vector<2x8xf32>
    %264 = arith.addf %260, %263 : vector<2x8xf32>
    %cst_201 = arith.constant 0.000000e+00 : f32
    %265 = vector.broadcast %cst_201 : f32 to vector<2x8xf32>
    %266 = arith.maximumf %264, %265 : vector<2x8xf32>
    %c2_202 = arith.constant 2 : index
    %c0_203 = arith.constant 0 : index
    %c0_204 = arith.constant 0 : index
    %267 = vector.load %arg9[%c2_202, %c0_203, %c0_204] : memref<3x8x1xf32, #tpu.memory_space<vmem>>, vector<1x8x1xf32>
    %268 = vector.shape_cast %267 : vector<1x8x1xf32> to vector<8x1xf32>
    %cst_205 = arith.constant dense<0.000000e+00> : vector<2x1xf32>
    %269 = tpu.matmul %266, %268, %cst_205 {dimension_numbers = #tpu.dot_dimension_numbers<[1], [0], [0], [1], [0, 0, 1, 1], [], []>} : vector<2x8xf32>, vector<8x1xf32>, vector<2x1xf32> -> vector<2x1xf32>
    %c2_206 = arith.constant 2 : index
    %c0_207 = arith.constant 0 : index
    %c0_208 = arith.constant 0 : index
    %270 = vector.load %arg10[%c2_206, %c0_207, %c0_208] : memref<3x1x1xf32, #tpu.memory_space<vmem>>, vector<1x1x1xf32>
    %271 = vector.shape_cast %270 : vector<1x1x1xf32> to vector<1x1xf32>
    %272 = vector.broadcast %271 : vector<1x1xf32> to vector<2x1xf32>
    %273 = arith.addf %269, %272 : vector<2x1xf32>
    %274 = math.tanh %105 : vector<2x1xf32>
    %c0_209 = arith.constant 0 : index
    %c0_210 = arith.constant 0 : index
    %275 = vector.load %arg12[%c0_209, %c0_210] : memref<2x1xf32, #tpu.memory_space<vmem>>, vector<2x1xf32>
    tpu.vector_store %arg12[%c0_209, %c0_210], %274 {strides = array<i32>} : memref<2x1xf32, #tpu.memory_space<vmem>>, vector<2x1xf32>,
    %276 = arith.negf %189 : vector<2x1xf32>
    %277 = math.exp %276 : vector<2x1xf32>
    %cst_211 = arith.constant 1.000000e+00 : f32
    %278 = vector.broadcast %cst_211 : f32 to vector<2x1xf32>
    %279 = arith.addf %278, %277 : vector<2x1xf32>
    %280 = arith.divf %278, %279 : vector<2x1xf32>
    %c0_212 = arith.constant 0 : index
    %c0_213 = arith.constant 0 : index
    %281 = vector.load %arg13[%c0_212, %c0_213] : memref<2x1xf32, #tpu.memory_space<vmem>>, vector<2x1xf32>
    tpu.vector_store %arg13[%c0_212, %c0_213], %280 {strides = array<i32>} : memref<2x1xf32, #tpu.memory_space<vmem>>, vector<2x1xf32>,
    %c0_214 = arith.constant 0 : index
    %c0_215 = arith.constant 0 : index
    %282 = vector.load %arg14[%c0_214, %c0_215] : memref<2x1xf32, #tpu.memory_space<vmem>>, vector<2x1xf32>
    tpu.vector_store %arg14[%c0_214, %c0_215], %273 {strides = array<i32>} : memref<2x1xf32, #tpu.memory_space<vmem>>, vector<2x1xf32>,
    return
  }
}

</mosaic_0001>

<llo_original>
// kernel: chess_heads_forward.1
$region0: #{chess_heads_forward.1}
  #allocation0 [shape = 'u32[]', space=smem, size = 0x4, offset = 0x4, fixed_abs, tag = 'smem constant byte address 0x4 - core index']
  #allocation1 [shape = 'u32[144,128]{1,0:T(1,128)}', space=vmem, size = 0x12000, scoped, tag = 'internal scratch']
  %s0 = inlined_call_operand.vmem [shape: f32[2,80,64], index: 0, kind: input, shape index: {}]
  %s1 = inlined_call_operand.vmem [shape: f32[5,64], index: 1, kind: input, shape index: {}]
  %s2 = inlined_call_operand.vmem [shape: f32[1,5,1], index: 2, kind: input, shape index: {}]
  %s3 = inlined_call_operand.vmem [shape: f32[3,64,32], index: 3, kind: input, shape index: {}]
  %s4 = inlined_call_operand.vmem [shape: f32[3,1,32], index: 4, kind: input, shape index: {}]
  %s5 = inlined_call_operand.vmem [shape: f32[18,32,32], index: 5, kind: input, shape index: {}]
  %s6 = inlined_call_operand.vmem [shape: f32[18,1,32], index: 6, kind: input, shape index: {}]
  %s7 = inlined_call_operand.vmem [shape: f32[3,32,8], index: 7, kind: input, shape index: {}]
  %s8 = inlined_call_operand.vmem [shape: f32[3,1,8], index: 8, kind: input, shape index: {}]
  %s9 = inlined_call_operand.vmem [shape: f32[3,8,1], index: 9, kind: input, shape index: {}]
  %s10 = inlined_call_operand.vmem [shape: f32[3,1,1], index: 10, kind: input, shape index: {}]
  %s11 = inlined_call_operand.vmem [shape: f32[2,2,64], index: 11, kind: output, shape index: {0}]
  %s12 = inlined_call_operand.vmem [shape: f32[2,1], index: 12, kind: output, shape index: {1}]
  %s13 = inlined_call_operand.vmem [shape: f32[2,1], index: 13, kind: output, shape index: {2}]
  %s14 = inlined_call_operand.vmem [shape: f32[2,1], index: 14, kind: output, shape index: {3}]
  %15 = xla_tuple %s11, %s12, %s13, %s14
  %s16 = sld [smem:[#allocation0]]
  $region78: #{chess_heads_forward.1} parent=0
    _
  %s18 = ssub.s32 1, %s16
  %s19 = scalar_select 0, %s18, %s16
  // Predicated region
  $region2: #{chess_heads_forward.1} parent=0 // pred_check
    _
  $region3: #{chess_heads_forward.1} parent=0 // pred_check_branch
    %21 = sbr.rel (0) target = $region5
  $region4: #{chess_heads_forward.1} parent=0 // pred_region
    _
  $region5: #{chess_heads_forward.1} parent=0 // pred_fallthru
    _
  // Predicated region
  $region6: #{chess_heads_forward.1} parent=0 // pred_check
    _
  $region7: #{chess_heads_forward.1} parent=0 // pred_check_branch
    %23 = sbr.rel (0) target = $region9
  $region8: #{chess_heads_forward.1} parent=0 // pred_region
    _
  $region9: #{chess_heads_forward.1} parent=0 // pred_fallthru
    _
  // Predicated region
  $region10: #{chess_heads_forward.1} parent=0 // pred_check
    _
  $region11: #{chess_heads_forward.1} parent=0 // pred_check_branch
    %25 = sbr.rel (0) target = $region13
  $region12: #{chess_heads_forward.1} parent=0 // pred_region
    _
  $region13: #{chess_heads_forward.1} parent=0 // pred_fallthru
    _
  // Predicated region
  $region14: #{chess_heads_forward.1} parent=0 // pred_check
    _
  $region15: #{chess_heads_forward.1} parent=0 // pred_check_branch
    %27 = sbr.rel (0) target = $region17
  $region16: #{chess_heads_forward.1} parent=0 // pred_region
    _
  $region17: #{chess_heads_forward.1} parent=0 // pred_fallthru
    _
  // Predicated region
  $region18: #{chess_heads_forward.1} parent=0 // pred_check
    _
  $region19: #{chess_heads_forward.1} parent=0 // pred_check_branch
    %29 = sbr.rel (0) target = $region21
  $region20: #{chess_heads_forward.1} parent=0 // pred_region
    _
  $region21: #{chess_heads_forward.1} parent=0 // pred_fallthru
    _
  // Predicated region
  $region22: #{chess_heads_forward.1} parent=0 // pred_check
    _
  $region23: #{chess_heads_forward.1} parent=0 // pred_check_branch
    %31 = sbr.rel (0) target = $region25
  $region24: #{chess_heads_forward.1} parent=0 // pred_region
    _
  $region25: #{chess_heads_forward.1} parent=0 // pred_fallthru
    _
  // Predicated region
  $region26: #{chess_heads_forward.1} parent=0 // pred_check
    _
  $region27: #{chess_heads_forward.1} parent=0 // pred_check_branch
    %33 = sbr.rel (0) target = $region29
  $region28: #{chess_heads_forward.1} parent=0 // pred_region
    _
  $region29: #{chess_heads_forward.1} parent=0 // pred_fallthru
    _
  // Predicated region
  $region30: #{chess_heads_forward.1} parent=0 // pred_check
    _
  $region31: #{chess_heads_forward.1} parent=0 // pred_check_branch
    %35 = sbr.rel (0) target = $region33
  $region32: #{chess_heads_forward.1} parent=0 // pred_region
    _
  $region33: #{chess_heads_forward.1} parent=0 // pred_fallthru
    _
  // Predicated region
  $region34: #{chess_heads_forward.1} parent=0 // pred_check
    _
  $region35: #{chess_heads_forward.1} parent=0 // pred_check_branch
    %37 = sbr.rel (0) target = $region37
  $region36: #{chess_heads_forward.1} parent=0 // pred_region
    _
  $region37: #{chess_heads_forward.1} parent=0 // pred_fallthru
    _
  // Predicated region
  $region38: #{chess_heads_forward.1} parent=0 // pred_check
    _
  $region39: #{chess_heads_forward.1} parent=0 // pred_check_branch
    %39 = sbr.rel (0) target = $region41
  $region40: #{chess_heads_forward.1} parent=0 // pred_region
    _
  $region41: #{chess_heads_forward.1} parent=0 // pred_fallthru
    _
  // Predicated region
  $region42: #{chess_heads_forward.1} parent=0 // pred_check
    _
  $region43: #{chess_heads_forward.1} parent=0 // pred_check_branch
    %41 = sbr.rel (0) target = $region45
  $region44: #{chess_heads_forward.1} parent=0 // pred_region
    _
  $region45: #{chess_heads_forward.1} parent=0 // pred_fallthru
    _
  %v42 = vld [vmem:[%s0] sm:$0xff]
  %v43 = vld [vmem:[%s0 + $0x8] sm:$0xff]
  %v44 = vld [vmem:[%s0 + $0x10] sm:$0xff]
  %v45 = vld [vmem:[%s0 + $0x18] sm:$0xff]
  %v46 = vld [vmem:[%s0 + $0x20] sm:$0xff]
  %v47 = vld [vmem:[%s0 + $0x28] sm:$0xff]
  %v48 = vld [vmem:[%s0 + $0x30] sm:$0xff]
  %v49 = vld [vmem:[%s0 + $0x38] sm:$0xff]
  %v50 = vld [vmem:[%s0 + $0x40] sm:$0xff]
  %v51 = vld [vmem:[%s0 + $0x48] sm:$0xff]
  %v52 = vld [vmem:[%s0 + $0x50] sm:$0xff]
  %v53 = vld [vmem:[%s0 + $0x58] sm:$0xff]
  %v54 = vld [vmem:[%s0 + $0x60] sm:$0xff]
  %v55 = vld [vmem:[%s0 + $0x68] sm:$0xff]
  %v56 = vld [vmem:[%s0 + $0x70] sm:$0xff]
  %v57 = vld [vmem:[%s0 + $0x78] sm:$0xff]
  %v58 = vld [vmem:[%s0 + $0x80] sm:$0xff]
  %v59 = vld [vmem:[%s0 + $0x88] sm:$0xff]
  %v60 = vld [vmem:[%s0 + $0x90] sm:$0xff]
  %v61 = vld [vmem:[%s0 + $0x98] sm:$0xff]
  %v62 = vld [vmem:[%s1] sm:$0x1f]
  %v63 = vld [vmem:[%s2] sm:$0x1f]
  %65 = vset.pattern.permute.xlu0 0
  %66 = vperm.xlu0 %65, %v63
  %v67 = vpop.permute.xlu0 %66
  %vm69 = vcmask 523264
  %v71 = vsel %vm69, %v62, 0
  %v74 = vsel %vm69, %v42, 0
  %v77 = vsel %vm69, %v43, 0
  %v80 = vsel %vm69, %v44, 0
  %v83 = vsel %vm69, %v45, 0
  %v86 = vsel %vm69, %v46, 0
  %v89 = vsel %vm69, %v47, 0
  %v92 = vsel %vm69, %v48, 0
  %v95 = vsel %vm69, %v49, 0
  %v98 = vsel %vm69, %v50, 0
  %v101 = vsel %vm69, %v51, 0
  %103 = vmatprep.subr.mxu0 0.0
  %104 = vmatpush1.xpose.msra.mxu0 %v74
  %105 = vmatprep.subr.mxu0 0.0
  %106 = vmatpush1.xpose.msra.mxu0 %v77
  %107 = vmatprep.subr.mxu0 0.0
  %108 = vmatpush1.xpose.msra.mxu0 %v80
  %109 = vmatprep.subr.mxu0 0.0
  %110 = vmatpush1.xpose.msra.mxu0 %v83
  %111 = vmatprep.subr.mxu0 0.0
  %112 = vmatpush1.xpose.msra.mxu0 %v86
  %113 = vmatprep.subr.mxu0 0.0
  %114 = vmatpush1.xpose.msra.mxu0 %v89
  %115 = vmatprep.subr.mxu0 0.0
  %116 = vmatpush1.xpose.msra.mxu0 %v92
  %117 = vmatprep.subr.mxu0 0.0
  %118 = vmatpush1.xpose.msra.mxu0 %v95
  %119 = vmatprep.subr.mxu0 0.0
  %120 = vmatpush1.xpose.msra.mxu0 %v98
  %121 = vmatprep.subr.mxu0 0.0
  %122 = vmatpush1.xpose.msra.mxu0 %v101
  %123 = vmatprep.subr.mxu0 0.0
  %124 = vmatpush1.xpose.msra.mxu0 0.0
  %125 = vmatprep.subr.mxu0 0.0
  %126 = vmatpush1.xpose.msra.mxu0 0.0
  %127 = vmatprep.subr.mxu0 0.0
  %128 = vmatpush1.xpose.msra.mxu0 0.0
  %129 = vmatprep.subr.mxu0 0.0
  %130 = vmatpush1.xpose.msra.mxu0 0.0
  %131 = vmatprep.subr.mxu0 0.0
  %132 = vmatpush1.xpose.msra.mxu0 0.0
  %133 = vmatprep.subr.mxu0 0.0
  %134 = vmatpush1.xpose.msra.mxu0 0.0
  %135 = vmatprep.subr.mxu0 0.0
  %136 = vmatpush1.xpose.msra.mxu0 0.0
  %137 = vmatprep.subr.mxu0 0.0
  %138 = vmatpush1.xpose.msra.mxu0 0.0
  %139 = vmatprep.subr.mxu0 0.0
  %140 = vmatpush1.xpose.msra.mxu0 0.0
  %141 = vmatprep.subr.mxu0 0.0
  %142 = vmatpush1.xpose.msra.mxu0 0.0
  %143 = vmatprep.subr.mxu0 0.0
  %144 = vmatpush1.xpose.msra.mxu0 0.0
  %145 = vmatprep.subr.mxu0 0.0
  %146 = vmatpush1.xpose.msra.mxu0 0.0
  %147 = vmatprep.subr.mxu0 0.0
  %148 = vmatpush1.xpose.msra.mxu0 0.0
  %149 = vmatprep.subr.mxu0 0.0
  %150 = vmatpush1.xpose.msra.mxu0 0.0
  %151 = vmatprep.subr.mxu0 0.0
  %152 = vmatpush1.xpose.msra.mxu0 0.0
  %153 = vmatprep.subr.mxu0 0.0
  %154 = vmatpush1.xpose.msra.mxu0 0.0
  %155 = vmatprep.subr.mxu0 0.0
  %156 = vmatpush1.xpose.msra.mxu0 0.0
  %157 = vmatprep.subr.mxu0 0.0
  %158 = vmatpush1.xpose.msra.mxu0 0.0
  %159 = vmatprep.subr.mxu0 0.0
  %160 = vmatpush1.xpose.msra.mxu0 0.0
  %161 = vmatprep.subr.mxu0 0.0
  %162 = vmatpush1.xpose.msra.mxu0 0.0
  %163 = vmatprep.subr.mxu0 0.0
  %164 = vmatpush1.xpose.msra.mxu0 0.0
  %165 = vmatprep.subr.mxu0 0.0
  %166 = vmatpush1.xpose.msra.mxu0 0.0
  %167 = vmatprep.mubr.f32.mxu0 0.0
  %168 = vmatmul.mubr.f32.gmra.mrb[0].mxu0 %v71
  %v169 = vpop.f32.mrb[0].mxu0
  %v170 = vadd.f32 %v67, %v169
  %v171 = vpop.f32.mrb[0].mxu0
  %172 = vdwg.mxu0
  %v174 = vsel %vm69, %v52, 0
  %v177 = vsel %vm69, %v53, 0
  %v180 = vsel %vm69, %v54, 0
  %v183 = vsel %vm69, %v55, 0
  %v186 = vsel %vm69, %v56, 0
  %v189 = vsel %vm69, %v57, 0
  %v192 = vsel %vm69, %v58, 0
  %v195 = vsel %vm69, %v59, 0
  %v198 = vsel %vm69, %v60, 0
  %v201 = vsel %vm69, %v61, 0
  %203 = vmatprep.subr.mxu0 0.0
  %204 = vmatpush1.xpose.msra.mxu0 %v174
  %205 = vmatprep.subr.mxu0 0.0
  %206 = vmatpush1.xpose.msra.mxu0 %v177
  %207 = vmatprep.subr.mxu0 0.0
  %208 = vmatpush1.xpose.msra.mxu0 %v180
  %209 = vmatprep.subr.mxu0 0.0
  %210 = vmatpush1.xpose.msra.mxu0 %v183
  %211 = vmatprep.subr.mxu0 0.0
  %212 = vmatpush1.xpose.msra.mxu0 %v186
  %213 = vmatprep.subr.mxu0 0.0
  %214 = vmatpush1.xpose.msra.mxu0 %v189
  %215 = vmatprep.subr.mxu0 0.0
  %216 = vmatpush1.xpose.msra.mxu0 %v192
  %217 = vmatprep.subr.mxu0 0.0
  %218 = vmatpush1.xpose.msra.mxu0 %v195
  %219 = vmatprep.subr.mxu0 0.0
  %220 = vmatpush1.xpose.msra.mxu0 %v198
  %221 = vmatprep.subr.mxu0 0.0
  %222 = vmatpush1.xpose.msra.mxu0 %v201
  %223 = vmatprep.subr.mxu0 0.0
  %224 = vmatpush1.xpose.msra.mxu0 0.0
  %225 = vmatprep.subr.mxu0 0.0
  %226 = vmatpush1.xpose.msra.mxu0 0.0
  %227 = vmatprep.subr.mxu0 0.0
  %228 = vmatpush1.xpose.msra.mxu0 0.0
  %229 = vmatprep.subr.mxu0 0.0
  %230 = vmatpush1.xpose.msra.mxu0 0.0
  %231 = vmatprep.subr.mxu0 0.0
  %232 = vmatpush1.xpose.msra.mxu0 0.0
  %233 = vmatprep.subr.mxu0 0.0
  %234 = vmatpush1.xpose.msra.mxu0 0.0
  %235 = vmatprep.subr.mxu0 0.0
  %236 = vmatpush1.xpose.msra.mxu0 0.0
  %237 = vmatprep.subr.mxu0 0.0
  %238 = vmatpush1.xpose.msra.mxu0 0.0
  %239 = vmatprep.subr.mxu0 0.0
  %240 = vmatpush1.xpose.msra.mxu0 0.0
  %241 = vmatprep.subr.mxu0 0.0
  %242 = vmatpush1.xpose.msra.mxu0 0.0
  %243 = vmatprep.subr.mxu0 0.0
  %244 = vmatpush1.xpose.msra.mxu0 0.0
  %245 = vmatprep.subr.mxu0 0.0
  %246 = vmatpush1.xpose.msra.mxu0 0.0
  %247 = vmatprep.subr.mxu0 0.0
  %248 = vmatpush1.xpose.msra.mxu0 0.0
  %249 = vmatprep.subr.mxu0 0.0
  %250 = vmatpush1.xpose.msra.mxu0 0.0
  %251 = vmatprep.subr.mxu0 0.0
  %252 = vmatpush1.xpose.msra.mxu0 0.0
  %253 = vmatprep.subr.mxu0 0.0
  %254 = vmatpush1.xpose.msra.mxu0 0.0
  %255 = vmatprep.subr.mxu0 0.0
  %256 = vmatpush1.xpose.msra.mxu0 0.0
  %257 = vmatprep.subr.mxu0 0.0
  %258 = vmatpush1.xpose.msra.mxu0 0.0
  %259 = vmatprep.subr.mxu0 0.0
  %260 = vmatpush1.xpose.msra.mxu0 0.0
  %261 = vmatprep.subr.mxu0 0.0
  %262 = vmatpush1.xpose.msra.mxu0 0.0
  %263 = vmatprep.subr.mxu0 0.0
  %264 = vmatpush1.xpose.msra.mxu0 0.0
  %265 = vmatprep.subr.mxu0 0.0
  %266 = vmatpush1.xpose.msra.mxu0 0.0
  %267 = vmatprep.mubr.f32.mxu0 0.0
  %268 = vmatmul.mubr.f32.gmra.mrb[0].mxu0 %v71
  %v269 = vpop.f32.mrb[0].mxu0
  %v270 = vadd.f32 %v67, %v269
  %v271 = vpop.f32.mrb[0].mxu0
  %272 = vdwg.mxu0
  %275 = vrot.lane.b32.xlu0 %v170, 112
  %v276 = vpop.permute.xlu0 %275
  %277 = vrot.lane.b32.xlu0 %v270, 112
  %v278 = vpop.permute.xlu0 %277
  %vm281 = vcmask 520195
  %282 = vst.msk [vmem:[%s11 - $0x3] sm:$0x18] %vm281, %v276
  %283 = vst.msk [vmem:[%s11 - $0x1] sm:$0x18] %vm281, %v278
  %vm284 = vcmask 649216
  %v285 = vsel %vm284, %v170, -inf
  %286 = vmax.xlane.f32.xlu0 %v285
  %v287 = vpop.xlane.xlu0 %286
  %v288 = vsel %vm284, %v270, -inf
  %289 = vmax.xlane.f32.xlu0 %v288
  %v290 = vpop.xlane.xlu0 %289
  %v291 = vsub.f32 %v170, %v287
  %v292 = vsub.f32 %v270, %v290
  %v293 = vmul.f32 %v291, 1.442695
  %v294 = vpow.pop %v293
  %v295 = vmul.f32 %v292, 1.442695
  %v296 = vpow.pop %v295
  %v297 = vsel %vm284, %v294, 0.0
  %298 = vadd.xlane.f32.xlu0 %v297
  %v299 = vpop.xlane.xlu0 %298
  %v300 = vsel %vm284, %v296, 0.0
  %301 = vadd.xlane.f32.xlu0 %v300
  %v302 = vpop.xlane.xlu0 %301
  %v303 = vrcp.pop %v299
  %v304 = vmul.f32 %v294, %v303
  %v305 = vrcp.pop %v302
  %v306 = vmul.f32 %v296, %v305
  %vm307 = vcmask 654336
  %v309 = vsel %vm307, %v304, 0
  %311 = vmatprep.subr.mxu0 0.0
  %312 = vmatpush1.msra.mxu0 %v42
  %313 = vmatprep.subr.mxu0 0.0
  %314 = vmatpush1.msra.mxu0 %v43
  %315 = vmatprep.subr.mxu0 0.0
  %316 = vmatpush1.msra.mxu0 %v44
  %317 = vmatprep.subr.mxu0 0.0
  %318 = vmatpush1.msra.mxu0 %v45
  %319 = vmatprep.subr.mxu0 0.0
  %320 = vmatpush1.msra.mxu0 %v46
  %321 = vmatprep.subr.mxu0 0.0
  %322 = vmatpush1.msra.mxu0 %v47
  %323 = vmatprep.subr.mxu0 0.0
  %324 = vmatpush1.msra.mxu0 %v48
  %325 = vmatprep.subr.mxu0 0.0
  %326 = vmatpush1.msra.mxu0 %v49
  %327 = vmatprep.subr.mxu0 0.0
  %328 = vmatpush1.msra.mxu0 %v50
  %329 = vmatprep.subr.mxu0 0.0
  %330 = vmatpush1.msra.mxu0 %v51
  %331 = vmatprep.subr.mxu0 0.0
  %332 = vmatpush1.msra.mxu0 0.0
  %333 = vmatprep.subr.mxu0 0.0
  %334 = vmatpush1.msra.mxu0 0.0
  %335 = vmatprep.subr.mxu0 0.0
  %336 = vmatpush1.msra.mxu0 0.0
  %337 = vmatprep.subr.mxu0 0.0
  %338 = vmatpush1.msra.mxu0 0.0
  %339 = vmatprep.subr.mxu0 0.0
  %340 = vmatpush1.msra.mxu0 0.0
  %341 = vmatprep.subr.mxu0 0.0
  %342 = vmatpush1.msra.mxu0 0.0
  %343 = vmatprep.subr.mxu0 0.0
  %344 = vmatpush1.msra.mxu0 0.0
  %345 = vmatprep.subr.mxu0 0.0
  %346 = vmatpush1.msra.mxu0 0.0
  %347 = vmatprep.subr.mxu0 0.0
  %348 = vmatpush1.msra.mxu0 0.0
  %349 = vmatprep.subr.mxu0 0.0
  %350 = vmatpush1.msra.mxu0 0.0
  %351 = vmatprep.subr.mxu0 0.0
  %352 = vmatpush1.msra.mxu0 0.0
  %353 = vmatprep.subr.mxu0 0.0
  %354 = vmatpush1.msra.mxu0 0.0
  %355 = vmatprep.subr.mxu0 0.0
  %356 = vmatpush1.msra.mxu0 0.0
  %357 = vmatprep.subr.mxu0 0.0
  %358 = vmatpush1.msra.mxu0 0.0
  %359 = vmatprep.subr.mxu0 0.0
  %360 = vmatpush1.msra.mxu0 0.0
  %361 = vmatprep.subr.mxu0 0.0
  %362 = vmatpush1.msra.mxu0 0.0
  %363 = vmatprep.subr.mxu0 0.0
  %364 = vmatpush1.msra.mxu0 0.0
  %365 = vmatprep.subr.mxu0 0.0
  %366 = vmatpush1.msra.mxu0 0.0
  %367 = vmatprep.subr.mxu0 0.0
  %368 = vmatpush1.msra.mxu0 0.0
  %369 = vmatprep.subr.mxu0 0.0
  %370 = vmatpush1.msra.mxu0 0.0
  %371 = vmatprep.subr.mxu0 0.0
  %372 = vmatpush1.msra.mxu0 0.0
  %373 = vmatprep.subr.mxu0 0.0
  %374 = vmatpush1.msra.mxu0 0.0
  %375 = vmatprep.mubr.f32.mxu0 0.0
  %376 = vmatmul.mubr.f32.gmra.mrb[0].mxu0 %v309
  %v377 = vpop.f32.mrb[0].mxu0
  %v378 = vadd.f32 0.0, %v377
  %v379 = vpop.f32.mrb[0].mxu0
  %380 = vdwg.mxu0
  %v382 = vsel %vm307, %v306, 0
  %384 = vmatprep.subr.mxu0 0.0
  %385 = vmatpush1.msra.mxu0 %v52
  %386 = vmatprep.subr.mxu0 0.0
  %387 = vmatpush1.msra.mxu0 %v53
  %388 = vmatprep.subr.mxu0 0.0
  %389 = vmatpush1.msra.mxu0 %v54
  %390 = vmatprep.subr.mxu0 0.0
  %391 = vmatpush1.msra.mxu0 %v55
  %392 = vmatprep.subr.mxu0 0.0
  %393 = vmatpush1.msra.mxu0 %v56
  %394 = vmatprep.subr.mxu0 0.0
  %395 = vmatpush1.msra.mxu0 %v57
  %396 = vmatprep.subr.mxu0 0.0
  %397 = vmatpush1.msra.mxu0 %v58
  %398 = vmatprep.subr.mxu0 0.0
  %399 = vmatpush1.msra.mxu0 %v59
  %400 = vmatprep.subr.mxu0 0.0
  %401 = vmatpush1.msra.mxu0 %v60
  %402 = vmatprep.subr.mxu0 0.0
  %403 = vmatpush1.msra.mxu0 %v61
  %404 = vmatprep.subr.mxu0 0.0
  %405 = vmatpush1.msra.mxu0 0.0
  %406 = vmatprep.subr.mxu0 0.0
  %407 = vmatpush1.msra.mxu0 0.0
  %408 = vmatprep.subr.mxu0 0.0
  %409 = vmatpush1.msra.mxu0 0.0
  %410 = vmatprep.subr.mxu0 0.0
  %411 = vmatpush1.msra.mxu0 0.0
  %412 = vmatprep.subr.mxu0 0.0
  %413 = vmatpush1.msra.mxu0 0.0
  %414 = vmatprep.subr.mxu0 0.0
  %415 = vmatpush1.msra.mxu0 0.0
  %416 = vmatprep.subr.mxu0 0.0
  %417 = vmatpush1.msra.mxu0 0.0
  %418 = vmatprep.subr.mxu0 0.0
  %419 = vmatpush1.msra.mxu0 0.0
  %420 = vmatprep.subr.mxu0 0.0
  %421 = vmatpush1.msra.mxu0 0.0
  %422 = vmatprep.subr.mxu0 0.0
  %423 = vmatpush1.msra.mxu0 0.0
  %424 = vmatprep.subr.mxu0 0.0
  %425 = vmatpush1.msra.mxu0 0.0
  %426 = vmatprep.subr.mxu0 0.0
  %427 = vmatpush1.msra.mxu0 0.0
  %428 = vmatprep.subr.mxu0 0.0
  %429 = vmatpush1.msra.mxu0 0.0
  %430 = vmatprep.subr.mxu0 0.0
  %431 = vmatpush1.msra.mxu0 0.0
  %432 = vmatprep.subr.mxu0 0.0
  %433 = vmatpush1.msra.mxu0 0.0
  %434 = vmatprep.subr.mxu0 0.0
  %435 = vmatpush1.msra.mxu0 0.0
  %436 = vmatprep.subr.mxu0 0.0
  %437 = vmatpush1.msra.mxu0 0.0
  %438 = vmatprep.subr.mxu0 0.0
  %439 = vmatpush1.msra.mxu0 0.0
  %440 = vmatprep.subr.mxu0 0.0
  %441 = vmatpush1.msra.mxu0 0.0
  %442 = vmatprep.subr.mxu0 0.0
  %443 = vmatpush1.msra.mxu0 0.0
  %444 = vmatprep.subr.mxu0 0.0
  %445 = vmatpush1.msra.mxu0 0.0
  %446 = vmatprep.subr.mxu0 0.0
  %447 = vmatpush1.msra.mxu0 0.0
  %448 = vmatprep.mubr.f32.mxu0 0.0
  %449 = vmatmul.mubr.f32.gmra.mrb[0].mxu0 %v382
  %v450 = vpop.f32.mrb[0].mxu0
  %v451 = vadd.f32 0.0, %v450
  %v452 = vpop.f32.mrb[0].mxu0
  %453 = vdwg.mxu0
  %v454 = vld [vmem:[%s3] sm:$0xff]
  %v455 = vld [vmem:[%s3 + $0x8] sm:$0xff]
  %v456 = vld [vmem:[%s3 + $0x10] sm:$0xff]
  %v457 = vld [vmem:[%s3 + $0x18] sm:$0xff]
  %v458 = vld [vmem:[%s3 + $0x20] sm:$0xff]
  %v459 = vld [vmem:[%s3 + $0x28] sm:$0xff]
  %v460 = vld [vmem:[%s3 + $0x30] sm:$0xff]
  %v461 = vld [vmem:[%s3 + $0x38] sm:$0xff]
  %v462 = vld [vmem:[%s4] sm:$0x1]
  %v464 = vlaneseq
  %v465 = vshrl.u32 %v464, 7
  %v466 = vsub.s32 0, %v465
  %v467 = vrot.slane %v462, %v466
  %v471 = vrot.slane %v451, 7
  %vm472 = vcmask 1041409
  %v473 = vsel %vm472, %v471, %v378
  %v474 = vsel %vm69, %v473, 0
  %476 = vmatprep.subr.mxu0 0.0
  %477 = vmatpush1.msra.mxu0 %v454
  %478 = vmatprep.subr.mxu0 0.0
  %479 = vmatpush1.msra.mxu0 %v455
  %480 = vmatprep.subr.mxu0 0.0
  %481 = vmatpush1.msra.mxu0 %v456
  %482 = vmatprep.subr.mxu0 0.0
  %483 = vmatpush1.msra.mxu0 %v457
  %484 = vmatprep.subr.mxu0 0.0
  %485 = vmatpush1.msra.mxu0 %v458
  %486 = vmatprep.subr.mxu0 0.0
  %487 = vmatpush1.msra.mxu0 %v459
  %488 = vmatprep.subr.mxu0 0.0
  %489 = vmatpush1.msra.mxu0 %v460
  %490 = vmatprep.subr.mxu0 0.0
  %491 = vmatpush1.msra.mxu0 %v461
  %492 = vmatprep.subr.mxu0 0.0
  %493 = vmatpush1.msra.mxu0 0.0
  %494 = vmatprep.subr.mxu0 0.0
  %495 = vmatpush1.msra.mxu0 0.0
  %496 = vmatprep.subr.mxu0 0.0
  %497 = vmatpush1.msra.mxu0 0.0
  %498 = vmatprep.subr.mxu0 0.0
  %499 = vmatpush1.msra.mxu0 0.0
  %500 = vmatprep.subr.mxu0 0.0
  %501 = vmatpush1.msra.mxu0 0.0
  %502 = vmatprep.subr.mxu0 0.0
  %503 = vmatpush1.msra.mxu0 0.0
  %504 = vmatprep.subr.mxu0 0.0
  %505 = vmatpush1.msra.mxu0 0.0
  %506 = vmatprep.subr.mxu0 0.0
  %507 = vmatpush1.msra.mxu0 0.0
  %508 = vmatprep.subr.mxu0 0.0
  %509 = vmatpush1.msra.mxu0 0.0
  %510 = vmatprep.subr.mxu0 0.0
  %511 = vmatpush1.msra.mxu0 0.0
  %512 = vmatprep.subr.mxu0 0.0
  %513 = vmatpush1.msra.mxu0 0.0
  %514 = vmatprep.subr.mxu0 0.0
  %515 = vmatpush1.msra.mxu0 0.0
  %516 = vmatprep.subr.mxu0 0.0
  %517 = vmatpush1.msra.mxu0 0.0
  %518 = vmatprep.subr.mxu0 0.0
  %519 = vmatpush1.msra.mxu0 0.0
  %520 = vmatprep.subr.mxu0 0.0
  %521 = vmatpush1.msra.mxu0 0.0
  %522 = vmatprep.subr.mxu0 0.0
  %523 = vmatpush1.msra.mxu0 0.0
  %524 = vmatprep.subr.mxu0 0.0
  %525 = vmatpush1.msra.mxu0 0.0
  %526 = vmatprep.subr.mxu0 0.0
  %527 = vmatpush1.msra.mxu0 0.0
  %528 = vmatprep.subr.mxu0 0.0
  %529 = vmatpush1.msra.mxu0 0.0
  %530 = vmatprep.subr.mxu0 0.0
  %531 = vmatpush1.msra.mxu0 0.0
  %532 = vmatprep.subr.mxu0 0.0
  %533 = vmatpush1.msra.mxu0 0.0
  %534 = vmatprep.subr.mxu0 0.0
  %535 = vmatpush1.msra.mxu0 0.0
  %536 = vmatprep.subr.mxu0 0.0
  %537 = vmatpush1.msra.mxu0 0.0
  %538 = vmatprep.subr.mxu0 0.0
  %539 = vmatpush1.msra.mxu0 0.0
  %540 = vmatprep.mubr.f32.mxu0 0.0
  %541 = vmatmul.mubr.f32.gmra.mrb[0].mxu0 %v474
  %v542 = vpop.f32.mrb[0].mxu0
  %v543 = vadd.f32 %v467, %v542
  %v544 = vpop.f32.mrb[0].mxu0
  %545 = vdwg.mxu0
  %v546 = vmax.f32 %v543, 0.0
  %v547 = vld [vmem:[%s5] sm:$0xff]
  %v548 = vld [vmem:[%s5 + $0x8] sm:$0xff]
  %v549 = vld [vmem:[%s5 + $0x10] sm:$0xff]
  %v550 = vld [vmem:[%s5 + $0x18] sm:$0xff]
  %v551 = vld [vmem:[%s6] sm:$0x1]
  %v553 = vlaneseq
  %v554 = vshrl.u32 %v553, 7
  %v555 = vsub.s32 0, %v554
  %v556 = vrot.slane %v551, %v555
  %vm558 = vcmask 261120
  %v560 = vsel %vm558, %v546, 0
  %562 = vmatprep.subr.mxu0 0.0
  %563 = vmatpush1.msra.mxu0 %v547
  %564 = vmatprep.subr.mxu0 0.0
  %565 = vmatpush1.msra.mxu0 %v548
  %566 = vmatprep.subr.mxu0 0.0
  %567 = vmatpush1.msra.mxu0 %v549
  %568 = vmatprep.subr.mxu0 0.0
  %569 = vmatpush1.msra.mxu0 %v550
  %570 = vmatprep.subr.mxu0 0.0
  %571 = vmatpush1.msra.mxu0 0.0
  %572 = vmatprep.subr.mxu0 0.0
  %573 = vmatpush1.msra.mxu0 0.0
  %574 = vmatprep.subr.mxu0 0.0
  %575 = vmatpush1.msra.mxu0 0.0
  %576 = vmatprep.subr.mxu0 0.0
  %577 = vmatpush1.msra.mxu0 0.0
  %578 = vmatprep.subr.mxu0 0.0
  %579 = vmatpush1.msra.mxu0 0.0
  %580 = vmatprep.subr.mxu0 0.0
  %581 = vmatpush1.msra.mxu0 0.0
  %582 = vmatprep.subr.mxu0 0.0
  %583 = vmatpush1.msra.mxu0 0.0
  %584 = vmatprep.subr.mxu0 0.0
  %585 = vmatpush1.msra.mxu0 0.0
  %586 = vmatprep.subr.mxu0 0.0
  %587 = vmatpush1.msra.mxu0 0.0
  %588 = vmatprep.subr.mxu0 0.0
  %589 = vmatpush1.msra.mxu0 0.0
  %590 = vmatprep.subr.mxu0 0.0
  %591 = vmatpush1.msra.mxu0 0.0
  %592 = vmatprep.subr.mxu0 0.0
  %593 = vmatpush1.msra.mxu0 0.0
  %594 = vmatprep.subr.mxu0 0.0
  %595 = vmatpush1.msra.mxu0 0.0
  %596 = vmatprep.subr.mxu0 0.0
  %597 = vmatpush1.msra.mxu0 0.0
  %598 = vmatprep.subr.mxu0 0.0
  %599 = vmatpush1.msra.mxu0 0.0
  %600 = vmatprep.subr.mxu0 0.0
  %601 = vmatpush1.msra.mxu0 0.0
  %602 = vmatprep.subr.mxu0 0.0
  %603 = vmatpush1.msra.mxu0 0.0
  %604 = vmatprep.subr.mxu0 0.0
  %605 = vmatpush1.msra.mxu0 0.0
  %606 = vmatprep.subr.mxu0 0.0
  %607 = vmatpush1.msra.mxu0 0.0
  %608 = vmatprep.subr.mxu0 0.0
  %609 = vmatpush1.msra.mxu0 0.0
  %610 = vmatprep.subr.mxu0 0.0
  %611 = vmatpush1.msra.mxu0 0.0
  %612 = vmatprep.subr.mxu0 0.0
  %613 = vmatpush1.msra.mxu0 0.0
  %614 = vmatprep.subr.mxu0 0.0
  %615 = vmatpush1.msra.mxu0 0.0
  %616 = vmatprep.subr.mxu0 0.0
  %617 = vmatpush1.msra.mxu0 0.0
  %618 = vmatprep.subr.mxu0 0.0
  %619 = vmatpush1.msra.mxu0 0.0
  %620 = vmatprep.subr.mxu0 0.0
  %621 = vmatpush1.msra.mxu0 0.0
  %622 = vmatprep.subr.mxu0 0.0
  %623 = vmatpush1.msra.mxu0 0.0
  %624 = vmatprep.subr.mxu0 0.0
  %625 = vmatpush1.msra.mxu0 0.0
  %626 = vmatprep.mubr.f32.mxu0 0.0
  %627 = vmatmul.mubr.f32.gmra.mrb[0].mxu0 %v560
  %v628 = vpop.f32.mrb[0].mxu0
  %v629 = vadd.f32 %v556, %v628
  %v630 = vpop.f32.mrb[0].mxu0
  %631 = vdwg.mxu0
  %v632 = vmax.f32 %v629, 0.0
  %s633 = scalar_lea.vmem %s5, 32
  %v634 = vld [vmem:[%s633] sm:$0xff]
  %v635 = vld [vmem:[%s633 + $0x8] sm:$0xff]
  %v636 = vld [vmem:[%s633 + $0x10] sm:$0xff]
  %v637 = vld [vmem:[%s633 + $0x18] sm:$0xff]
  %s638 = scalar_lea.vmem %s6, 1
  %v639 = vld [vmem:[%s638] sm:$0x1]
  %v641 = vlaneseq
  %v642 = vshrl.u32 %v641, 7
  %v643 = vsub.s32 0, %v642
  %v644 = vrot.slane %v639, %v643
  %v647 = vsel %vm558, %v632, 0
  %649 = vmatprep.subr.mxu0 0.0
  %650 = vmatpush1.msra.mxu0 %v634
  %651 = vmatprep.subr.mxu0 0.0
  %652 = vmatpush1.msra.mxu0 %v635
  %653 = vmatprep.subr.mxu0 0.0
  %654 = vmatpush1.msra.mxu0 %v636
  %655 = vmatprep.subr.mxu0 0.0
  %656 = vmatpush1.msra.mxu0 %v637
  %657 = vmatprep.subr.mxu0 0.0
  %658 = vmatpush1.msra.mxu0 0.0
  %659 = vmatprep.subr.mxu0 0.0
  %660 = vmatpush1.msra.mxu0 0.0
  %661 = vmatprep.subr.mxu0 0.0
  %662 = vmatpush1.msra.mxu0 0.0
  %663 = vmatprep.subr.mxu0 0.0
  %664 = vmatpush1.msra.mxu0 0.0
  %665 = vmatprep.subr.mxu0 0.0
  %666 = vmatpush1.msra.mxu0 0.0
  %667 = vmatprep.subr.mxu0 0.0
  %668 = vmatpush1.msra.mxu0 0.0
  %669 = vmatprep.subr.mxu0 0.0
  %670 = vmatpush1.msra.mxu0 0.0
  %671 = vmatprep.subr.mxu0 0.0
  %672 = vmatpush1.msra.mxu0 0.0
  %673 = vmatprep.subr.mxu0 0.0
  %674 = vmatpush1.msra.mxu0 0.0
  %675 = vmatprep.subr.mxu0 0.0
  %676 = vmatpush1.msra.mxu0 0.0
  %677 = vmatprep.subr.mxu0 0.0
  %678 = vmatpush1.msra.mxu0 0.0
  %679 = vmatprep.subr.mxu0 0.0
  %680 = vmatpush1.msra.mxu0 0.0
  %681 = vmatprep.subr.mxu0 0.0
  %682 = vmatpush1.msra.mxu0 0.0
  %683 = vmatprep.subr.mxu0 0.0
  %684 = vmatpush1.msra.mxu0 0.0
  %685 = vmatprep.subr.mxu0 0.0
  %686 = vmatpush1.msra.mxu0 0.0
  %687 = vmatprep.subr.mxu0 0.0
  %688 = vmatpush1.msra.mxu0 0.0
  %689 = vmatprep.subr.mxu0 0.0
  %690 = vmatpush1.msra.mxu0 0.0
  %691 = vmatprep.subr.mxu0 0.0
  %692 = vmatpush1.msra.mxu0 0.0
  %693 = vmatprep.subr.mxu0 0.0
  %694 = vmatpush1.msra.mxu0 0.0
  %695 = vmatprep.subr.mxu0 0.0
  %696 = vmatpush1.msra.mxu0 0.0
  %697 = vmatprep.subr.mxu0 0.0
  %698 = vmatpush1.msra.mxu0 0.0
  %699 = vmatprep.subr.mxu0 0.0
  %700 = vmatpush1.msra.mxu0 0.0
  %701 = vmatprep.subr.mxu0 0.0
  %702 = vmatpush1.msra.mxu0 0.0
  %703 = vmatprep.subr.mxu0 0.0
  %704 = vmatpush1.msra.mxu0 0.0
  %705 = vmatprep.subr.mxu0 0.0
  %706 = vmatpush1.msra.mxu0 0.0
  %707 = vmatprep.subr.mxu0 0.0
  %708 = vmatpush1.msra.mxu0 0.0
  %709 = vmatprep.subr.mxu0 0.0
  %710 = vmatpush1.msra.mxu0 0.0
  %711 = vmatprep.subr.mxu0 0.0
  %712 = vmatpush1.msra.mxu0 0.0
  %713 = vmatprep.mubr.f32.mxu0 0.0
  %714 = vmatmul.mubr.f32.gmra.mrb[0].mxu0 %v647
  %v715 = vpop.f32.mrb[0].mxu0
  %v716 = vadd.f32 %v644, %v715
  %v717 = vpop.f32.mrb[0].mxu0
  %718 = vdwg.mxu0
  %v719 = vmax.f32 %v716, 0.0
  %v720 = vadd.f32 %v546, %v719
  %s721 = scalar_lea.vmem %s5, 64
  %v722 = vld [vmem:[%s721] sm:$0xff]
  %v723 = vld [vmem:[%s721 + $0x8] sm:$0xff]
  %v724 = vld [vmem:[%s721 + $0x10] sm:$0xff]
  %v725 = vld [vmem:[%s721 + $0x18] sm:$0xff]
  %s726 = scalar_lea.vmem %s6, 2
  %v727 = vld [vmem:[%s726] sm:$0x1]
  %v729 = vlaneseq
  %v730 = vshrl.u32 %v729, 7
  %v731 = vsub.s32 0, %v730
  %v732 = vrot.slane %v727, %v731
  %v735 = vsel %vm558, %v720, 0
  %737 = vmatprep.subr.mxu0 0.0
  %738 = vmatpush1.msra.mxu0 %v722
  %739 = vmatprep.subr.mxu0 0.0
  %740 = vmatpush1.msra.mxu0 %v723
  %741 = vmatprep.subr.mxu0 0.0
  %742 = vmatpush1.msra.mxu0 %v724
  %743 = vmatprep.subr.mxu0 0.0
  %744 = vmatpush1.msra.mxu0 %v725
  %745 = vmatprep.subr.mxu0 0.0
  %746 = vmatpush1.msra.mxu0 0.0
  %747 = vmatprep.subr.mxu0 0.0
  %748 = vmatpush1.msra.mxu0 0.0
  %749 = vmatprep.subr.mxu0 0.0
  %750 = vmatpush1.msra.mxu0 0.0
  %751 = vmatprep.subr.mxu0 0.0
  %752 = vmatpush1.msra.mxu0 0.0
  %753 = vmatprep.subr.mxu0 0.0
  %754 = vmatpush1.msra.mxu0 0.0
  %755 = vmatprep.subr.mxu0 0.0
  %756 = vmatpush1.msra.mxu0 0.0
  %757 = vmatprep.subr.mxu0 0.0
  %758 = vmatpush1.msra.mxu0 0.0
  %759 = vmatprep.subr.mxu0 0.0
  %760 = vmatpush1.msra.mxu0 0.0
  %761 = vmatprep.subr.mxu0 0.0
  %762 = vmatpush1.msra.mxu0 0.0
  %763 = vmatprep.subr.mxu0 0.0
  %764 = vmatpush1.msra.mxu0 0.0
  %765 = vmatprep.subr.mxu0 0.0
  %766 = vmatpush1.msra.mxu0 0.0
  %767 = vmatprep.subr.mxu0 0.0
  %768 = vmatpush1.msra.mxu0 0.0
  %769 = vmatprep.subr.mxu0 0.0
  %770 = vmatpush1.msra.mxu0 0.0
  %771 = vmatprep.subr.mxu0 0.0
  %772 = vmatpush1.msra.mxu0 0.0
  %773 = vmatprep.subr.mxu0 0.0
  %774 = vmatpush1.msra.mxu0 0.0
  %775 = vmatprep.subr.mxu0 0.0
  %776 = vmatpush1.msra.mxu0 0.0
  %777 = vmatprep.subr.mxu0 0.0
  %778 = vmatpush1.msra.mxu0 0.0
  %779 = vmatprep.subr.mxu0 0.0
  %780 = vmatpush1.msra.mxu0 0.0
  %781 = vmatprep.subr.mxu0 0.0
  %782 = vmatpush1.msra.mxu0 0.0
  %783 = vmatprep.subr.mxu0 0.0
  %784 = vmatpush1.msra.mxu0 0.0
  %785 = vmatprep.subr.mxu0 0.0
  %786 = vmatpush1.msra.mxu0 0.0
  %787 = vmatprep.subr.mxu0 0.0
  %788 = vmatpush1.msra.mxu0 0.0
  %789 = vmatprep.subr.mxu0 0.0
  %790 = vmatpush1.msra.mxu0 0.0
  %791 = vmatprep.subr.mxu0 0.0
  %792 = vmatpush1.msra.mxu0 0.0
  %793 = vmatprep.subr.mxu0 0.0
  %794 = vmatpush1.msra.mxu0 0.0
  %795 = vmatprep.subr.mxu0 0.0
  %796 = vmatpush1.msra.mxu0 0.0
  %797 = vmatprep.subr.mxu0 0.0
  %798 = vmatpush1.msra.mxu0 0.0
  %799 = vmatprep.subr.mxu0 0.0
  %800 = vmatpush1.msra.mxu0 0.0
  %801 = vmatprep.mubr.f32.mxu0 0.0
  %802 = vmatmul.mubr.f32.gmra.mrb[0].mxu0 %v735
  %v803 = vpop.f32.mrb[0].mxu0
  %v804 = vadd.f32 %v732, %v803
  %v805 = vpop.f32.mrb[0].mxu0
  %806 = vdwg.mxu0
  %v807 = vmax.f32 %v804, 0.0
  %s808 = scalar_lea.vmem %s5, 96
  %v809 = vld [vmem:[%s808] sm:$0xff]
  %v810 = vld [vmem:[%s808 + $0x8] sm:$0xff]
  %v811 = vld [vmem:[%s808 + $0x10] sm:$0xff]
  %v812 = vld [vmem:[%s808 + $0x18] sm:$0xff]
  %s813 = scalar_lea.vmem %s6, 3
  %v814 = vld [vmem:[%s813] sm:$0x1]
  %v816 = vlaneseq
  %v817 = vshrl.u32 %v816, 7
  %v818 = vsub.s32 0, %v817
  %v819 = vrot.slane %v814, %v818
  %v822 = vsel %vm558, %v807, 0
  %824 = vmatprep.subr.mxu0 0.0
  %825 = vmatpush1.msra.mxu0 %v809
  %826 = vmatprep.subr.mxu0 0.0
  %827 = vmatpush1.msra.mxu0 %v810
  %828 = vmatprep.subr.mxu0 0.0
  %829 = vmatpush1.msra.mxu0 %v811
  %830 = vmatprep.subr.mxu0 0.0
  %831 = vmatpush1.msra.mxu0 %v812
  %832 = vmatprep.subr.mxu0 0.0
  %833 = vmatpush1.msra.mxu0 0.0
  %834 = vmatprep.subr.mxu0 0.0
  %835 = vmatpush1.msra.mxu0 0.0
  %836 = vmatprep.subr.mxu0 0.0
  %837 = vmatpush1.msra.mxu0 0.0
  %838 = vmatprep.subr.mxu0 0.0
  %839 = vmatpush1.msra.mxu0 0.0
  %840 = vmatprep.subr.mxu0 0.0
  %841 = vmatpush1.msra.mxu0 0.0
  %842 = vmatprep.subr.mxu0 0.0
  %843 = vmatpush1.msra.mxu0 0.0
  %844 = vmatprep.subr.mxu0 0.0
  %845 = vmatpush1.msra.mxu0 0.0
  %846 = vmatprep.subr.mxu0 0.0
  %847 = vmatpush1.msra.mxu0 0.0
  %848 = vmatprep.subr.mxu0 0.0
  %849 = vmatpush1.msra.mxu0 0.0
  %850 = vmatprep.subr.mxu0 0.0
  %851 = vmatpush1.msra.mxu0 0.0
  %852 = vmatprep.subr.mxu0 0.0
  %853 = vmatpush1.msra.mxu0 0.0
  %854 = vmatprep.subr.mxu0 0.0
  %855 = vmatpush1.msra.mxu0 0.0
  %856 = vmatprep.subr.mxu0 0.0
  %857 = vmatpush1.msra.mxu0 0.0
  %858 = vmatprep.subr.mxu0 0.0
  %859 = vmatpush1.msra.mxu0 0.0
  %860 = vmatprep.subr.mxu0 0.0
  %861 = vmatpush1.msra.mxu0 0.0
  %862 = vmatprep.subr.mxu0 0.0
  %863 = vmatpush1.msra.mxu0 0.0
  %864 = vmatprep.subr.mxu0 0.0
  %865 = vmatpush1.msra.mxu0 0.0
  %866 = vmatprep.subr.mxu0 0.0
  %867 = vmatpush1.msra.mxu0 0.0
  %868 = vmatprep.subr.mxu0 0.0
  %869 = vmatpush1.msra.mxu0 0.0
  %870 = vmatprep.subr.mxu0 0.0
  %871 = vmatpush1.msra.mxu0 0.0
  %872 = vmatprep.subr.mxu0 0.0
  %873 = vmatpush1.msra.mxu0 0.0
  %874 = vmatprep.subr.mxu0 0.0
  %875 = vmatpush1.msra.mxu0 0.0
  %876 = vmatprep.subr.mxu0 0.0
  %877 = vmatpush1.msra.mxu0 0.0
  %878 = vmatprep.subr.mxu0 0.0
  %879 = vmatpush1.msra.mxu0 0.0
  %880 = vmatprep.subr.mxu0 0.0
  %881 = vmatpush1.msra.mxu0 0.0
  %882 = vmatprep.subr.mxu0 0.0
  %883 = vmatpush1.msra.mxu0 0.0
  %884 = vmatprep.subr.mxu0 0.0
  %885 = vmatpush1.msra.mxu0 0.0
  %886 = vmatprep.subr.mxu0 0.0
  %887 = vmatpush1.msra.mxu0 0.0
  %888 = vmatprep.mubr.f32.mxu0 0.0
  %889 = vmatmul.mubr.f32.gmra.mrb[0].mxu0 %v822
  %v890 = vpop.f32.mrb[0].mxu0
  %v891 = vadd.f32 %v819, %v890
  %v892 = vpop.f32.mrb[0].mxu0
  %893 = vdwg.mxu0
  %v894 = vmax.f32 %v891, 0.0
  %v895 = vadd.f32 %v720, %v894
  %s896 = scalar_lea.vmem %s5, 128
  %v897 = vld [vmem:[%s896] sm:$0xff]
  %v898 = vld [vmem:[%s896 + $0x8] sm:$0xff]
  %v899 = vld [vmem:[%s896 + $0x10] sm:$0xff]
  %v900 = vld [vmem:[%s896 + $0x18] sm:$0xff]
  %s901 = scalar_lea.vmem %s6, 4
  %v902 = vld [vmem:[%s901] sm:$0x1]
  %v904 = vlaneseq
  %v905 = vshrl.u32 %v904, 7
  %v906 = vsub.s32 0, %v905
  %v907 = vrot.slane %v902, %v906
  %v910 = vsel %vm558, %v895, 0
  %912 = vmatprep.subr.mxu0 0.0
  %913 = vmatpush1.msra.mxu0 %v897
  %914 = vmatprep.subr.mxu0 0.0
  %915 = vmatpush1.msra.mxu0 %v898
  %916 = vmatprep.subr.mxu0 0.0
  %917 = vmatpush1.msra.mxu0 %v899
  %918 = vmatprep.subr.mxu0 0.0
  %919 = vmatpush1.msra.mxu0 %v900
  %920 = vmatprep.subr.mxu0 0.0
  %921 = vmatpush1.msra.mxu0 0.0
  %922 = vmatprep.subr.mxu0 0.0
  %923 = vmatpush1.msra.mxu0 0.0
  %924 = vmatprep.subr.mxu0 0.0
  %925 = vmatpush1.msra.mxu0 0.0
  %926 = vmatprep.subr.mxu0 0.0
  %927 = vmatpush1.msra.mxu0 0.0
  %928 = vmatprep.subr.mxu0 0.0
  %929 = vmatpush1.msra.mxu0 0.0
  %930 = vmatprep.subr.mxu0 0.0
  %931 = vmatpush1.msra.mxu0 0.0
  %932 = vmatprep.subr.mxu0 0.0
  %933 = vmatpush1.msra.mxu0 0.0
  %934 = vmatprep.subr.mxu0 0.0
  %935 = vmatpush1.msra.mxu0 0.0
  %936 = vmatprep.subr.mxu0 0.0
  %937 = vmatpush1.msra.mxu0 0.0
  %938 = vmatprep.subr.mxu0 0.0
  %939 = vmatpush1.msra.mxu0 0.0
  %940 = vmatprep.subr.mxu0 0.0
  %941 = vmatpush1.msra.mxu0 0.0
  %942 = vmatprep.subr.mxu0 0.0
  %943 = vmatpush1.msra.mxu0 0.0
  %944 = vmatprep.subr.mxu0 0.0
  %945 = vmatpush1.msra.mxu0 0.0
  %946 = vmatprep.subr.mxu0 0.0
  %947 = vmatpush1.msra.mxu0 0.0
  %948 = vmatprep.subr.mxu0 0.0
  %949 = vmatpush1.msra.mxu0 0.0
  %950 = vmatprep.subr.mxu0 0.0
  %951 = vmatpush1.msra.mxu0 0.0
  %952 = vmatprep.subr.mxu0 0.0
  %953 = vmatpush1.msra.mxu0 0.0
  %954 = vmatprep.subr.mxu0 0.0
  %955 = vmatpush1.msra.mxu0 0.0
  %956 = vmatprep.subr.mxu0 0.0
  %957 = vmatpush1.msra.mxu0 0.0
  %958 = vmatprep.subr.mxu0 0.0
  %959 = vmatpush1.msra.mxu0 0.0
  %960 = vmatprep.subr.mxu0 0.0
  %961 = vmatpush1.msra.mxu0 0.0
  %962 = vmatprep.subr.mxu0 0.0
  %963 = vmatpush1.msra.mxu0 0.0
  %964 = vmatprep.subr.mxu0 0.0
  %965 = vmatpush1.msra.mxu0 0.0
  %966 = vmatprep.subr.mxu0 0.0
  %967 = vmatpush1.msra.mxu0 0.0
  %968 = vmatprep.subr.mxu0 0.0
  %969 = vmatpush1.msra.mxu0 0.0
  %970 = vmatprep.subr.mxu0 0.0
  %971 = vmatpush1.msra.mxu0 0.0
  %972 = vmatprep.subr.mxu0 0.0
  %973 = vmatpush1.msra.mxu0 0.0
  %974 = vmatprep.subr.mxu0 0.0
  %975 = vmatpush1.msra.mxu0 0.0
  %976 = vmatprep.mubr.f32.mxu0 0.0
  %977 = vmatmul.mubr.f32.gmra.mrb[0].mxu0 %v910
  %v978 = vpop.f32.mrb[0].mxu0
  %v979 = vadd.f32 %v907, %v978
  %v980 = vpop.f32.mrb[0].mxu0
  %981 = vdwg.mxu0
  %v982 = vmax.f32 %v979, 0.0
  %s983 = scalar_lea.vmem %s5, 160
  %v984 = vld [vmem:[%s983] sm:$0xff]
  %v985 = vld [vmem:[%s983 + $0x8] sm:$0xff]
  %v986 = vld [vmem:[%s983 + $0x10] sm:$0xff]
  %v987 = vld [vmem:[%s983 + $0x18] sm:$0xff]
  %s988 = scalar_lea.vmem %s6, 5
  %v989 = vld [vmem:[%s988] sm:$0x1]
  %v991 = vlaneseq
  %v992 = vshrl.u32 %v991, 7
  %v993 = vsub.s32 0, %v992
  %v994 = vrot.slane %v989, %v993
  %v997 = vsel %vm558, %v982, 0
  %999 = vmatprep.subr.mxu0 0.0
  %1000 = vmatpush1.msra.mxu0 %v984
  %1001 = vmatprep.subr.mxu0 0.0
  %1002 = vmatpush1.msra.mxu0 %v985
  %1003 = vmatprep.subr.mxu0 0.0
  %1004 = vmatpush1.msra.mxu0 %v986
  %1005 = vmatprep.subr.mxu0 0.0
  %1006 = vmatpush1.msra.mxu0 %v987
  %1007 = vmatprep.subr.mxu0 0.0
  %1008 = vmatpush1.msra.mxu0 0.0
  %1009 = vmatprep.subr.mxu0 0.0
  %1010 = vmatpush1.msra.mxu0 0.0
  %1011 = vmatprep.subr.mxu0 0.0
  %1012 = vmatpush1.msra.mxu0 0.0
  %1013 = vmatprep.subr.mxu0 0.0
  %1014 = vmatpush1.msra.mxu0 0.0
  %1015 = vmatprep.subr.mxu0 0.0
  %1016 = vmatpush1.msra.mxu0 0.0
  %1017 = vmatprep.subr.mxu0 0.0
  %1018 = vmatpush1.msra.mxu0 0.0
  %1019 = vmatprep.subr.mxu0 0.0
  %1020 = vmatpush1.msra.mxu0 0.0
  %1021 = vmatprep.subr.mxu0 0.0
  %1022 = vmatpush1.msra.mxu0 0.0
  %1023 = vmatprep.subr.mxu0 0.0
  %1024 = vmatpush1.msra.mxu0 0.0
  %1025 = vmatprep.subr.mxu0 0.0
  %1026 = vmatpush1.msra.mxu0 0.0
  %1027 = vmatprep.subr.mxu0 0.0
  %1028 = vmatpush1.msra.mxu0 0.0
  %1029 = vmatprep.subr.mxu0 0.0
  %1030 = vmatpush1.msra.mxu0 0.0
  %1031 = vmatprep.subr.mxu0 0.0
  %1032 = vmatpush1.msra.mxu0 0.0
  %1033 = vmatprep.subr.mxu0 0.0
  %1034 = vmatpush1.msra.mxu0 0.0
  %1035 = vmatprep.subr.mxu0 0.0
  %1036 = vmatpush1.msra.mxu0 0.0
  %1037 = vmatprep.subr.mxu0 0.0
  %1038 = vmatpush1.msra.mxu0 0.0
  %1039 = vmatprep.subr.mxu0 0.0
  %1040 = vmatpush1.msra.mxu0 0.0
  %1041 = vmatprep.subr.mxu0 0.0
  %1042 = vmatpush1.msra.mxu0 0.0
  %1043 = vmatprep.subr.mxu0 0.0
  %1044 = vmatpush1.msra.mxu0 0.0
  %1045 = vmatprep.subr.mxu0 0.0
  %1046 = vmatpush1.msra.mxu0 0.0
  %1047 = vmatprep.subr.mxu0 0.0
  %1048 = vmatpush1.msra.mxu0 0.0
  %1049 = vmatprep.subr.mxu0 0.0
  %1050 = vmatpush1.msra.mxu0 0.0
  %1051 = vmatprep.subr.mxu0 0.0
  %1052 = vmatpush1.msra.mxu0 0.0
  %1053 = vmatprep.subr.mxu0 0.0
  %1054 = vmatpush1.msra.mxu0 0.0
  %1055 = vmatprep.subr.mxu0 0.0
  %1056 = vmatpush1.msra.mxu0 0.0
  %1057 = vmatprep.subr.mxu0 0.0
  %1058 = vmatpush1.msra.mxu0 0.0
  %1059 = vmatprep.subr.mxu0 0.0
  %1060 = vmatpush1.msra.mxu0 0.0
  %1061 = vmatprep.subr.mxu0 0.0
  %1062 = vmatpush1.msra.mxu0 0.0
  %1063 = vmatprep.mubr.f32.mxu0 0.0
  %1064 = vmatmul.mubr.f32.gmra.mrb[0].mxu0 %v997
  %v1065 = vpop.f32.mrb[0].mxu0
  %v1066 = vadd.f32 %v994, %v1065
  %v1067 = vpop.f32.mrb[0].mxu0
  %1068 = vdwg.mxu0
  %v1069 = vmax.f32 %v1066, 0.0
  %v1070 = vadd.f32 %v895, %v1069
  %v1071 = vld [vmem:[%s7] sm:$0xff]
  %v1072 = vld [vmem:[%s7 + $0x8] sm:$0xff]
  %v1073 = vld [vmem:[%s7 + $0x10] sm:$0xff]
  %v1074 = vld [vmem:[%s7 + $0x18] sm:$0xff]
  %v1075 = vld [vmem:[%s8] sm:$0x1]
  %v1077 = vlaneseq
  %v1078 = vshrl.u32 %v1077, 7
  %v1079 = vsub.s32 0, %v1078
  %v1080 = vrot.slane %v1075, %v1079
  %v1083 = vsel %vm558, %v1070, 0
  %1085 = vmatprep.subr.mxu0 0.0
  %1086 = vmatpush1.msra.mxu0 %v1071
  %1087 = vmatprep.subr.mxu0 0.0
  %1088 = vmatpush1.msra.mxu0 %v1072
  %1089 = vmatprep.subr.mxu0 0.0
  %1090 = vmatpush1.msra.mxu0 %v1073
  %1091 = vmatprep.subr.mxu0 0.0
  %1092 = vmatpush1.msra.mxu0 %v1074
  %1093 = vmatprep.subr.mxu0 0.0
  %1094 = vmatpush1.msra.mxu0 0.0
  %1095 = vmatprep.subr.mxu0 0.0
  %1096 = vmatpush1.msra.mxu0 0.0
  %1097 = vmatprep.subr.mxu0 0.0
  %1098 = vmatpush1.msra.mxu0 0.0
  %1099 = vmatprep.subr.mxu0 0.0
  %1100 = vmatpush1.msra.mxu0 0.0
  %1101 = vmatprep.subr.mxu0 0.0
  %1102 = vmatpush1.msra.mxu0 0.0
  %1103 = vmatprep.subr.mxu0 0.0
  %1104 = vmatpush1.msra.mxu0 0.0
  %1105 = vmatprep.subr.mxu0 0.0
  %1106 = vmatpush1.msra.mxu0 0.0
  %1107 = vmatprep.subr.mxu0 0.0
  %1108 = vmatpush1.msra.mxu0 0.0
  %1109 = vmatprep.subr.mxu0 0.0
  %1110 = vmatpush1.msra.mxu0 0.0
  %1111 = vmatprep.subr.mxu0 0.0
  %1112 = vmatpush1.msra.mxu0 0.0
  %1113 = vmatprep.subr.mxu0 0.0
  %1114 = vmatpush1.msra.mxu0 0.0
  %1115 = vmatprep.subr.mxu0 0.0
  %1116 = vmatpush1.msra.mxu0 0.0
  %1117 = vmatprep.subr.mxu0 0.0
  %1118 = vmatpush1.msra.mxu0 0.0
  %1119 = vmatprep.subr.mxu0 0.0
  %1120 = vmatpush1.msra.mxu0 0.0
  %1121 = vmatprep.subr.mxu0 0.0
  %1122 = vmatpush1.msra.mxu0 0.0
  %1123 = vmatprep.subr.mxu0 0.0
  %1124 = vmatpush1.msra.mxu0 0.0
  %1125 = vmatprep.subr.mxu0 0.0
  %1126 = vmatpush1.msra.mxu0 0.0
  %1127 = vmatprep.subr.mxu0 0.0
  %1128 = vmatpush1.msra.mxu0 0.0
  %1129 = vmatprep.subr.mxu0 0.0
  %1130 = vmatpush1.msra.mxu0 0.0
  %1131 = vmatprep.subr.mxu0 0.0
  %1132 = vmatpush1.msra.mxu0 0.0
  %1133 = vmatprep.subr.mxu0 0.0
  %1134 = vmatpush1.msra.mxu0 0.0
  %1135 = vmatprep.subr.mxu0 0.0
  %1136 = vmatpush1.msra.mxu0 0.0
  %1137 = vmatprep.subr.mxu0 0.0
  %1138 = vmatpush1.msra.mxu0 0.0
  %1139 = vmatprep.subr.mxu0 0.0
  %1140 = vmatpush1.msra.mxu0 0.0
  %1141 = vmatprep.subr.mxu0 0.0
  %1142 = vmatpush1.msra.mxu0 0.0
  %1143 = vmatprep.subr.mxu0 0.0
  %1144 = vmatpush1.msra.mxu0 0.0
  %1145 = vmatprep.subr.mxu0 0.0
  %1146 = vmatpush1.msra.mxu0 0.0
  %1147 = vmatprep.subr.mxu0 0.0
  %1148 = vmatpush1.msra.mxu0 0.0
  %1149 = vmatprep.mubr.f32.mxu0 0.0
  %1150 = vmatmul.mubr.f32.gmra.mrb[0].mxu0 %v1083
  %v1151 = vpop.f32.mrb[0].mxu0
  %v1152 = vadd.f32 %v1080, %v1151
  %v1153 = vpop.f32.mrb[0].mxu0
  %1154 = vdwg.mxu0
  %v1155 = vmax.f32 %v1152, 0.0
  %v1156 = vld [vmem:[%s9] sm:$0xff]
  %v1157 = vld [vmem:[%s10] sm:$0x1]
  %v1159 = vlaneseq
  %v1160 = vshrl.u32 %v1159, 7
  %v1161 = vsub.s32 0, %v1160
  %v1162 = vrot.slane %v1157, %v1161
  %vm1164 = vcmask 64512
  %v1166 = vsel %vm1164, %v1155, 0
  %1168 = vmatprep.subr.mxu0 0.0
  %1169 = vmatpush1.msra.mxu0 %v1156
  %1170 = vmatprep.subr.mxu0 0.0
  %1171 = vmatpush1.msra.mxu0 0.0
  %1172 = vmatprep.subr.mxu0 0.0
  %1173 = vmatpush1.msra.mxu0 0.0
  %1174 = vmatprep.subr.mxu0 0.0
  %1175 = vmatpush1.msra.mxu0 0.0
  %1176 = vmatprep.subr.mxu0 0.0
  %1177 = vmatpush1.msra.mxu0 0.0
  %1178 = vmatprep.subr.mxu0 0.0
  %1179 = vmatpush1.msra.mxu0 0.0
  %1180 = vmatprep.subr.mxu0 0.0
  %1181 = vmatpush1.msra.mxu0 0.0
  %1182 = vmatprep.subr.mxu0 0.0
  %1183 = vmatpush1.msra.mxu0 0.0
  %1184 = vmatprep.subr.mxu0 0.0
  %1185 = vmatpush1.msra.mxu0 0.0
  %1186 = vmatprep.subr.mxu0 0.0
  %1187 = vmatpush1.msra.mxu0 0.0
  %1188 = vmatprep.subr.mxu0 0.0
  %1189 = vmatpush1.msra.mxu0 0.0
  %1190 = vmatprep.subr.mxu0 0.0
  %1191 = vmatpush1.msra.mxu0 0.0
  %1192 = vmatprep.subr.mxu0 0.0
  %1193 = vmatpush1.msra.mxu0 0.0
  %1194 = vmatprep.subr.mxu0 0.0
  %1195 = vmatpush1.msra.mxu0 0.0
  %1196 = vmatprep.subr.mxu0 0.0
  %1197 = vmatpush1.msra.mxu0 0.0
  %1198 = vmatprep.subr.mxu0 0.0
  %1199 = vmatpush1.msra.mxu0 0.0
  %1200 = vmatprep.subr.mxu0 0.0
  %1201 = vmatpush1.msra.mxu0 0.0
  %1202 = vmatprep.subr.mxu0 0.0
  %1203 = vmatpush1.msra.mxu0 0.0
  %1204 = vmatprep.subr.mxu0 0.0
  %1205 = vmatpush1.msra.mxu0 0.0
  %1206 = vmatprep.subr.mxu0 0.0
  %1207 = vmatpush1.msra.mxu0 0.0
  %1208 = vmatprep.subr.mxu0 0.0
  %1209 = vmatpush1.msra.mxu0 0.0
  %1210 = vmatprep.subr.mxu0 0.0
  %1211 = vmatpush1.msra.mxu0 0.0
  %1212 = vmatprep.subr.mxu0 0.0
  %1213 = vmatpush1.msra.mxu0 0.0
  %1214 = vmatprep.subr.mxu0 0.0
  %1215 = vmatpush1.msra.mxu0 0.0
  %1216 = vmatprep.subr.mxu0 0.0
  %1217 = vmatpush1.msra.mxu0 0.0
  %1218 = vmatprep.subr.mxu0 0.0
  %1219 = vmatpush1.msra.mxu0 0.0
  %1220 = vmatprep.subr.mxu0 0.0
  %1221 = vmatpush1.msra.mxu0 0.0
  %1222 = vmatprep.subr.mxu0 0.0
  %1223 = vmatpush1.msra.mxu0 0.0
  %1224 = vmatprep.subr.mxu0 0.0
  %1225 = vmatpush1.msra.mxu0 0.0
  %1226 = vmatprep.subr.mxu0 0.0
  %1227 = vmatpush1.msra.mxu0 0.0
  %1228 = vmatprep.subr.mxu0 0.0
  %1229 = vmatpush1.msra.mxu0 0.0
  %1230 = vmatprep.subr.mxu0 0.0
  %1231 = vmatpush1.msra.mxu0 0.0
  %1232 = vmatprep.mubr.f32.mxu0 0.0
  %1233 = vmatmul.mubr.f32.gmra.mrb[0].mxu0 %v1166
  %v1234 = vpop.f32.mrb[0].mxu0
  %v1235 = vadd.f32 %v1162, %v1234
  %v1236 = vpop.f32.mrb[0].mxu0
  %1237 = vdwg.mxu0
  %s1238 = scalar_lea.vmem %s3, 64
  %v1239 = vld [vmem:[%s1238] sm:$0xff]
  %v1240 = vld [vmem:[%s1238 + $0x8] sm:$0xff]
  %v1241 = vld [vmem:[%s1238 + $0x10] sm:$0xff]
  %v1242 = vld [vmem:[%s1238 + $0x18] sm:$0xff]
  %v1243 = vld [vmem:[%s1238 + $0x20] sm:$0xff]
  %v1244 = vld [vmem:[%s1238 + $0x28] sm:$0xff]
  %v1245 = vld [vmem:[%s1238 + $0x30] sm:$0xff]
  %v1246 = vld [vmem:[%s1238 + $0x38] sm:$0xff]
  %s1247 = scalar_lea.vmem %s4, 1
  %v1248 = vld [vmem:[%s1247] sm:$0x1]
  %v1250 = vlaneseq
  %v1251 = vshrl.u32 %v1250, 7
  %v1252 = vsub.s32 0, %v1251
  %v1253 = vrot.slane %v1248, %v1252
  %v1255 = vrot.slane %v378, 1
  %v1256 = vsel %vm472, %v451, %v1255
  %v1257 = vsel %vm69, %v1256, 0
  %1259 = vmatprep.subr.mxu0 0.0
  %1260 = vmatpush1.msra.mxu0 %v1239
  %1261 = vmatprep.subr.mxu0 0.0
  %1262 = vmatpush1.msra.mxu0 %v1240
  %1263 = vmatprep.subr.mxu0 0.0
  %1264 = vmatpush1.msra.mxu0 %v1241
  %1265 = vmatprep.subr.mxu0 0.0
  %1266 = vmatpush1.msra.mxu0 %v1242
  %1267 = vmatprep.subr.mxu0 0.0
  %1268 = vmatpush1.msra.mxu0 %v1243
  %1269 = vmatprep.subr.mxu0 0.0
  %1270 = vmatpush1.msra.mxu0 %v1244
  %1271 = vmatprep.subr.mxu0 0.0
  %1272 = vmatpush1.msra.mxu0 %v1245
  %1273 = vmatprep.subr.mxu0 0.0
  %1274 = vmatpush1.msra.mxu0 %v1246
  %1275 = vmatprep.subr.mxu0 0.0
  %1276 = vmatpush1.msra.mxu0 0.0
  %1277 = vmatprep.subr.mxu0 0.0
  %1278 = vmatpush1.msra.mxu0 0.0
  %1279 = vmatprep.subr.mxu0 0.0
  %1280 = vmatpush1.msra.mxu0 0.0
  %1281 = vmatprep.subr.mxu0 0.0
  %1282 = vmatpush1.msra.mxu0 0.0
  %1283 = vmatprep.subr.mxu0 0.0
  %1284 = vmatpush1.msra.mxu0 0.0
  %1285 = vmatprep.subr.mxu0 0.0
  %1286 = vmatpush1.msra.mxu0 0.0
  %1287 = vmatprep.subr.mxu0 0.0
  %1288 = vmatpush1.msra.mxu0 0.0
  %1289 = vmatprep.subr.mxu0 0.0
  %1290 = vmatpush1.msra.mxu0 0.0
  %1291 = vmatprep.subr.mxu0 0.0
  %1292 = vmatpush1.msra.mxu0 0.0
  %1293 = vmatprep.subr.mxu0 0.0
  %1294 = vmatpush1.msra.mxu0 0.0
  %1295 = vmatprep.subr.mxu0 0.0
  %1296 = vmatpush1.msra.mxu0 0.0
  %1297 = vmatprep.subr.mxu0 0.0
  %1298 = vmatpush1.msra.mxu0 0.0
  %1299 = vmatprep.subr.mxu0 0.0
  %1300 = vmatpush1.msra.mxu0 0.0
  %1301 = vmatprep.subr.mxu0 0.0
  %1302 = vmatpush1.msra.mxu0 0.0
  %1303 = vmatprep.subr.mxu0 0.0
  %1304 = vmatpush1.msra.mxu0 0.0
  %1305 = vmatprep.subr.mxu0 0.0
  %1306 = vmatpush1.msra.mxu0 0.0
  %1307 = vmatprep.subr.mxu0 0.0
  %1308 = vmatpush1.msra.mxu0 0.0
  %1309 = vmatprep.subr.mxu0 0.0
  %1310 = vmatpush1.msra.mxu0 0.0
  %1311 = vmatprep.subr.mxu0 0.0
  %1312 = vmatpush1.msra.mxu0 0.0
  %1313 = vmatprep.subr.mxu0 0.0
  %1314 = vmatpush1.msra.mxu0 0.0
  %1315 = vmatprep.subr.mxu0 0.0
  %1316 = vmatpush1.msra.mxu0 0.0
  %1317 = vmatprep.subr.mxu0 0.0
  %1318 = vmatpush1.msra.mxu0 0.0
  %1319 = vmatprep.subr.mxu0 0.0
  %1320 = vmatpush1.msra.mxu0 0.0
  %1321 = vmatprep.subr.mxu0 0.0
  %1322 = vmatpush1.msra.mxu0 0.0
  %1323 = vmatprep.mubr.f32.mxu0 0.0
  %1324 = vmatmul.mubr.f32.gmra.mrb[0].mxu0 %v1257
  %v1325 = vpop.f32.mrb[0].mxu0
  %v1326 = vadd.f32 %v1253, %v1325
  %v1327 = vpop.f32.mrb[0].mxu0
  %1328 = vdwg.mxu0
  %v1329 = vmax.f32 %v1326, 0.0
  %s1330 = scalar_lea.vmem %s5, 192
  %v1331 = vld [vmem:[%s1330] sm:$0xff]
  %v1332 = vld [vmem:[%s1330 + $0x8] sm:$0xff]
  %v1333 = vld [vmem:[%s1330 + $0x10] sm:$0xff]
  %v1334 = vld [vmem:[%s1330 + $0x18] sm:$0xff]
  %s1335 = scalar_lea.vmem %s6, 6
  %v1336 = vld [vmem:[%s1335] sm:$0x1]
  %v1338 = vlaneseq
  %v1339 = vshrl.u32 %v1338, 7
  %v1340 = vsub.s32 0, %v1339
  %v1341 = vrot.slane %v1336, %v1340
  %v1344 = vsel %vm558, %v1329, 0
  %1346 = vmatprep.subr.mxu0 0.0
  %1347 = vmatpush1.msra.mxu0 %v1331
  %1348 = vmatprep.subr.mxu0 0.0
  %1349 = vmatpush1.msra.mxu0 %v1332
  %1350 = vmatprep.subr.mxu0 0.0
  %1351 = vmatpush1.msra.mxu0 %v1333
  %1352 = vmatprep.subr.mxu0 0.0
  %1353 = vmatpush1.msra.mxu0 %v1334
  %1354 = vmatprep.subr.mxu0 0.0
  %1355 = vmatpush1.msra.mxu0 0.0
  %1356 = vmatprep.subr.mxu0 0.0
  %1357 = vmatpush1.msra.mxu0 0.0
  %1358 = vmatprep.subr.mxu0 0.0
  %1359 = vmatpush1.msra.mxu0 0.0
  %1360 = vmatprep.subr.mxu0 0.0
  %1361 = vmatpush1.msra.mxu0 0.0
  %1362 = vmatprep.subr.mxu0 0.0
  %1363 = vmatpush1.msra.mxu0 0.0
  %1364 = vmatprep.subr.mxu0 0.0
  %1365 = vmatpush1.msra.mxu0 0.0
  %1366 = vmatprep.subr.mxu0 0.0
  %1367 = vmatpush1.msra.mxu0 0.0
  %1368 = vmatprep.subr.mxu0 0.0
  %1369 = vmatpush1.msra.mxu0 0.0
  %1370 = vmatprep.subr.mxu0 0.0
  %1371 = vmatpush1.msra.mxu0 0.0
  %1372 = vmatprep.subr.mxu0 0.0
  %1373 = vmatpush1.msra.mxu0 0.0
  %1374 = vmatprep.subr.mxu0 0.0
  %1375 = vmatpush1.msra.mxu0 0.0
  %1376 = vmatprep.subr.mxu0 0.0
  %1377 = vmatpush1.msra.mxu0 0.0
  %1378 = vmatprep.subr.mxu0 0.0
  %1379 = vmatpush1.msra.mxu0 0.0
  %1380 = vmatprep.subr.mxu0 0.0
  %1381 = vmatpush1.msra.mxu0 0.0
  %1382 = vmatprep.subr.mxu0 0.0
  %1383 = vmatpush1.msra.mxu0 0.0
  %1384 = vmatprep.subr.mxu0 0.0
  %1385 = vmatpush1.msra.mxu0 0.0
  %1386 = vmatprep.subr.mxu0 0.0
  %1387 = vmatpush1.msra.mxu0 0.0
  %1388 = vmatprep.subr.mxu0 0.0
  %1389 = vmatpush1.msra.mxu0 0.0
  %1390 = vmatprep.subr.mxu0 0.0
  %1391 = vmatpush1.msra.mxu0 0.0
  %1392 = vmatprep.subr.mxu0 0.0
  %1393 = vmatpush1.msra.mxu0 0.0
  %1394 = vmatprep.subr.mxu0 0.0
  %1395 = vmatpush1.msra.mxu0 0.0
  %1396 = vmatprep.subr.mxu0 0.0
  %1397 = vmatpush1.msra.mxu0 0.0
  %1398 = vmatprep.subr.mxu0 0.0
  %1399 = vmatpush1.msra.mxu0 0.0
  %1400 = vmatprep.subr.mxu0 0.0
  %1401 = vmatpush1.msra.mxu0 0.0
  %1402 = vmatprep.subr.mxu0 0.0
  %1403 = vmatpush1.msra.mxu0 0.0
  %1404 = vmatprep.subr.mxu0 0.0
  %1405 = vmatpush1.msra.mxu0 0.0
  %1406 = vmatprep.subr.mxu0 0.0
  %1407 = vmatpush1.msra.mxu0 0.0
  %1408 = vmatprep.subr.mxu0 0.0
  %1409 = vmatpush1.msra.mxu0 0.0
  %1410 = vmatprep.mubr.f32.mxu0 0.0
  %1411 = vmatmul.mubr.f32.gmra.mrb[0].mxu0 %v1344
  %v1412 = vpop.f32.mrb[0].mxu0
  %v1413 = vadd.f32 %v1341, %v1412
  %v1414 = vpop.f32.mrb[0].mxu0
  %1415 = vdwg.mxu0
  %v1416 = vmax.f32 %v1413, 0.0
  %s1417 = scalar_lea.vmem %s5, 224
  %v1418 = vld [vmem:[%s1417] sm:$0xff]
  %v1419 = vld [vmem:[%s1417 + $0x8] sm:$0xff]
  %v1420 = vld [vmem:[%s1417 + $0x10] sm:$0xff]
  %v1421 = vld [vmem:[%s1417 + $0x18] sm:$0xff]
  %s1422 = scalar_lea.vmem %s6, 7
  %v1423 = vld [vmem:[%s1422] sm:$0x1]
  %v1425 = vlaneseq
  %v1426 = vshrl.u32 %v1425, 7
  %v1427 = vsub.s32 0, %v1426
  %v1428 = vrot.slane %v1423, %v1427
  %v1431 = vsel %vm558, %v1416, 0
  %1433 = vmatprep.subr.mxu0 0.0
  %1434 = vmatpush1.msra.mxu0 %v1418
  %1435 = vmatprep.subr.mxu0 0.0
  %1436 = vmatpush1.msra.mxu0 %v1419
  %1437 = vmatprep.subr.mxu0 0.0
  %1438 = vmatpush1.msra.mxu0 %v1420
  %1439 = vmatprep.subr.mxu0 0.0
  %1440 = vmatpush1.msra.mxu0 %v1421
  %1441 = vmatprep.subr.mxu0 0.0
  %1442 = vmatpush1.msra.mxu0 0.0
  %1443 = vmatprep.subr.mxu0 0.0
  %1444 = vmatpush1.msra.mxu0 0.0
  %1445 = vmatprep.subr.mxu0 0.0
  %1446 = vmatpush1.msra.mxu0 0.0
  %1447 = vmatprep.subr.mxu0 0.0
  %1448 = vmatpush1.msra.mxu0 0.0
  %1449 = vmatprep.subr.mxu0 0.0
  %1450 = vmatpush1.msra.mxu0 0.0
  %1451 = vmatprep.subr.mxu0 0.0
  %1452 = vmatpush1.msra.mxu0 0.0
  %1453 = vmatprep.subr.mxu0 0.0
  %1454 = vmatpush1.msra.mxu0 0.0
  %1455 = vmatprep.subr.mxu0 0.0
  %1456 = vmatpush1.msra.mxu0 0.0
  %1457 = vmatprep.subr.mxu0 0.0
  %1458 = vmatpush1.msra.mxu0 0.0
  %1459 = vmatprep.subr.mxu0 0.0
  %1460 = vmatpush1.msra.mxu0 0.0
  %1461 = vmatprep.subr.mxu0 0.0
  %1462 = vmatpush1.msra.mxu0 0.0
  %1463 = vmatprep.subr.mxu0 0.0
  %1464 = vmatpush1.msra.mxu0 0.0
  %1465 = vmatprep.subr.mxu0 0.0
  %1466 = vmatpush1.msra.mxu0 0.0
  %1467 = vmatprep.subr.mxu0 0.0
  %1468 = vmatpush1.msra.mxu0 0.0
  %1469 = vmatprep.subr.mxu0 0.0
  %1470 = vmatpush1.msra.mxu0 0.0
  %1471 = vmatprep.subr.mxu0 0.0
  %1472 = vmatpush1.msra.mxu0 0.0
  %1473 = vmatprep.subr.mxu0 0.0
  %1474 = vmatpush1.msra.mxu0 0.0
  %1475 = vmatprep.subr.mxu0 0.0
  %1476 = vmatpush1.msra.mxu0 0.0
  %1477 = vmatprep.subr.mxu0 0.0
  %1478 = vmatpush1.msra.mxu0 0.0
  %1479 = vmatprep.subr.mxu0 0.0
  %1480 = vmatpush1.msra.mxu0 0.0
  %1481 = vmatprep.subr.mxu0 0.0
  %1482 = vmatpush1.msra.mxu0 0.0
  %1483 = vmatprep.subr.mxu0 0.0
  %1484 = vmatpush1.msra.mxu0 0.0
  %1485 = vmatprep.subr.mxu0 0.0
  %1486 = vmatpush1.msra.mxu0 0.0
  %1487 = vmatprep.subr.mxu0 0.0
  %1488 = vmatpush1.msra.mxu0 0.0
  %1489 = vmatprep.subr.mxu0 0.0
  %1490 = vmatpush1.msra.mxu0 0.0
  %1491 = vmatprep.subr.mxu0 0.0
  %1492 = vmatpush1.msra.mxu0 0.0
  %1493 = vmatprep.subr.mxu0 0.0
  %1494 = vmatpush1.msra.mxu0 0.0
  %1495 = vmatprep.subr.mxu0 0.0
  %1496 = vmatpush1.msra.mxu0 0.0
  %1497 = vmatprep.mubr.f32.mxu0 0.0
  %1498 = vmatmul.mubr.f32.gmra.mrb[0].mxu0 %v1431
  %v1499 = vpop.f32.mrb[0].mxu0
  %v1500 = vadd.f32 %v1428, %v1499
  %v1501 = vpop.f32.mrb[0].mxu0
  %1502 = vdwg.mxu0
  %v1503 = vmax.f32 %v1500, 0.0
  %v1504 = vadd.f32 %v1329, %v1503
  %s1505 = scalar_lea.vmem %s5, 256
  %v1506 = vld [vmem:[%s1505] sm:$0xff]
  %v1507 = vld [vmem:[%s1505 + $0x8] sm:$0xff]
  %v1508 = vld [vmem:[%s1505 + $0x10] sm:$0xff]
  %v1509 = vld [vmem:[%s1505 + $0x18] sm:$0xff]
  %s1510 = scalar_lea.vmem %s6, 8
  %v1511 = vld [vmem:[%s1510] sm:$0x1]
  %v1513 = vlaneseq
  %v1514 = vshrl.u32 %v1513, 7
  %v1515 = vsub.s32 0, %v1514
  %v1516 = vrot.slane %v1511, %v1515
  %v1519 = vsel %vm558, %v1504, 0
  %1521 = vmatprep.subr.mxu0 0.0
  %1522 = vmatpush1.msra.mxu0 %v1506
  %1523 = vmatprep.subr.mxu0 0.0
  %1524 = vmatpush1.msra.mxu0 %v1507
  %1525 = vmatprep.subr.mxu0 0.0
  %1526 = vmatpush1.msra.mxu0 %v1508
  %1527 = vmatprep.subr.mxu0 0.0
  %1528 = vmatpush1.msra.mxu0 %v1509
  %1529 = vmatprep.subr.mxu0 0.0
  %1530 = vmatpush1.msra.mxu0 0.0
  %1531 = vmatprep.subr.mxu0 0.0
  %1532 = vmatpush1.msra.mxu0 0.0
  %1533 = vmatprep.subr.mxu0 0.0
  %1534 = vmatpush1.msra.mxu0 0.0
  %1535 = vmatprep.subr.mxu0 0.0
  %1536 = vmatpush1.msra.mxu0 0.0
  %1537 = vmatprep.subr.mxu0 0.0
  %1538 = vmatpush1.msra.mxu0 0.0
  %1539 = vmatprep.subr.mxu0 0.0
  %1540 = vmatpush1.msra.mxu0 0.0
  %1541 = vmatprep.subr.mxu0 0.0
  %1542 = vmatpush1.msra.mxu0 0.0
  %1543 = vmatprep.subr.mxu0 0.0
  %1544 = vmatpush1.msra.mxu0 0.0
  %1545 = vmatprep.subr.mxu0 0.0
  %1546 = vmatpush1.msra.mxu0 0.0
  %1547 = vmatprep.subr.mxu0 0.0
  %1548 = vmatpush1.msra.mxu0 0.0
  %1549 = vmatprep.subr.mxu0 0.0
  %1550 = vmatpush1.msra.mxu0 0.0
  %1551 = vmatprep.subr.mxu0 0.0
  %1552 = vmatpush1.msra.mxu0 0.0
  %1553 = vmatprep.subr.mxu0 0.0
  %1554 = vmatpush1.msra.mxu0 0.0
  %1555 = vmatprep.subr.mxu0 0.0
  %1556 = vmatpush1.msra.mxu0 0.0
  %1557 = vmatprep.subr.mxu0 0.0
  %1558 = vmatpush1.msra.mxu0 0.0
  %1559 = vmatprep.subr.mxu0 0.0
  %1560 = vmatpush1.msra.mxu0 0.0
  %1561 = vmatprep.subr.mxu0 0.0
  %1562 = vmatpush1.msra.mxu0 0.0
  %1563 = vmatprep.subr.mxu0 0.0
  %1564 = vmatpush1.msra.mxu0 0.0
  %1565 = vmatprep.subr.mxu0 0.0
  %1566 = vmatpush1.msra.mxu0 0.0
  %1567 = vmatprep.subr.mxu0 0.0
  %1568 = vmatpush1.msra.mxu0 0.0
  %1569 = vmatprep.subr.mxu0 0.0
  %1570 = vmatpush1.msra.mxu0 0.0
  %1571 = vmatprep.subr.mxu0 0.0
  %1572 = vmatpush1.msra.mxu0 0.0
  %1573 = vmatprep.subr.mxu0 0.0
  %1574 = vmatpush1.msra.mxu0 0.0
  %1575 = vmatprep.subr.mxu0 0.0
  %1576 = vmatpush1.msra.mxu0 0.0
  %1577 = vmatprep.subr.mxu0 0.0
  %1578 = vmatpush1.msra.mxu0 0.0
  %1579 = vmatprep.subr.mxu0 0.0
  %1580 = vmatpush1.msra.mxu0 0.0
  %1581 = vmatprep.subr.mxu0 0.0
  %1582 = vmatpush1.msra.mxu0 0.0
  %1583 = vmatprep.subr.mxu0 0.0
  %1584 = vmatpush1.msra.mxu0 0.0
  %1585 = vmatprep.mubr.f32.mxu0 0.0
  %1586 = vmatmul.mubr.f32.gmra.mrb[0].mxu0 %v1519
  %v1587 = vpop.f32.mrb[0].mxu0
  %v1588 = vadd.f32 %v1516, %v1587
  %v1589 = vpop.f32.mrb[0].mxu0
  %1590 = vdwg.mxu0
  %v1591 = vmax.f32 %v1588, 0.0
  %s1592 = scalar_lea.vmem %s5, 288
  %v1593 = vld [vmem:[%s1592] sm:$0xff]
  %v1594 = vld [vmem:[%s1592 + $0x8] sm:$0xff]
  %v1595 = vld [vmem:[%s1592 + $0x10] sm:$0xff]
  %v1596 = vld [vmem:[%s1592 + $0x18] sm:$0xff]
  %s1597 = scalar_lea.vmem %s6, 9
  %v1598 = vld [vmem:[%s1597] sm:$0x1]
  %v1600 = vlaneseq
  %v1601 = vshrl.u32 %v1600, 7
  %v1602 = vsub.s32 0, %v1601
  %v1603 = vrot.slane %v1598, %v1602
  %v1606 = vsel %vm558, %v1591, 0
  %1608 = vmatprep.subr.mxu0 0.0
  %1609 = vmatpush1.msra.mxu0 %v1593
  %1610 = vmatprep.subr.mxu0 0.0
  %1611 = vmatpush1.msra.mxu0 %v1594
  %1612 = vmatprep.subr.mxu0 0.0
  %1613 = vmatpush1.msra.mxu0 %v1595
  %1614 = vmatprep.subr.mxu0 0.0
  %1615 = vmatpush1.msra.mxu0 %v1596
  %1616 = vmatprep.subr.mxu0 0.0
  %1617 = vmatpush1.msra.mxu0 0.0
  %1618 = vmatprep.subr.mxu0 0.0
  %1619 = vmatpush1.msra.mxu0 0.0
  %1620 = vmatprep.subr.mxu0 0.0
  %1621 = vmatpush1.msra.mxu0 0.0
  %1622 = vmatprep.subr.mxu0 0.0
  %1623 = vmatpush1.msra.mxu0 0.0
  %1624 = vmatprep.subr.mxu0 0.0
  %1625 = vmatpush1.msra.mxu0 0.0
  %1626 = vmatprep.subr.mxu0 0.0
  %1627 = vmatpush1.msra.mxu0 0.0
  %1628 = vmatprep.subr.mxu0 0.0
  %1629 = vmatpush1.msra.mxu0 0.0
  %1630 = vmatprep.subr.mxu0 0.0
  %1631 = vmatpush1.msra.mxu0 0.0
  %1632 = vmatprep.subr.mxu0 0.0
  %1633 = vmatpush1.msra.mxu0 0.0
  %1634 = vmatprep.subr.mxu0 0.0
  %1635 = vmatpush1.msra.mxu0 0.0
  %1636 = vmatprep.subr.mxu0 0.0
  %1637 = vmatpush1.msra.mxu0 0.0
  %1638 = vmatprep.subr.mxu0 0.0
  %1639 = vmatpush1.msra.mxu0 0.0
  %1640 = vmatprep.subr.mxu0 0.0
  %1641 = vmatpush1.msra.mxu0 0.0
  %1642 = vmatprep.subr.mxu0 0.0
  %1643 = vmatpush1.msra.mxu0 0.0
  %1644 = vmatprep.subr.mxu0 0.0
  %1645 = vmatpush1.msra.mxu0 0.0
  %1646 = vmatprep.subr.mxu0 0.0
  %1647 = vmatpush1.msra.mxu0 0.0
  %1648 = vmatprep.subr.mxu0 0.0
  %1649 = vmatpush1.msra.mxu0 0.0
  %1650 = vmatprep.subr.mxu0 0.0
  %1651 = vmatpush1.msra.mxu0 0.0
  %1652 = vmatprep.subr.mxu0 0.0
  %1653 = vmatpush1.msra.mxu0 0.0
  %1654 = vmatprep.subr.mxu0 0.0
  %1655 = vmatpush1.msra.mxu0 0.0
  %1656 = vmatprep.subr.mxu0 0.0
  %1657 = vmatpush1.msra.mxu0 0.0
  %1658 = vmatprep.subr.mxu0 0.0
  %1659 = vmatpush1.msra.mxu0 0.0
  %1660 = vmatprep.subr.mxu0 0.0
  %1661 = vmatpush1.msra.mxu0 0.0
  %1662 = vmatprep.subr.mxu0 0.0
  %1663 = vmatpush1.msra.mxu0 0.0
  %1664 = vmatprep.subr.mxu0 0.0
  %1665 = vmatpush1.msra.mxu0 0.0
  %1666 = vmatprep.subr.mxu0 0.0
  %1667 = vmatpush1.msra.mxu0 0.0
  %1668 = vmatprep.subr.mxu0 0.0
  %1669 = vmatpush1.msra.mxu0 0.0
  %1670 = vmatprep.subr.mxu0 0.0
  %1671 = vmatpush1.msra.mxu0 0.0
  %1672 = vmatprep.mubr.f32.mxu0 0.0
  %1673 = vmatmul.mubr.f32.gmra.mrb[0].mxu0 %v1606
  %v1674 = vpop.f32.mrb[0].mxu0
  %v1675 = vadd.f32 %v1603, %v1674
  %v1676 = vpop.f32.mrb[0].mxu0
  %1677 = vdwg.mxu0
  %v1678 = vmax.f32 %v1675, 0.0
  %v1679 = vadd.f32 %v1504, %v1678
  %s1680 = scalar_lea.vmem %s5, 320
  %v1681 = vld [vmem:[%s1680] sm:$0xff]
  %v1682 = vld [vmem:[%s1680 + $0x8] sm:$0xff]
  %v1683 = vld [vmem:[%s1680 + $0x10] sm:$0xff]
  %v1684 = vld [vmem:[%s1680 + $0x18] sm:$0xff]
  %s1685 = scalar_lea.vmem %s6, 10
  %v1686 = vld [vmem:[%s1685] sm:$0x1]
  %v1688 = vlaneseq
  %v1689 = vshrl.u32 %v1688, 7
  %v1690 = vsub.s32 0, %v1689
  %v1691 = vrot.slane %v1686, %v1690
  %v1694 = vsel %vm558, %v1679, 0
  %1696 = vmatprep.subr.mxu0 0.0
  %1697 = vmatpush1.msra.mxu0 %v1681
  %1698 = vmatprep.subr.mxu0 0.0
  %1699 = vmatpush1.msra.mxu0 %v1682
  %1700 = vmatprep.subr.mxu0 0.0
  %1701 = vmatpush1.msra.mxu0 %v1683
  %1702 = vmatprep.subr.mxu0 0.0
  %1703 = vmatpush1.msra.mxu0 %v1684
  %1704 = vmatprep.subr.mxu0 0.0
  %1705 = vmatpush1.msra.mxu0 0.0
  %1706 = vmatprep.subr.mxu0 0.0
  %1707 = vmatpush1.msra.mxu0 0.0
  %1708 = vmatprep.subr.mxu0 0.0
  %1709 = vmatpush1.msra.mxu0 0.0
  %1710 = vmatprep.subr.mxu0 0.0
  %1711 = vmatpush1.msra.mxu0 0.0
  %1712 = vmatprep.subr.mxu0 0.0
  %1713 = vmatpush1.msra.mxu0 0.0
  %1714 = vmatprep.subr.mxu0 0.0
  %1715 = vmatpush1.msra.mxu0 0.0
  %1716 = vmatprep.subr.mxu0 0.0
  %1717 = vmatpush1.msra.mxu0 0.0
  %1718 = vmatprep.subr.mxu0 0.0
  %1719 = vmatpush1.msra.mxu0 0.0
  %1720 = vmatprep.subr.mxu0 0.0
  %1721 = vmatpush1.msra.mxu0 0.0
  %1722 = vmatprep.subr.mxu0 0.0
  %1723 = vmatpush1.msra.mxu0 0.0
  %1724 = vmatprep.subr.mxu0 0.0
  %1725 = vmatpush1.msra.mxu0 0.0
  %1726 = vmatprep.subr.mxu0 0.0
  %1727 = vmatpush1.msra.mxu0 0.0
  %1728 = vmatprep.subr.mxu0 0.0
  %1729 = vmatpush1.msra.mxu0 0.0
  %1730 = vmatprep.subr.mxu0 0.0
  %1731 = vmatpush1.msra.mxu0 0.0
  %1732 = vmatprep.subr.mxu0 0.0
  %1733 = vmatpush1.msra.mxu0 0.0
  %1734 = vmatprep.subr.mxu0 0.0
  %1735 = vmatpush1.msra.mxu0 0.0
  %1736 = vmatprep.subr.mxu0 0.0
  %1737 = vmatpush1.msra.mxu0 0.0
  %1738 = vmatprep.subr.mxu0 0.0
  %1739 = vmatpush1.msra.mxu0 0.0
  %1740 = vmatprep.subr.mxu0 0.0
  %1741 = vmatpush1.msra.mxu0 0.0
  %1742 = vmatprep.subr.mxu0 0.0
  %1743 = vmatpush1.msra.mxu0 0.0
  %1744 = vmatprep.subr.mxu0 0.0
  %1745 = vmatpush1.msra.mxu0 0.0
  %1746 = vmatprep.subr.mxu0 0.0
  %1747 = vmatpush1.msra.mxu0 0.0
  %1748 = vmatprep.subr.mxu0 0.0
  %1749 = vmatpush1.msra.mxu0 0.0
  %1750 = vmatprep.subr.mxu0 0.0
  %1751 = vmatpush1.msra.mxu0 0.0
  %1752 = vmatprep.subr.mxu0 0.0
  %1753 = vmatpush1.msra.mxu0 0.0
  %1754 = vmatprep.subr.mxu0 0.0
  %1755 = vmatpush1.msra.mxu0 0.0
  %1756 = vmatprep.subr.mxu0 0.0
  %1757 = vmatpush1.msra.mxu0 0.0
  %1758 = vmatprep.subr.mxu0 0.0
  %1759 = vmatpush1.msra.mxu0 0.0
  %1760 = vmatprep.mubr.f32.mxu0 0.0
  %1761 = vmatmul.mubr.f32.gmra.mrb[0].mxu0 %v1694
  %v1762 = vpop.f32.mrb[0].mxu0
  %v1763 = vadd.f32 %v1691, %v1762
  %v1764 = vpop.f32.mrb[0].mxu0
  %1765 = vdwg.mxu0
  %v1766 = vmax.f32 %v1763, 0.0
  %s1767 = scalar_lea.vmem %s5, 352
  %v1768 = vld [vmem:[%s1767] sm:$0xff]
  %v1769 = vld [vmem:[%s1767 + $0x8] sm:$0xff]
  %v1770 = vld [vmem:[%s1767 + $0x10] sm:$0xff]
  %v1771 = vld [vmem:[%s1767 + $0x18] sm:$0xff]
  %s1772 = scalar_lea.vmem %s6, 11
  %v1773 = vld [vmem:[%s1772] sm:$0x1]
  %v1775 = vlaneseq
  %v1776 = vshrl.u32 %v1775, 7
  %v1777 = vsub.s32 0, %v1776
  %v1778 = vrot.slane %v1773, %v1777
  %v1781 = vsel %vm558, %v1766, 0
  %1783 = vmatprep.subr.mxu0 0.0
  %1784 = vmatpush1.msra.mxu0 %v1768
  %1785 = vmatprep.subr.mxu0 0.0
  %1786 = vmatpush1.msra.mxu0 %v1769
  %1787 = vmatprep.subr.mxu0 0.0
  %1788 = vmatpush1.msra.mxu0 %v1770
  %1789 = vmatprep.subr.mxu0 0.0
  %1790 = vmatpush1.msra.mxu0 %v1771
  %1791 = vmatprep.subr.mxu0 0.0
  %1792 = vmatpush1.msra.mxu0 0.0
  %1793 = vmatprep.subr.mxu0 0.0
  %1794 = vmatpush1.msra.mxu0 0.0
  %1795 = vmatprep.subr.mxu0 0.0
  %1796 = vmatpush1.msra.mxu0 0.0
  %1797 = vmatprep.subr.mxu0 0.0
  %1798 = vmatpush1.msra.mxu0 0.0
  %1799 = vmatprep.subr.mxu0 0.0
  %1800 = vmatpush1.msra.mxu0 0.0
  %1801 = vmatprep.subr.mxu0 0.0
  %1802 = vmatpush1.msra.mxu0 0.0
  %1803 = vmatprep.subr.mxu0 0.0
  %1804 = vmatpush1.msra.mxu0 0.0
  %1805 = vmatprep.subr.mxu0 0.0
  %1806 = vmatpush1.msra.mxu0 0.0
  %1807 = vmatprep.subr.mxu0 0.0
  %1808 = vmatpush1.msra.mxu0 0.0
  %1809 = vmatprep.subr.mxu0 0.0
  %1810 = vmatpush1.msra.mxu0 0.0
  %1811 = vmatprep.subr.mxu0 0.0
  %1812 = vmatpush1.msra.mxu0 0.0
  %1813 = vmatprep.subr.mxu0 0.0
  %1814 = vmatpush1.msra.mxu0 0.0
  %1815 = vmatprep.subr.mxu0 0.0
  %1816 = vmatpush1.msra.mxu0 0.0
  %1817 = vmatprep.subr.mxu0 0.0
  %1818 = vmatpush1.msra.mxu0 0.0
  %1819 = vmatprep.subr.mxu0 0.0
  %1820 = vmatpush1.msra.mxu0 0.0
  %1821 = vmatprep.subr.mxu0 0.0
  %1822 = vmatpush1.msra.mxu0 0.0
  %1823 = vmatprep.subr.mxu0 0.0
  %1824 = vmatpush1.msra.mxu0 0.0
  %1825 = vmatprep.subr.mxu0 0.0
  %1826 = vmatpush1.msra.mxu0 0.0
  %1827 = vmatprep.subr.mxu0 0.0
  %1828 = vmatpush1.msra.mxu0 0.0
  %1829 = vmatprep.subr.mxu0 0.0
  %1830 = vmatpush1.msra.mxu0 0.0
  %1831 = vmatprep.subr.mxu0 0.0
  %1832 = vmatpush1.msra.mxu0 0.0
  %1833 = vmatprep.subr.mxu0 0.0
  %1834 = vmatpush1.msra.mxu0 0.0
  %1835 = vmatprep.subr.mxu0 0.0
  %1836 = vmatpush1.msra.mxu0 0.0
  %1837 = vmatprep.subr.mxu0 0.0
  %1838 = vmatpush1.msra.mxu0 0.0
  %1839 = vmatprep.subr.mxu0 0.0
  %1840 = vmatpush1.msra.mxu0 0.0
  %1841 = vmatprep.subr.mxu0 0.0
  %1842 = vmatpush1.msra.mxu0 0.0
  %1843 = vmatprep.subr.mxu0 0.0
  %1844 = vmatpush1.msra.mxu0 0.0
  %1845 = vmatprep.subr.mxu0 0.0
  %1846 = vmatpush1.msra.mxu0 0.0
  %1847 = vmatprep.mubr.f32.mxu0 0.0
  %1848 = vmatmul.mubr.f32.gmra.mrb[0].mxu0 %v1781
  %v1849 = vpop.f32.mrb[0].mxu0
  %v1850 = vadd.f32 %v1778, %v1849
  %v1851 = vpop.f32.mrb[0].mxu0
  %1852 = vdwg.mxu0
  %v1853 = vmax.f32 %v1850, 0.0
  %v1854 = vadd.f32 %v1679, %v1853
  %s1855 = scalar_lea.vmem %s7, 32
  %v1856 = vld [vmem:[%s1855] sm:$0xff]
  %v1857 = vld [vmem:[%s1855 + $0x8] sm:$0xff]
  %v1858 = vld [vmem:[%s1855 + $0x10] sm:$0xff]
  %v1859 = vld [vmem:[%s1855 + $0x18] sm:$0xff]
  %s1860 = scalar_lea.vmem %s8, 1
  %v1861 = vld [vmem:[%s1860] sm:$0x1]
  %v1863 = vlaneseq
  %v1864 = vshrl.u32 %v1863, 7
  %v1865 = vsub.s32 0, %v1864
  %v1866 = vrot.slane %v1861, %v1865
  %v1869 = vsel %vm558, %v1854, 0
  %1871 = vmatprep.subr.mxu0 0.0
  %1872 = vmatpush1.msra.mxu0 %v1856
  %1873 = vmatprep.subr.mxu0 0.0
  %1874 = vmatpush1.msra.mxu0 %v1857
  %1875 = vmatprep.subr.mxu0 0.0
  %1876 = vmatpush1.msra.mxu0 %v1858
  %1877 = vmatprep.subr.mxu0 0.0
  %1878 = vmatpush1.msra.mxu0 %v1859
  %1879 = vmatprep.subr.mxu0 0.0
  %1880 = vmatpush1.msra.mxu0 0.0
  %1881 = vmatprep.subr.mxu0 0.0
  %1882 = vmatpush1.msra.mxu0 0.0
  %1883 = vmatprep.subr.mxu0 0.0
  %1884 = vmatpush1.msra.mxu0 0.0
  %1885 = vmatprep.subr.mxu0 0.0
  %1886 = vmatpush1.msra.mxu0 0.0
  %1887 = vmatprep.subr.mxu0 0.0
  %1888 = vmatpush1.msra.mxu0 0.0
  %1889 = vmatprep.subr.mxu0 0.0
  %1890 = vmatpush1.msra.mxu0 0.0
  %1891 = vmatprep.subr.mxu0 0.0
  %1892 = vmatpush1.msra.mxu0 0.0
  %1893 = vmatprep.subr.mxu0 0.0
  %1894 = vmatpush1.msra.mxu0 0.0
  %1895 = vmatprep.subr.mxu0 0.0
  %1896 = vmatpush1.msra.mxu0 0.0
  %1897 = vmatprep.subr.mxu0 0.0
  %1898 = vmatpush1.msra.mxu0 0.0
  %1899 = vmatprep.subr.mxu0 0.0
  %1900 = vmatpush1.msra.mxu0 0.0
  %1901 = vmatprep.subr.mxu0 0.0
  %1902 = vmatpush1.msra.mxu0 0.0
  %1903 = vmatprep.subr.mxu0 0.0
  %1904 = vmatpush1.msra.mxu0 0.0
  %1905 = vmatprep.subr.mxu0 0.0
  %1906 = vmatpush1.msra.mxu0 0.0
  %1907 = vmatprep.subr.mxu0 0.0
  %1908 = vmatpush1.msra.mxu0 0.0
  %1909 = vmatprep.subr.mxu0 0.0
  %1910 = vmatpush1.msra.mxu0 0.0
  %1911 = vmatprep.subr.mxu0 0.0
  %1912 = vmatpush1.msra.mxu0 0.0
  %1913 = vmatprep.subr.mxu0 0.0
  %1914 = vmatpush1.msra.mxu0 0.0
  %1915 = vmatprep.subr.mxu0 0.0
  %1916 = vmatpush1.msra.mxu0 0.0
  %1917 = vmatprep.subr.mxu0 0.0
  %1918 = vmatpush1.msra.mxu0 0.0
  %1919 = vmatprep.subr.mxu0 0.0
  %1920 = vmatpush1.msra.mxu0 0.0
  %1921 = vmatprep.subr.mxu0 0.0
  %1922 = vmatpush1.msra.mxu0 0.0
  %1923 = vmatprep.subr.mxu0 0.0
  %1924 = vmatpush1.msra.mxu0 0.0
  %1925 = vmatprep.subr.mxu0 0.0
  %1926 = vmatpush1.msra.mxu0 0.0
  %1927 = vmatprep.subr.mxu0 0.0
  %1928 = vmatpush1.msra.mxu0 0.0
  %1929 = vmatprep.subr.mxu0 0.0
  %1930 = vmatpush1.msra.mxu0 0.0
  %1931 = vmatprep.subr.mxu0 0.0
  %1932 = vmatpush1.msra.mxu0 0.0
  %1933 = vmatprep.subr.mxu0 0.0
  %1934 = vmatpush1.msra.mxu0 0.0
  %1935 = vmatprep.mubr.f32.mxu0 0.0
  %1936 = vmatmul.mubr.f32.gmra.mrb[0].mxu0 %v1869
  %v1937 = vpop.f32.mrb[0].mxu0
  %v1938 = vadd.f32 %v1866, %v1937
  %v1939 = vpop.f32.mrb[0].mxu0
  %1940 = vdwg.mxu0
  %v1941 = vmax.f32 %v1938, 0.0
  %s1942 = scalar_lea.vmem %s9, 8
  %v1943 = vld [vmem:[%s1942] sm:$0xff]
  %s1944 = scalar_lea.vmem %s10, 1
  %v1945 = vld [vmem:[%s1944] sm:$0x1]
  %v1947 = vlaneseq
  %v1948 = vshrl.u32 %v1947, 7
  %v1949 = vsub.s32 0, %v1948
  %v1950 = vrot.slane %v1945, %v1949
  %v1953 = vsel %vm1164, %v1941, 0
  %1955 = vmatprep.subr.mxu0 0.0
  %1956 = vmatpush1.msra.mxu0 %v1943
  %1957 = vmatprep.subr.mxu0 0.0
  %1958 = vmatpush1.msra.mxu0 0.0
  %1959 = vmatprep.subr.mxu0 0.0
  %1960 = vmatpush1.msra.mxu0 0.0
  %1961 = vmatprep.subr.mxu0 0.0
  %1962 = vmatpush1.msra.mxu0 0.0
  %1963 = vmatprep.subr.mxu0 0.0
  %1964 = vmatpush1.msra.mxu0 0.0
  %1965 = vmatprep.subr.mxu0 0.0
  %1966 = vmatpush1.msra.mxu0 0.0
  %1967 = vmatprep.subr.mxu0 0.0
  %1968 = vmatpush1.msra.mxu0 0.0
  %1969 = vmatprep.subr.mxu0 0.0
  %1970 = vmatpush1.msra.mxu0 0.0
  %1971 = vmatprep.subr.mxu0 0.0
  %1972 = vmatpush1.msra.mxu0 0.0
  %1973 = vmatprep.subr.mxu0 0.0
  %1974 = vmatpush1.msra.mxu0 0.0
  %1975 = vmatprep.subr.mxu0 0.0
  %1976 = vmatpush1.msra.mxu0 0.0
  %1977 = vmatprep.subr.mxu0 0.0
  %1978 = vmatpush1.msra.mxu0 0.0
  %1979 = vmatprep.subr.mxu0 0.0
  %1980 = vmatpush1.msra.mxu0 0.0
  %1981 = vmatprep.subr.mxu0 0.0
  %1982 = vmatpush1.msra.mxu0 0.0
  %1983 = vmatprep.subr.mxu0 0.0
  %1984 = vmatpush1.msra.mxu0 0.0
  %1985 = vmatprep.subr.mxu0 0.0
  %1986 = vmatpush1.msra.mxu0 0.0
  %1987 = vmatprep.subr.mxu0 0.0
  %1988 = vmatpush1.msra.mxu0 0.0
  %1989 = vmatprep.subr.mxu0 0.0
  %1990 = vmatpush1.msra.mxu0 0.0
  %1991 = vmatprep.subr.mxu0 0.0
  %1992 = vmatpush1.msra.mxu0 0.0
  %1993 = vmatprep.subr.mxu0 0.0
  %1994 = vmatpush1.msra.mxu0 0.0
  %1995 = vmatprep.subr.mxu0 0.0
  %1996 = vmatpush1.msra.mxu0 0.0
  %1997 = vmatprep.subr.mxu0 0.0
  %1998 = vmatpush1.msra.mxu0 0.0
  %1999 = vmatprep.subr.mxu0 0.0
  %2000 = vmatpush1.msra.mxu0 0.0
  %2001 = vmatprep.subr.mxu0 0.0
  %2002 = vmatpush1.msra.mxu0 0.0
  %2003 = vmatprep.subr.mxu0 0.0
  %2004 = vmatpush1.msra.mxu0 0.0
  %2005 = vmatprep.subr.mxu0 0.0
  %2006 = vmatpush1.msra.mxu0 0.0
  %2007 = vmatprep.subr.mxu0 0.0
  %2008 = vmatpush1.msra.mxu0 0.0
  %2009 = vmatprep.subr.mxu0 0.0
  %2010 = vmatpush1.msra.mxu0 0.0
  %2011 = vmatprep.subr.mxu0 0.0
  %2012 = vmatpush1.msra.mxu0 0.0
  %2013 = vmatprep.subr.mxu0 0.0
  %2014 = vmatpush1.msra.mxu0 0.0
  %2015 = vmatprep.subr.mxu0 0.0
  %2016 = vmatpush1.msra.mxu0 0.0
  %2017 = vmatprep.subr.mxu0 0.0
  %2018 = vmatpush1.msra.mxu0 0.0
  %2019 = vmatprep.mubr.f32.mxu0 0.0
  %2020 = vmatmul.mubr.f32.gmra.mrb[0].mxu0 %v1953
  %v2021 = vpop.f32.mrb[0].mxu0
  %v2022 = vadd.f32 %v1950, %v2021
  %v2023 = vpop.f32.mrb[0].mxu0
  %2024 = vdwg.mxu0
  %s2025 = scalar_lea.vmem %s3, 128
  %v2026 = vld [vmem:[%s2025] sm:$0xff]
  %v2027 = vld [vmem:[%s2025 + $0x8] sm:$0xff]
  %v2028 = vld [vmem:[%s2025 + $0x10] sm:$0xff]
  %v2029 = vld [vmem:[%s2025 + $0x18] sm:$0xff]
  %v2030 = vld [vmem:[%s2025 + $0x20] sm:$0xff]
  %v2031 = vld [vmem:[%s2025 + $0x28] sm:$0xff]
  %v2032 = vld [vmem:[%s2025 + $0x30] sm:$0xff]
  %v2033 = vld [vmem:[%s2025 + $0x38] sm:$0xff]
  %s2034 = scalar_lea.vmem %s4, 2
  %v2035 = vld [vmem:[%s2034] sm:$0x1]
  %v2037 = vlaneseq
  %v2038 = vshrl.u32 %v2037, 7
  %v2039 = vsub.s32 0, %v2038
  %v2040 = vrot.slane %v2035, %v2039
  %v2042 = vrot.slane %v378, 2
  %v2043 = vrot.slane %v451, 1
  %v2044 = vsel %vm472, %v2043, %v2042
  %v2045 = vsel %vm69, %v2044, 0
  %2047 = vmatprep.subr.mxu0 0.0
  %2048 = vmatpush1.msra.mxu0 %v2026
  %2049 = vmatprep.subr.mxu0 0.0
  %2050 = vmatpush1.msra.mxu0 %v2027
  %2051 = vmatprep.subr.mxu0 0.0
  %2052 = vmatpush1.msra.mxu0 %v2028
  %2053 = vmatprep.subr.mxu0 0.0
  %2054 = vmatpush1.msra.mxu0 %v2029
  %2055 = vmatprep.subr.mxu0 0.0
  %2056 = vmatpush1.msra.mxu0 %v2030
  %2057 = vmatprep.subr.mxu0 0.0
  %2058 = vmatpush1.msra.mxu0 %v2031
  %2059 = vmatprep.subr.mxu0 0.0
  %2060 = vmatpush1.msra.mxu0 %v2032
  %2061 = vmatprep.subr.mxu0 0.0
  %2062 = vmatpush1.msra.mxu0 %v2033
  %2063 = vmatprep.subr.mxu0 0.0
  %2064 = vmatpush1.msra.mxu0 0.0
  %2065 = vmatprep.subr.mxu0 0.0
  %2066 = vmatpush1.msra.mxu0 0.0
  %2067 = vmatprep.subr.mxu0 0.0
  %2068 = vmatpush1.msra.mxu0 0.0
  %2069 = vmatprep.subr.mxu0 0.0
  %2070 = vmatpush1.msra.mxu0 0.0
  %2071 = vmatprep.subr.mxu0 0.0
  %2072 = vmatpush1.msra.mxu0 0.0
  %2073 = vmatprep.subr.mxu0 0.0
  %2074 = vmatpush1.msra.mxu0 0.0
  %2075 = vmatprep.subr.mxu0 0.0
  %2076 = vmatpush1.msra.mxu0 0.0
  %2077 = vmatprep.subr.mxu0 0.0
  %2078 = vmatpush1.msra.mxu0 0.0
  %2079 = vmatprep.subr.mxu0 0.0
  %2080 = vmatpush1.msra.mxu0 0.0
  %2081 = vmatprep.subr.mxu0 0.0
  %2082 = vmatpush1.msra.mxu0 0.0
  %2083 = vmatprep.subr.mxu0 0.0
  %2084 = vmatpush1.msra.mxu0 0.0
  %2085 = vmatprep.subr.mxu0 0.0
  %2086 = vmatpush1.msra.mxu0 0.0
  %2087 = vmatprep.subr.mxu0 0.0
  %2088 = vmatpush1.msra.mxu0 0.0
  %2089 = vmatprep.subr.mxu0 0.0
  %2090 = vmatpush1.msra.mxu0 0.0
  %2091 = vmatprep.subr.mxu0 0.0
  %2092 = vmatpush1.msra.mxu0 0.0
  %2093 = vmatprep.subr.mxu0 0.0
  %2094 = vmatpush1.msra.mxu0 0.0
  %2095 = vmatprep.subr.mxu0 0.0
  %2096 = vmatpush1.msra.mxu0 0.0
  %2097 = vmatprep.subr.mxu0 0.0
  %2098 = vmatpush1.msra.mxu0 0.0
  %2099 = vmatprep.subr.mxu0 0.0
  %2100 = vmatpush1.msra.mxu0 0.0
  %2101 = vmatprep.subr.mxu0 0.0
  %2102 = vmatpush1.msra.mxu0 0.0
  %2103 = vmatprep.subr.mxu0 0.0
  %2104 = vmatpush1.msra.mxu0 0.0
  %2105 = vmatprep.subr.mxu0 0.0
  %2106 = vmatpush1.msra.mxu0 0.0
  %2107 = vmatprep.subr.mxu0 0.0
  %2108 = vmatpush1.msra.mxu0 0.0
  %2109 = vmatprep.subr.mxu0 0.0
  %2110 = vmatpush1.msra.mxu0 0.0
  %2111 = vmatprep.mubr.f32.mxu0 0.0
  %2112 = vmatmul.mubr.f32.gmra.mrb[0].mxu0 %v2045
  %v2113 = vpop.f32.mrb[0].mxu0
  %v2114 = vadd.f32 %v2040, %v2113
  %v2115 = vpop.f32.mrb[0].mxu0
  %2116 = vdwg.mxu0
  %v2117 = vmax.f32 %v2114, 0.0
  %s2118 = scalar_lea.vmem %s5, 384
  %v2119 = vld [vmem:[%s2118] sm:$0xff]
  %v2120 = vld [vmem:[%s2118 + $0x8] sm:$0xff]
  %v2121 = vld [vmem:[%s2118 + $0x10] sm:$0xff]
  %v2122 = vld [vmem:[%s2118 + $0x18] sm:$0xff]
  %s2123 = scalar_lea.vmem %s6, 12
  %v2124 = vld [vmem:[%s2123] sm:$0x1]
  %v2126 = vlaneseq
  %v2127 = vshrl.u32 %v2126, 7
  %v2128 = vsub.s32 0, %v2127
  %v2129 = vrot.slane %v2124, %v2128
  %v2132 = vsel %vm558, %v2117, 0
  %2134 = vmatprep.subr.mxu0 0.0
  %2135 = vmatpush1.msra.mxu0 %v2119
  %2136 = vmatprep.subr.mxu0 0.0
  %2137 = vmatpush1.msra.mxu0 %v2120
  %2138 = vmatprep.subr.mxu0 0.0
  %2139 = vmatpush1.msra.mxu0 %v2121
  %2140 = vmatprep.subr.mxu0 0.0
  %2141 = vmatpush1.msra.mxu0 %v2122
  %2142 = vmatprep.subr.mxu0 0.0
  %2143 = vmatpush1.msra.mxu0 0.0
  %2144 = vmatprep.subr.mxu0 0.0
  %2145 = vmatpush1.msra.mxu0 0.0
  %2146 = vmatprep.subr.mxu0 0.0
  %2147 = vmatpush1.msra.mxu0 0.0
  %2148 = vmatprep.subr.mxu0 0.0
  %2149 = vmatpush1.msra.mxu0 0.0
  %2150 = vmatprep.subr.mxu0 0.0
  %2151 = vmatpush1.msra.mxu0 0.0
  %2152 = vmatprep.subr.mxu0 0.0
  %2153 = vmatpush1.msra.mxu0 0.0
  %2154 = vmatprep.subr.mxu0 0.0
  %2155 = vmatpush1.msra.mxu0 0.0
  %2156 = vmatprep.subr.mxu0 0.0
  %2157 = vmatpush1.msra.mxu0 0.0
  %2158 = vmatprep.subr.mxu0 0.0
  %2159 = vmatpush1.msra.mxu0 0.0
  %2160 = vmatprep.subr.mxu0 0.0
  %2161 = vmatpush1.msra.mxu0 0.0
  %2162 = vmatprep.subr.mxu0 0.0
  %2163 = vmatpush1.msra.mxu0 0.0
  %2164 = vmatprep.subr.mxu0 0.0
  %2165 = vmatpush1.msra.mxu0 0.0
  %2166 = vmatprep.subr.mxu0 0.0
  %2167 = vmatpush1.msra.mxu0 0.0
  %2168 = vmatprep.subr.mxu0 0.0
  %2169 = vmatpush1.msra.mxu0 0.0
  %2170 = vmatprep.subr.mxu0 0.0
  %2171 = vmatpush1.msra.mxu0 0.0
  %2172 = vmatprep.subr.mxu0 0.0
  %2173 = vmatpush1.msra.mxu0 0.0
  %2174 = vmatprep.subr.mxu0 0.0
  %2175 = vmatpush1.msra.mxu0 0.0
  %2176 = vmatprep.subr.mxu0 0.0
  %2177 = vmatpush1.msra.mxu0 0.0
  %2178 = vmatprep.subr.mxu0 0.0
  %2179 = vmatpush1.msra.mxu0 0.0
  %2180 = vmatprep.subr.mxu0 0.0
  %2181 = vmatpush1.msra.mxu0 0.0
  %2182 = vmatprep.subr.mxu0 0.0
  %2183 = vmatpush1.msra.mxu0 0.0
  %2184 = vmatprep.subr.mxu0 0.0
  %2185 = vmatpush1.msra.mxu0 0.0
  %2186 = vmatprep.subr.mxu0 0.0
  %2187 = vmatpush1.msra.mxu0 0.0
  %2188 = vmatprep.subr.mxu0 0.0
  %2189 = vmatpush1.msra.mxu0 0.0
  %2190 = vmatprep.subr.mxu0 0.0
  %2191 = vmatpush1.msra.mxu0 0.0
  %2192 = vmatprep.subr.mxu0 0.0
  %2193 = vmatpush1.msra.mxu0 0.0
  %2194 = vmatprep.subr.mxu0 0.0
  %2195 = vmatpush1.msra.mxu0 0.0
  %2196 = vmatprep.subr.mxu0 0.0
  %2197 = vmatpush1.msra.mxu0 0.0
  %2198 = vmatprep.mubr.f32.mxu0 0.0
  %2199 = vmatmul.mubr.f32.gmra.mrb[0].mxu0 %v2132
  %v2200 = vpop.f32.mrb[0].mxu0
  %v2201 = vadd.f32 %v2129, %v2200
  %v2202 = vpop.f32.mrb[0].mxu0
  %2203 = vdwg.mxu0
  %v2204 = vmax.f32 %v2201, 0.0
  %s2205 = scalar_lea.vmem %s5, 416
  %v2206 = vld [vmem:[%s2205] sm:$0xff]
  %v2207 = vld [vmem:[%s2205 + $0x8] sm:$0xff]
  %v2208 = vld [vmem:[%s2205 + $0x10] sm:$0xff]
  %v2209 = vld [vmem:[%s2205 + $0x18] sm:$0xff]
  %s2210 = scalar_lea.vmem %s6, 13
  %v2211 = vld [vmem:[%s2210] sm:$0x1]
  %v2213 = vlaneseq
  %v2214 = vshrl.u32 %v2213, 7
  %v2215 = vsub.s32 0, %v2214
  %v2216 = vrot.slane %v2211, %v2215
  %v2219 = vsel %vm558, %v2204, 0
  %2221 = vmatprep.subr.mxu0 0.0
  %2222 = vmatpush1.msra.mxu0 %v2206
  %2223 = vmatprep.subr.mxu0 0.0
  %2224 = vmatpush1.msra.mxu0 %v2207
  %2225 = vmatprep.subr.mxu0 0.0
  %2226 = vmatpush1.msra.mxu0 %v2208
  %2227 = vmatprep.subr.mxu0 0.0
  %2228 = vmatpush1.msra.mxu0 %v2209
  %2229 = vmatprep.subr.mxu0 0.0
  %2230 = vmatpush1.msra.mxu0 0.0
  %2231 = vmatprep.subr.mxu0 0.0
  %2232 = vmatpush1.msra.mxu0 0.0
  %2233 = vmatprep.subr.mxu0 0.0
  %2234 = vmatpush1.msra.mxu0 0.0
  %2235 = vmatprep.subr.mxu0 0.0
  %2236 = vmatpush1.msra.mxu0 0.0
  %2237 = vmatprep.subr.mxu0 0.0
  %2238 = vmatpush1.msra.mxu0 0.0
  %2239 = vmatprep.subr.mxu0 0.0
  %2240 = vmatpush1.msra.mxu0 0.0
  %2241 = vmatprep.subr.mxu0 0.0
  %2242 = vmatpush1.msra.mxu0 0.0
  %2243 = vmatprep.subr.mxu0 0.0
  %2244 = vmatpush1.msra.mxu0 0.0
  %2245 = vmatprep.subr.mxu0 0.0
  %2246 = vmatpush1.msra.mxu0 0.0
  %2247 = vmatprep.subr.mxu0 0.0
  %2248 = vmatpush1.msra.mxu0 0.0
  %2249 = vmatprep.subr.mxu0 0.0
  %2250 = vmatpush1.msra.mxu0 0.0
  %2251 = vmatprep.subr.mxu0 0.0
  %2252 = vmatpush1.msra.mxu0 0.0
  %2253 = vmatprep.subr.mxu0 0.0
  %2254 = vmatpush1.msra.mxu0 0.0
  %2255 = vmatprep.subr.mxu0 0.0
  %2256 = vmatpush1.msra.mxu0 0.0
  %2257 = vmatprep.subr.mxu0 0.0
  %2258 = vmatpush1.msra.mxu0 0.0
  %2259 = vmatprep.subr.mxu0 0.0
  %2260 = vmatpush1.msra.mxu0 0.0
  %2261 = vmatprep.subr.mxu0 0.0
  %2262 = vmatpush1.msra.mxu0 0.0
  %2263 = vmatprep.subr.mxu0 0.0
  %2264 = vmatpush1.msra.mxu0 0.0
  %2265 = vmatprep.subr.mxu0 0.0
  %2266 = vmatpush1.msra.mxu0 0.0
  %2267 = vmatprep.subr.mxu0 0.0
  %2268 = vmatpush1.msra.mxu0 0.0
  %2269 = vmatprep.subr.mxu0 0.0
  %2270 = vmatpush1.msra.mxu0 0.0
  %2271 = vmatprep.subr.mxu0 0.0
  %2272 = vmatpush1.msra.mxu0 0.0
  %2273 = vmatprep.subr.mxu0 0.0
  %2274 = vmatpush1.msra.mxu0 0.0
  %2275 = vmatprep.subr.mxu0 0.0
  %2276 = vmatpush1.msra.mxu0 0.0
  %2277 = vmatprep.subr.mxu0 0.0
  %2278 = vmatpush1.msra.mxu0 0.0
  %2279 = vmatprep.subr.mxu0 0.0
  %2280 = vmatpush1.msra.mxu0 0.0
  %2281 = vmatprep.subr.mxu0 0.0
  %2282 = vmatpush1.msra.mxu0 0.0
  %2283 = vmatprep.subr.mxu0 0.0
  %2284 = vmatpush1.msra.mxu0 0.0
  %2285 = vmatprep.mubr.f32.mxu0 0.0
  %2286 = vmatmul.mubr.f32.gmra.mrb[0].mxu0 %v2219
  %v2287 = vpop.f32.mrb[0].mxu0
  %v2288 = vadd.f32 %v2216, %v2287
  %v2289 = vpop.f32.mrb[0].mxu0
  %2290 = vdwg.mxu0
  %v2291 = vmax.f32 %v2288, 0.0
  %v2292 = vadd.f32 %v2117, %v2291
  %s2293 = scalar_lea.vmem %s5, 448
  %v2294 = vld [vmem:[%s2293] sm:$0xff]
  %v2295 = vld [vmem:[%s2293 + $0x8] sm:$0xff]
  %v2296 = vld [vmem:[%s2293 + $0x10] sm:$0xff]
  %v2297 = vld [vmem:[%s2293 + $0x18] sm:$0xff]
  %s2298 = scalar_lea.vmem %s6, 14
  %v2299 = vld [vmem:[%s2298] sm:$0x1]
  %v2301 = vlaneseq
  %v2302 = vshrl.u32 %v2301, 7
  %v2303 = vsub.s32 0, %v2302
  %v2304 = vrot.slane %v2299, %v2303
  %v2307 = vsel %vm558, %v2292, 0
  %2309 = vmatprep.subr.mxu0 0.0
  %2310 = vmatpush1.msra.mxu0 %v2294
  %2311 = vmatprep.subr.mxu0 0.0
  %2312 = vmatpush1.msra.mxu0 %v2295
  %2313 = vmatprep.subr.mxu0 0.0
  %2314 = vmatpush1.msra.mxu0 %v2296
  %2315 = vmatprep.subr.mxu0 0.0
  %2316 = vmatpush1.msra.mxu0 %v2297
  %2317 = vmatprep.subr.mxu0 0.0
  %2318 = vmatpush1.msra.mxu0 0.0
  %2319 = vmatprep.subr.mxu0 0.0
  %2320 = vmatpush1.msra.mxu0 0.0
  %2321 = vmatprep.subr.mxu0 0.0
  %2322 = vmatpush1.msra.mxu0 0.0
  %2323 = vmatprep.subr.mxu0 0.0
  %2324 = vmatpush1.msra.mxu0 0.0
  %2325 = vmatprep.subr.mxu0 0.0
  %2326 = vmatpush1.msra.mxu0 0.0
  %2327 = vmatprep.subr.mxu0 0.0
  %2328 = vmatpush1.msra.mxu0 0.0
  %2329 = vmatprep.subr.mxu0 0.0
  %2330 = vmatpush1.msra.mxu0 0.0
  %2331 = vmatprep.subr.mxu0 0.0
  %2332 = vmatpush1.msra.mxu0 0.0
  %2333 = vmatprep.subr.mxu0 0.0
  %2334 = vmatpush1.msra.mxu0 0.0
  %2335 = vmatprep.subr.mxu0 0.0
  %2336 = vmatpush1.msra.mxu0 0.0
  %2337 = vmatprep.subr.mxu0 0.0
  %2338 = vmatpush1.msra.mxu0 0.0
  %2339 = vmatprep.subr.mxu0 0.0
  %2340 = vmatpush1.msra.mxu0 0.0
  %2341 = vmatprep.subr.mxu0 0.0
  %2342 = vmatpush1.msra.mxu0 0.0
  %2343 = vmatprep.subr.mxu0 0.0
  %2344 = vmatpush1.msra.mxu0 0.0
  %2345 = vmatprep.subr.mxu0 0.0
  %2346 = vmatpush1.msra.mxu0 0.0
  %2347 = vmatprep.subr.mxu0 0.0
  %2348 = vmatpush1.msra.mxu0 0.0
  %2349 = vmatprep.subr.mxu0 0.0
  %2350 = vmatpush1.msra.mxu0 0.0
  %2351 = vmatprep.subr.mxu0 0.0
  %2352 = vmatpush1.msra.mxu0 0.0
  %2353 = vmatprep.subr.mxu0 0.0
  %2354 = vmatpush1.msra.mxu0 0.0
  %2355 = vmatprep.subr.mxu0 0.0
  %2356 = vmatpush1.msra.mxu0 0.0
  %2357 = vmatprep.subr.mxu0 0.0
  %2358 = vmatpush1.msra.mxu0 0.0
  %2359 = vmatprep.subr.mxu0 0.0
  %2360 = vmatpush1.msra.mxu0 0.0
  %2361 = vmatprep.subr.mxu0 0.0
  %2362 = vmatpush1.msra.mxu0 0.0
  %2363 = vmatprep.subr.mxu0 0.0
  %2364 = vmatpush1.msra.mxu0 0.0
  %2365 = vmatprep.subr.mxu0 0.0
  %2366 = vmatpush1.msra.mxu0 0.0
  %2367 = vmatprep.subr.mxu0 0.0
  %2368 = vmatpush1.msra.mxu0 0.0
  %2369 = vmatprep.subr.mxu0 0.0
  %2370 = vmatpush1.msra.mxu0 0.0
  %2371 = vmatprep.subr.mxu0 0.0
  %2372 = vmatpush1.msra.mxu0 0.0
  %2373 = vmatprep.mubr.f32.mxu0 0.0
  %2374 = vmatmul.mubr.f32.gmra.mrb[0].mxu0 %v2307
  %v2375 = vpop.f32.mrb[0].mxu0
  %v2376 = vadd.f32 %v2304, %v2375
  %v2377 = vpop.f32.mrb[0].mxu0
  %2378 = vdwg.mxu0
  %v2379 = vmax.f32 %v2376, 0.0
  %s2380 = scalar_lea.vmem %s5, 480
  %v2381 = vld [vmem:[%s2380] sm:$0xff]
  %v2382 = vld [vmem:[%s2380 + $0x8] sm:$0xff]
  %v2383 = vld [vmem:[%s2380 + $0x10] sm:$0xff]
  %v2384 = vld [vmem:[%s2380 + $0x18] sm:$0xff]
  %s2385 = scalar_lea.vmem %s6, 15
  %v2386 = vld [vmem:[%s2385] sm:$0x1]
  %v2388 = vlaneseq
  %v2389 = vshrl.u32 %v2388, 7
  %v2390 = vsub.s32 0, %v2389
  %v2391 = vrot.slane %v2386, %v2390
  %v2394 = vsel %vm558, %v2379, 0
  %2396 = vmatprep.subr.mxu0 0.0
  %2397 = vmatpush1.msra.mxu0 %v2381
  %2398 = vmatprep.subr.mxu0 0.0
  %2399 = vmatpush1.msra.mxu0 %v2382
  %2400 = vmatprep.subr.mxu0 0.0
  %2401 = vmatpush1.msra.mxu0 %v2383
  %2402 = vmatprep.subr.mxu0 0.0
  %2403 = vmatpush1.msra.mxu0 %v2384
  %2404 = vmatprep.subr.mxu0 0.0
  %2405 = vmatpush1.msra.mxu0 0.0
  %2406 = vmatprep.subr.mxu0 0.0
  %2407 = vmatpush1.msra.mxu0 0.0
  %2408 = vmatprep.subr.mxu0 0.0
  %2409 = vmatpush1.msra.mxu0 0.0
  %2410 = vmatprep.subr.mxu0 0.0
  %2411 = vmatpush1.msra.mxu0 0.0
  %2412 = vmatprep.subr.mxu0 0.0
  %2413 = vmatpush1.msra.mxu0 0.0
  %2414 = vmatprep.subr.mxu0 0.0
  %2415 = vmatpush1.msra.mxu0 0.0
  %2416 = vmatprep.subr.mxu0 0.0
  %2417 = vmatpush1.msra.mxu0 0.0
  %2418 = vmatprep.subr.mxu0 0.0
  %2419 = vmatpush1.msra.mxu0 0.0
  %2420 = vmatprep.subr.mxu0 0.0
  %2421 = vmatpush1.msra.mxu0 0.0
  %2422 = vmatprep.subr.mxu0 0.0
  %2423 = vmatpush1.msra.mxu0 0.0
  %2424 = vmatprep.subr.mxu0 0.0
  %2425 = vmatpush1.msra.mxu0 0.0
  %2426 = vmatprep.subr.mxu0 0.0
  %2427 = vmatpush1.msra.mxu0 0.0
  %2428 = vmatprep.subr.mxu0 0.0
  %2429 = vmatpush1.msra.mxu0 0.0
  %2430 = vmatprep.subr.mxu0 0.0
  %2431 = vmatpush1.msra.mxu0 0.0
  %2432 = vmatprep.subr.mxu0 0.0
  %2433 = vmatpush1.msra.mxu0 0.0
  %2434 = vmatprep.subr.mxu0 0.0
  %2435 = vmatpush1.msra.mxu0 0.0
  %2436 = vmatprep.subr.mxu0 0.0
  %2437 = vmatpush1.msra.mxu0 0.0
  %2438 = vmatprep.subr.mxu0 0.0
  %2439 = vmatpush1.msra.mxu0 0.0
  %2440 = vmatprep.subr.mxu0 0.0
  %2441 = vmatpush1.msra.mxu0 0.0
  %2442 = vmatprep.subr.mxu0 0.0
  %2443 = vmatpush1.msra.mxu0 0.0
  %2444 = vmatprep.subr.mxu0 0.0
  %2445 = vmatpush1.msra.mxu0 0.0
  %2446 = vmatprep.subr.mxu0 0.0
  %2447 = vmatpush1.msra.mxu0 0.0
  %2448 = vmatprep.subr.mxu0 0.0
  %2449 = vmatpush1.msra.mxu0 0.0
  %2450 = vmatprep.subr.mxu0 0.0
  %2451 = vmatpush1.msra.mxu0 0.0
  %2452 = vmatprep.subr.mxu0 0.0
  %2453 = vmatpush1.msra.mxu0 0.0
  %2454 = vmatprep.subr.mxu0 0.0
  %2455 = vmatpush1.msra.mxu0 0.0
  %2456 = vmatprep.subr.mxu0 0.0
  %2457 = vmatpush1.msra.mxu0 0.0
  %2458 = vmatprep.subr.mxu0 0.0
  %2459 = vmatpush1.msra.mxu0 0.0
  %2460 = vmatprep.mubr.f32.mxu0 0.0
  %2461 = vmatmul.mubr.f32.gmra.mrb[0].mxu0 %v2394
  %v2462 = vpop.f32.mrb[0].mxu0
  %v2463 = vadd.f32 %v2391, %v2462
  %v2464 = vpop.f32.mrb[0].mxu0
  %2465 = vdwg.mxu0
  %v2466 = vmax.f32 %v2463, 0.0
  %v2467 = vadd.f32 %v2292, %v2466
  %s2468 = scalar_lea.vmem %s5, 512
  %v2469 = vld [vmem:[%s2468] sm:$0xff]
  %v2470 = vld [vmem:[%s2468 + $0x8] sm:$0xff]
  %v2471 = vld [vmem:[%s2468 + $0x10] sm:$0xff]
  %v2472 = vld [vmem:[%s2468 + $0x18] sm:$0xff]
  %s2473 = scalar_lea.vmem %s6, 16
  %v2474 = vld [vmem:[%s2473] sm:$0x1]
  %v2476 = vlaneseq
  %v2477 = vshrl.u32 %v2476, 7
  %v2478 = vsub.s32 0, %v2477
  %v2479 = vrot.slane %v2474, %v2478
  %v2482 = vsel %vm558, %v2467, 0
  %2484 = vmatprep.subr.mxu0 0.0
  %2485 = vmatpush1.msra.mxu0 %v2469
  %2486 = vmatprep.subr.mxu0 0.0
  %2487 = vmatpush1.msra.mxu0 %v2470
  %2488 = vmatprep.subr.mxu0 0.0
  %2489 = vmatpush1.msra.mxu0 %v2471
  %2490 = vmatprep.subr.mxu0 0.0
  %2491 = vmatpush1.msra.mxu0 %v2472
  %2492 = vmatprep.subr.mxu0 0.0
  %2493 = vmatpush1.msra.mxu0 0.0
  %2494 = vmatprep.subr.mxu0 0.0
  %2495 = vmatpush1.msra.mxu0 0.0
  %2496 = vmatprep.subr.mxu0 0.0
  %2497 = vmatpush1.msra.mxu0 0.0
  %2498 = vmatprep.subr.mxu0 0.0
  %2499 = vmatpush1.msra.mxu0 0.0
  %2500 = vmatprep.subr.mxu0 0.0
  %2501 = vmatpush1.msra.mxu0 0.0
  %2502 = vmatprep.subr.mxu0 0.0
  %2503 = vmatpush1.msra.mxu0 0.0
  %2504 = vmatprep.subr.mxu0 0.0
  %2505 = vmatpush1.msra.mxu0 0.0
  %2506 = vmatprep.subr.mxu0 0.0
  %2507 = vmatpush1.msra.mxu0 0.0
  %2508 = vmatprep.subr.mxu0 0.0
  %2509 = vmatpush1.msra.mxu0 0.0
  %2510 = vmatprep.subr.mxu0 0.0
  %2511 = vmatpush1.msra.mxu0 0.0
  %2512 = vmatprep.subr.mxu0 0.0
  %2513 = vmatpush1.msra.mxu0 0.0
  %2514 = vmatprep.subr.mxu0 0.0
  %2515 = vmatpush1.msra.mxu0 0.0
  %2516 = vmatprep.subr.mxu0 0.0
  %2517 = vmatpush1.msra.mxu0 0.0
  %2518 = vmatprep.subr.mxu0 0.0
  %2519 = vmatpush1.msra.mxu0 0.0
  %2520 = vmatprep.subr.mxu0 0.0
  %2521 = vmatpush1.msra.mxu0 0.0
  %2522 = vmatprep.subr.mxu0 0.0
  %2523 = vmatpush1.msra.mxu0 0.0
  %2524 = vmatprep.subr.mxu0 0.0
  %2525 = vmatpush1.msra.mxu0 0.0
  %2526 = vmatprep.subr.mxu0 0.0
  %2527 = vmatpush1.msra.mxu0 0.0
  %2528 = vmatprep.subr.mxu0 0.0
  %2529 = vmatpush1.msra.mxu0 0.0
  %2530 = vmatprep.subr.mxu0 0.0
  %2531 = vmatpush1.msra.mxu0 0.0
  %2532 = vmatprep.subr.mxu0 0.0
  %2533 = vmatpush1.msra.mxu0 0.0
  %2534 = vmatprep.subr.mxu0 0.0
  %2535 = vmatpush1.msra.mxu0 0.0
  %2536 = vmatprep.subr.mxu0 0.0
  %2537 = vmatpush1.msra.mxu0 0.0
  %2538 = vmatprep.subr.mxu0 0.0
  %2539 = vmatpush1.msra.mxu0 0.0
  %2540 = vmatprep.subr.mxu0 0.0
  %2541 = vmatpush1.msra.mxu0 0.0
  %2542 = vmatprep.subr.mxu0 0.0
  %2543 = vmatpush1.msra.mxu0 0.0
  %2544 = vmatprep.subr.mxu0 0.0
  %2545 = vmatpush1.msra.mxu0 0.0
  %2546 = vmatprep.subr.mxu0 0.0
  %2547 = vmatpush1.msra.mxu0 0.0
  %2548 = vmatprep.mubr.f32.mxu0 0.0
  %2549 = vmatmul.mubr.f32.gmra.mrb[0].mxu0 %v2482
  %v2550 = vpop.f32.mrb[0].mxu0
  %v2551 = vadd.f32 %v2479, %v2550
  %v2552 = vpop.f32.mrb[0].mxu0
  %2553 = vdwg.mxu0
  %v2554 = vmax.f32 %v2551, 0.0
  %s2555 = scalar_lea.vmem %s5, 544
  %v2556 = vld [vmem:[%s2555] sm:$0xff]
  %v2557 = vld [vmem:[%s2555 + $0x8] sm:$0xff]
  %v2558 = vld [vmem:[%s2555 + $0x10] sm:$0xff]
  %v2559 = vld [vmem:[%s2555 + $0x18] sm:$0xff]
  %s2560 = scalar_lea.vmem %s6, 17
  %v2561 = vld [vmem:[%s2560] sm:$0x1]
  %v2563 = vlaneseq
  %v2564 = vshrl.u32 %v2563, 7
  %v2565 = vsub.s32 0, %v2564
  %v2566 = vrot.slane %v2561, %v2565
  %v2569 = vsel %vm558, %v2554, 0
  %2571 = vmatprep.subr.mxu0 0.0
  %2572 = vmatpush1.msra.mxu0 %v2556
  %2573 = vmatprep.subr.mxu0 0.0
  %2574 = vmatpush1.msra.mxu0 %v2557
  %2575 = vmatprep.subr.mxu0 0.0
  %2576 = vmatpush1.msra.mxu0 %v2558
  %2577 = vmatprep.subr.mxu0 0.0
  %2578 = vmatpush1.msra.mxu0 %v2559
  %2579 = vmatprep.subr.mxu0 0.0
  %2580 = vmatpush1.msra.mxu0 0.0
  %2581 = vmatprep.subr.mxu0 0.0
  %2582 = vmatpush1.msra.mxu0 0.0
  %2583 = vmatprep.subr.mxu0 0.0
  %2584 = vmatpush1.msra.mxu0 0.0
  %2585 = vmatprep.subr.mxu0 0.0
  %2586 = vmatpush1.msra.mxu0 0.0
  %2587 = vmatprep.subr.mxu0 0.0
  %2588 = vmatpush1.msra.mxu0 0.0
  %2589 = vmatprep.subr.mxu0 0.0
  %2590 = vmatpush1.msra.mxu0 0.0
  %2591 = vmatprep.subr.mxu0 0.0
  %2592 = vmatpush1.msra.mxu0 0.0
  %2593 = vmatprep.subr.mxu0 0.0
  %2594 = vmatpush1.msra.mxu0 0.0
  %2595 = vmatprep.subr.mxu0 0.0
  %2596 = vmatpush1.msra.mxu0 0.0
  %2597 = vmatprep.subr.mxu0 0.0
  %2598 = vmatpush1.msra.mxu0 0.0
  %2599 = vmatprep.subr.mxu0 0.0
  %2600 = vmatpush1.msra.mxu0 0.0
  %2601 = vmatprep.subr.mxu0 0.0
  %2602 = vmatpush1.msra.mxu0 0.0
  %2603 = vmatprep.subr.mxu0 0.0
  %2604 = vmatpush1.msra.mxu0 0.0
  %2605 = vmatprep.subr.mxu0 0.0
  %2606 = vmatpush1.msra.mxu0 0.0
  %2607 = vmatprep.subr.mxu0 0.0
  %2608 = vmatpush1.msra.mxu0 0.0
  %2609 = vmatprep.subr.mxu0 0.0
  %2610 = vmatpush1.msra.mxu0 0.0
  %2611 = vmatprep.subr.mxu0 0.0
  %2612 = vmatpush1.msra.mxu0 0.0
  %2613 = vmatprep.subr.mxu0 0.0
  %2614 = vmatpush1.msra.mxu0 0.0
  %2615 = vmatprep.subr.mxu0 0.0
  %2616 = vmatpush1.msra.mxu0 0.0
  %2617 = vmatprep.subr.mxu0 0.0
  %2618 = vmatpush1.msra.mxu0 0.0
  %2619 = vmatprep.subr.mxu0 0.0
  %2620 = vmatpush1.msra.mxu0 0.0
  %2621 = vmatprep.subr.mxu0 0.0
  %2622 = vmatpush1.msra.mxu0 0.0
  %2623 = vmatprep.subr.mxu0 0.0
  %2624 = vmatpush1.msra.mxu0 0.0
  %2625 = vmatprep.subr.mxu0 0.0
  %2626 = vmatpush1.msra.mxu0 0.0
  %2627 = vmatprep.subr.mxu0 0.0
  %2628 = vmatpush1.msra.mxu0 0.0
  %2629 = vmatprep.subr.mxu0 0.0
  %2630 = vmatpush1.msra.mxu0 0.0
  %2631 = vmatprep.subr.mxu0 0.0
  %2632 = vmatpush1.msra.mxu0 0.0
  %2633 = vmatprep.subr.mxu0 0.0
  %2634 = vmatpush1.msra.mxu0 0.0
  %2635 = vmatprep.mubr.f32.mxu0 0.0
  %2636 = vmatmul.mubr.f32.gmra.mrb[0].mxu0 %v2569
  %v2637 = vpop.f32.mrb[0].mxu0
  %v2638 = vadd.f32 %v2566, %v2637
  %v2639 = vpop.f32.mrb[0].mxu0
  %2640 = vdwg.mxu0
  %v2641 = vmax.f32 %v2638, 0.0
  %v2642 = vadd.f32 %v2467, %v2641
  %s2643 = scalar_lea.vmem %s7, 64
  %v2644 = vld [vmem:[%s2643] sm:$0xff]
  %v2645 = vld [vmem:[%s2643 + $0x8] sm:$0xff]
  %v2646 = vld [vmem:[%s2643 + $0x10] sm:$0xff]
  %v2647 = vld [vmem:[%s2643 + $0x18] sm:$0xff]
  %s2648 = scalar_lea.vmem %s8, 2
  %v2649 = vld [vmem:[%s2648] sm:$0x1]
  %v2651 = vlaneseq
  %v2652 = vshrl.u32 %v2651, 7
  %v2653 = vsub.s32 0, %v2652
  %v2654 = vrot.slane %v2649, %v2653
  %v2657 = vsel %vm558, %v2642, 0
  %2659 = vmatprep.subr.mxu0 0.0
  %2660 = vmatpush1.msra.mxu0 %v2644
  %2661 = vmatprep.subr.mxu0 0.0
  %2662 = vmatpush1.msra.mxu0 %v2645
  %2663 = vmatprep.subr.mxu0 0.0
  %2664 = vmatpush1.msra.mxu0 %v2646
  %2665 = vmatprep.subr.mxu0 0.0
  %2666 = vmatpush1.msra.mxu0 %v2647
  %2667 = vmatprep.subr.mxu0 0.0
  %2668 = vmatpush1.msra.mxu0 0.0
  %2669 = vmatprep.subr.mxu0 0.0
  %2670 = vmatpush1.msra.mxu0 0.0
  %2671 = vmatprep.subr.mxu0 0.0
  %2672 = vmatpush1.msra.mxu0 0.0
  %2673 = vmatprep.subr.mxu0 0.0
  %2674 = vmatpush1.msra.mxu0 0.0
  %2675 = vmatprep.subr.mxu0 0.0
  %2676 = vmatpush1.msra.mxu0 0.0
  %2677 = vmatprep.subr.mxu0 0.0
  %2678 = vmatpush1.msra.mxu0 0.0
  %2679 = vmatprep.subr.mxu0 0.0
  %2680 = vmatpush1.msra.mxu0 0.0
  %2681 = vmatprep.subr.mxu0 0.0
  %2682 = vmatpush1.msra.mxu0 0.0
  %2683 = vmatprep.subr.mxu0 0.0
  %2684 = vmatpush1.msra.mxu0 0.0
  %2685 = vmatprep.subr.mxu0 0.0
  %2686 = vmatpush1.msra.mxu0 0.0
  %2687 = vmatprep.subr.mxu0 0.0
  %2688 = vmatpush1.msra.mxu0 0.0
  %2689 = vmatprep.subr.mxu0 0.0
  %2690 = vmatpush1.msra.mxu0 0.0
  %2691 = vmatprep.subr.mxu0 0.0
  %2692 = vmatpush1.msra.mxu0 0.0
  %2693 = vmatprep.subr.mxu0 0.0
  %2694 = vmatpush1.msra.mxu0 0.0
  %2695 = vmatprep.subr.mxu0 0.0
  %2696 = vmatpush1.msra.mxu0 0.0
  %2697 = vmatprep.subr.mxu0 0.0
  %2698 = vmatpush1.msra.mxu0 0.0
  %2699 = vmatprep.subr.mxu0 0.0
  %2700 = vmatpush1.msra.mxu0 0.0
  %2701 = vmatprep.subr.mxu0 0.0
  %2702 = vmatpush1.msra.mxu0 0.0
  %2703 = vmatprep.subr.mxu0 0.0
  %2704 = vmatpush1.msra.mxu0 0.0
  %2705 = vmatprep.subr.mxu0 0.0
  %2706 = vmatpush1.msra.mxu0 0.0
  %2707 = vmatprep.subr.mxu0 0.0
  %2708 = vmatpush1.msra.mxu0 0.0
  %2709 = vmatprep.subr.mxu0 0.0
  %2710 = vmatpush1.msra.mxu0 0.0
  %2711 = vmatprep.subr.mxu0 0.0
  %2712 = vmatpush1.msra.mxu0 0.0
  %2713 = vmatprep.subr.mxu0 0.0
  %2714 = vmatpush1.msra.mxu0 0.0
  %2715 = vmatprep.subr.mxu0 0.0
  %2716 = vmatpush1.msra.mxu0 0.0
  %2717 = vmatprep.subr.mxu0 0.0
  %2718 = vmatpush1.msra.mxu0 0.0
  %2719 = vmatprep.subr.mxu0 0.0
  %2720 = vmatpush1.msra.mxu0 0.0
  %2721 = vmatprep.subr.mxu0 0.0
  %2722 = vmatpush1.msra.mxu0 0.0
  %2723 = vmatprep.mubr.f32.mxu0 0.0
  %2724 = vmatmul.mubr.f32.gmra.mrb[0].mxu0 %v2657
  %v2725 = vpop.f32.mrb[0].mxu0
  %v2726 = vadd.f32 %v2654, %v2725
  %v2727 = vpop.f32.mrb[0].mxu0
  %2728 = vdwg.mxu0
  %v2729 = vmax.f32 %v2726, 0.0
  %s2730 = scalar_lea.vmem %s9, 16
  %v2731 = vld [vmem:[%s2730] sm:$0xff]
  %s2732 = scalar_lea.vmem %s10, 2
  %v2733 = vld [vmem:[%s2732] sm:$0x1]
  %v2735 = vlaneseq
  %v2736 = vshrl.u32 %v2735, 7
  %v2737 = vsub.s32 0, %v2736
  %v2738 = vrot.slane %v2733, %v2737
  %v2741 = vsel %vm1164, %v2729, 0
  %2743 = vmatprep.subr.mxu0 0.0
  %2744 = vmatpush1.msra.mxu0 %v2731
  %2745 = vmatprep.subr.mxu0 0.0
  %2746 = vmatpush1.msra.mxu0 0.0
  %2747 = vmatprep.subr.mxu0 0.0
  %2748 = vmatpush1.msra.mxu0 0.0
  %2749 = vmatprep.subr.mxu0 0.0
  %2750 = vmatpush1.msra.mxu0 0.0
  %2751 = vmatprep.subr.mxu0 0.0
  %2752 = vmatpush1.msra.mxu0 0.0
  %2753 = vmatprep.subr.mxu0 0.0
  %2754 = vmatpush1.msra.mxu0 0.0
  %2755 = vmatprep.subr.mxu0 0.0
  %2756 = vmatpush1.msra.mxu0 0.0
  %2757 = vmatprep.subr.mxu0 0.0
  %2758 = vmatpush1.msra.mxu0 0.0
  %2759 = vmatprep.subr.mxu0 0.0
  %2760 = vmatpush1.msra.mxu0 0.0
  %2761 = vmatprep.subr.mxu0 0.0
  %2762 = vmatpush1.msra.mxu0 0.0
  %2763 = vmatprep.subr.mxu0 0.0
  %2764 = vmatpush1.msra.mxu0 0.0
  %2765 = vmatprep.subr.mxu0 0.0
  %2766 = vmatpush1.msra.mxu0 0.0
  %2767 = vmatprep.subr.mxu0 0.0
  %2768 = vmatpush1.msra.mxu0 0.0
  %2769 = vmatprep.subr.mxu0 0.0
  %2770 = vmatpush1.msra.mxu0 0.0
  %2771 = vmatprep.subr.mxu0 0.0
  %2772 = vmatpush1.msra.mxu0 0.0
  %2773 = vmatprep.subr.mxu0 0.0
  %2774 = vmatpush1.msra.mxu0 0.0
  %2775 = vmatprep.subr.mxu0 0.0
  %2776 = vmatpush1.msra.mxu0 0.0
  %2777 = vmatprep.subr.mxu0 0.0
  %2778 = vmatpush1.msra.mxu0 0.0
  %2779 = vmatprep.subr.mxu0 0.0
  %2780 = vmatpush1.msra.mxu0 0.0
  %2781 = vmatprep.subr.mxu0 0.0
  %2782 = vmatpush1.msra.mxu0 0.0
  %2783 = vmatprep.subr.mxu0 0.0
  %2784 = vmatpush1.msra.mxu0 0.0
  %2785 = vmatprep.subr.mxu0 0.0
  %2786 = vmatpush1.msra.mxu0 0.0
  %2787 = vmatprep.subr.mxu0 0.0
  %2788 = vmatpush1.msra.mxu0 0.0
  %2789 = vmatprep.subr.mxu0 0.0
  %2790 = vmatpush1.msra.mxu0 0.0
  %2791 = vmatprep.subr.mxu0 0.0
  %2792 = vmatpush1.msra.mxu0 0.0
  %2793 = vmatprep.subr.mxu0 0.0
  %2794 = vmatpush1.msra.mxu0 0.0
  %2795 = vmatprep.subr.mxu0 0.0
  %2796 = vmatpush1.msra.mxu0 0.0
  %2797 = vmatprep.subr.mxu0 0.0
  %2798 = vmatpush1.msra.mxu0 0.0
  %2799 = vmatprep.subr.mxu0 0.0
  %2800 = vmatpush1.msra.mxu0 0.0
  %2801 = vmatprep.subr.mxu0 0.0
  %2802 = vmatpush1.msra.mxu0 0.0
  %2803 = vmatprep.subr.mxu0 0.0
  %2804 = vmatpush1.msra.mxu0 0.0
  %2805 = vmatprep.subr.mxu0 0.0
  %2806 = vmatpush1.msra.mxu0 0.0
  %2807 = vmatprep.mubr.f32.mxu0 0.0
  %2808 = vmatmul.mubr.f32.gmra.mrb[0].mxu0 %v2741
  %v2809 = vpop.f32.mrb[0].mxu0
  %v2810 = vadd.f32 %v2738, %v2809
  %v2811 = vpop.f32.mrb[0].mxu0
  %2812 = vdwg.mxu0
  %v2813 = vtanh.pop %v1235
  %vm2814 = vcmask 1024
  %2815 = vst.msk [vmem:[%s12] sm:$0x3] %vm2814, %v2813
  %v2816 = vxor.u32 %v2022, 2147483648
  %v2817 = vmul.f32 %v2816, 1.442695
  %v2818 = vpow.pop %v2817
  %v2819 = vadd.f32 %v2818, 1.0
  %v2820 = vrcp.pop %v2819
  %v2821 = vmul.f32 1.0, %v2820
  %2822 = vst.msk [vmem:[%s13] sm:$0x3] %vm2814, %v2821
  %2823 = vst.msk [vmem:[%s14] sm:$0x3] %vm2814, %v2810
  // Predicated region
  $region46: #{chess_heads_forward.1} parent=0 // pred_check
    _
  $region47: #{chess_heads_forward.1} parent=0 // pred_check_branch
    %2825 = sbr.rel (0) target = $region49
  $region48: #{chess_heads_forward.1} parent=0 // pred_region
    _
  $region49: #{chess_heads_forward.1} parent=0 // pred_fallthru
    _
  // Predicated region
  $region50: #{chess_heads_forward.1} parent=0 // pred_check
    _
  $region51: #{chess_heads_forward.1} parent=0 // pred_check_branch
    %2827 = sbr.rel (0) target = $region53
  $region52: #{chess_heads_forward.1} parent=0 // pred_region
    _
  $region53: #{chess_heads_forward.1} parent=0 // pred_fallthru
    _
  // Predicated region
  $region54: #{chess_heads_forward.1} parent=0 // pred_check
    _
  $region55: #{chess_heads_forward.1} parent=0 // pred_check_branch
    %2829 = sbr.rel (0) target = $region57
  $region56: #{chess_heads_forward.1} parent=0 // pred_region
    _
  $region57: #{chess_heads_forward.1} parent=0 // pred_fallthru
    _
  // Predicated region
  $region58: #{chess_heads_forward.1} parent=0 // pred_check
    _
  $region59: #{chess_heads_forward.1} parent=0 // pred_check_branch
    %2831 = sbr.rel (0) target = $region61
  $region60: #{chess_heads_forward.1} parent=0 // pred_region
    _
  $region61: #{chess_heads_forward.1} parent=0 // pred_fallthru
    _
  // Predicated region
  $region62: #{chess_heads_forward.1} parent=0 // pred_check
    _
  $region63: #{chess_heads_forward.1} parent=0 // pred_check_branch
    %2833 = sbr.rel (0) target = $region65
  $region64: #{chess_heads_forward.1} parent=0 // pred_region
    _
  $region65: #{chess_heads_forward.1} parent=0 // pred_fallthru
    _
  // Predicated region
  $region66: #{chess_heads_forward.1} parent=0 // pred_check
    _
  $region67: #{chess_heads_forward.1} parent=0 // pred_check_branch
    %2835 = sbr.rel (0) target = $region69
  $region68: #{chess_heads_forward.1} parent=0 // pred_region
    _
  $region69: #{chess_heads_forward.1} parent=0 // pred_fallthru
    _
  // Predicated region
  $region70: #{chess_heads_forward.1} parent=0 // pred_check
    _
  $region71: #{chess_heads_forward.1} parent=0 // pred_check_branch
    %2837 = sbr.rel (0) target = $region73
  $region72: #{chess_heads_forward.1} parent=0 // pred_region
    _
  $region73: #{chess_heads_forward.1} parent=0 // pred_fallthru
    _
  // Predicated region
  $region74: #{chess_heads_forward.1} parent=0 // pred_check
    _
  $region75: #{chess_heads_forward.1} parent=0 // pred_check_branch
    %2839 = sbr.rel (0) target = $region77
  $region76: #{chess_heads_forward.1} parent=0 // pred_region
    _
  $region77: #{chess_heads_forward.1} parent=0 // pred_fallthru
    _

</llo_original>
